<compile_context>
chip_gen: v5e
topology: v5e:2x2
jax: 0.10.0
libtpu: 0.0.40
codegen_flags: <defaults>
</compile_context>

<pallas_src>
import functools
import math

import jax
import jax.numpy as jnp
from jax.experimental import pallas as pl
from jax.experimental.pallas import tpu as pltpu

HIDDEN = 256          # pretrain hidden size (matches nn.Linear(256, label_num))
NUM_HEADS = 4
HEAD_DIM = HIDDEN // NUM_HEADS
FFN_DIM = 4 * HIDDEN
NUM_LAYERS = 2
EPS = 1e-12
LANE = 128
SMALL_ROWS = 16       # 9 used rows (biases + LN params), padded to a (8,128) tile

# Row indices inside the packed "small" parameter block (per layer):
#   0: bq (pre-scaled)  1: bk  2: bv  3: bo
#   4: ln1_gamma  5: ln1_beta  6: b2  7: ln2_gamma  8: ln2_beta


def _layernorm(x, gamma, beta):
    mean = jnp.mean(x, axis=-1, keepdims=True)
    var = jnp.mean((x - mean) ** 2, axis=-1, keepdims=True)
    return (x - mean) * jax.lax.rsqrt(var + EPS) * gamma + beta


# ---------------------------------------------------------------------------
# Fused kernel body: one encoder layer per grid step; classifier on the last.
# ---------------------------------------------------------------------------
def fused_encoder_classifier_kernel(
    x_ref,                                   # [B, S, H] f32 (resident)
    wqkv_ref, wo_ref, w1_ref, w2_ref,        # per-layer bf16 matmul weights
    small_ref, b1_ref,                       # per-layer f32 side params
    clsw_ref, clsb_ref,                      # classifier (resident)
    out_ref,                                 # [B, lane-padded labels] f32
    x_scratch,                               # [B*S, H] f32, persists across layers
):
    B, S, H = x_ref.shape
    M = B * S
    l = pl.program_id(0)

    @pl.when(l == 0)
    def _():
        x_scratch[...] = x_ref[...].reshape(M, H)

    x = x_scratch[...]
    small = small_ref[...]                   # [SMALL_ROWS, H] f32

    # ---- multi-head self-attention (fused QKV, fused output projection) ----
    x_bf = x.astype(jnp.bfloat16)            # hoisted cast (used once)
    qkv = jnp.dot(x_bf, wqkv_ref[...], preferred_element_type=jnp.float32)  # [M, 3H]
    q = qkv[:, 0:H] + small[0:1, :]          # 1/sqrt(d) already folded into Wq/bq
    k = qkv[:, H:2 * H] + small[1:2, :]
    v = qkv[:, 2 * H:3 * H] + small[2:3, :]

    ctx_heads = []
    for h in range(NUM_HEADS):               # static unroll over heads
        lo, hi = h * HEAD_DIM, (h + 1) * HEAD_DIM
        qh = q[:, lo:hi].reshape(B, S, HEAD_DIM)
        kh = k[:, lo:hi].reshape(B, S, HEAD_DIM)
        vh = v[:, lo:hi].reshape(B, S, HEAD_DIM)
        s = jnp.einsum("bqd,bkd->bqk", qh, kh,
                       preferred_element_type=jnp.float32)      # [B, S, S]
        s = s - jnp.max(s, axis=-1, keepdims=True)
        p = jnp.exp(s)
        p = p * pl.reciprocal(jnp.sum(p, axis=-1, keepdims=True), approx=True)
        ctx = jnp.einsum("bqk,bkd->bqd", p, vh,
                         preferred_element_type=jnp.float32)    # [B, S, HD]
        ctx_heads.append(ctx.reshape(M, HEAD_DIM))
    ctx_all = jnp.concatenate(ctx_heads, axis=-1)               # [M, H] lane-dense

    proj = jnp.dot(ctx_all.astype(jnp.bfloat16), wo_ref[...],
                   preferred_element_type=jnp.float32) + small[3:4, :]
    h1 = _layernorm(x + proj, small[4:5, :], small[5:6, :])

    # ---- feed-forward -------------------------------------------------------
    f = jnp.dot(h1.astype(jnp.bfloat16), w1_ref[...],
                preferred_element_type=jnp.float32) + b1_ref[0:1, :]
    # TODO(synk): tanh-approx GELU (EUP); PyTorch nn.GELU default is exact erf (~1e-3 diff).
    f = jax.nn.gelu(f, approximate=True)
    f = jnp.dot(f.astype(jnp.bfloat16), w2_ref[...],
                preferred_element_type=jnp.float32) + small[6:7, :]
    x_new = _layernorm(h1 + f, small[7:8, :], small[8:9, :])

    x_scratch[...] = x_new

    # ---- classifier head on the CLS token (lane-dense padded output) --------
    @pl.when(l == pl.num_programs(0) - 1)
    def _():
        cls = x_new.reshape(B, S, H)[:, 0, :]                   # x[:, 0]
        out_ref[...] = (jnp.dot(cls.astype(jnp.bfloat16), clsw_ref[...],
                                preferred_element_type=jnp.float32)
                        + clsb_ref[...])


# ---------------------------------------------------------------------------
# Forward pass: embedding lookup (JAX glue) -> layer-gridded Pallas kernel.
# ---------------------------------------------------------------------------
def label_classifier_forward(token_ids, packed, label_num):
    B, S = token_ids.shape
    H, F = HIDDEN, FFN_DIM
    # TODO(synk): embedding gather (nn.Embedding-style lookup) stays as XLA glue.
    emb = (packed["tok_emb"][token_ids] + packed["pos_emb"][None, :S, :]).astype(jnp.float32)

    num_layers = packed["wqkv"].shape[0]
    lpad = packed["cls_w"].shape[1]

    grid_spec = pltpu.PrefetchScalarGridSpec(
        num_scalar_prefetch=0,
        grid=(num_layers,),
        in_specs=[
            pl.BlockSpec((B, S, H), lambda l: (0, 0, 0)),            # emb (resident)
            pl.BlockSpec((None, H, 3 * H), lambda l: (l, 0, 0)),     # wqkv
            pl.BlockSpec((None, H, H), lambda l: (l, 0, 0)),         # wo
            pl.BlockSpec((None, H, F), lambda l: (l, 0, 0)),         # w1
            pl.BlockSpec((None, F, H), lambda l: (l, 0, 0)),         # w2
            pl.BlockSpec((None, SMALL_ROWS, H), lambda l: (l, 0, 0)),  # small params
            pl.BlockSpec((None, 8, F), lambda l: (l, 0, 0)),         # b1 (padded rows)
            pl.BlockSpec((H, lpad), lambda l: (0, 0)),               # cls_w (resident)
            pl.BlockSpec((1, lpad), lambda l: (0, 0)),               # cls_b (resident)
        ],
        out_specs=pl.BlockSpec((B, lpad), lambda l: (0, 0)),
        scratch_shapes=[pltpu.VMEM((B * S, H), jnp.float32)],
    )

    logits_pad = pl.pallas_call(
        fused_encoder_classifier_kernel,
        out_shape=jax.ShapeDtypeStruct((B, lpad), jnp.float32),
        grid_spec=grid_spec,
        compiler_params=pltpu.CompilerParams(dimension_semantics=("arbitrary",)),
    )(emb, packed["wqkv"], packed["wo"], packed["w1"], packed["w2"],
      packed["small"], packed["b1"], packed["cls_w"], packed["cls_b"])

    return logits_pad[:, :label_num]


# ---------------------------------------------------------------------------
# Parameter init (natural PyTorch-like layout) and one-time packing.
# ---------------------------------------------------------------------------
def init_params(key, vocab, max_seq, label_num, num_layers=NUM_LAYERS):
    H, F = HIDDEN, FFN_DIM

    def nrm(k, shape):
        return 0.02 * jax.random.normal(k, shape, jnp.float32)

    keys = iter(jax.random.split(key, 3 + 6 * num_layers))
    params = {
        "tok_emb": nrm(next(keys), (vocab, H)),
        "pos_emb": nrm(next(keys), (max_seq, H)),
        "cls_w": nrm(next(keys), (H, label_num)),
        "cls_b": jnp.zeros((label_num,), jnp.float32),
        "layers": [],
    }
    for _ in range(num_layers):
        params["layers"].append({
            "wq": nrm(next(keys), (H, H)), "bq": jnp.zeros((1, H), jnp.float32),
            "wk": nrm(next(keys), (H, H)), "bk": jnp.zeros((1, H), jnp.float32),
            "wv": nrm(next(keys), (H, H)), "bv": jnp.zeros((1, H), jnp.float32),
            "wo": nrm(next(keys), (H, H)), "bo": jnp.zeros((1, H), jnp.float32),
            "ln1_g": jnp.ones((1, H), jnp.float32), "ln1_b": jnp.zeros((1, H), jnp.float32),
            "w1": nrm(next(keys), (H, F)), "b1": jnp.zeros((1, F), jnp.float32),
            "w2": nrm(next(keys), (F, H)), "b2": jnp.zeros((1, H), jnp.float32),
            "ln2_g": jnp.ones((1, H), jnp.float32), "ln2_b": jnp.zeros((1, H), jnp.float32),
        })
    return params


def pack_params(params):
    """One-time packing: stack layers, fuse QKV (scale folded into Wq/bq),
       cast matmul weights to bf16, consolidate small f32 params into two
       lane-dense blocks, pad classifier output to a multiple of 128 lanes."""
    scale = 1.0 / math.sqrt(HEAD_DIM)
    layers = params["layers"]

    wqkv = jnp.stack([jnp.concatenate([lp["wq"] * scale, lp["wk"], lp["wv"]], axis=1)
                      for lp in layers], axis=0).astype(jnp.bfloat16)       # [L, H, 3H]
    wo = jnp.stack([lp["wo"] for lp in layers], axis=0).astype(jnp.bfloat16)  # [L, H, H]
    w1 = jnp.stack([lp["w1"] for lp in layers], axis=0).astype(jnp.bfloat16)  # [L, H, F]
    w2 = jnp.stack([lp["w2"] for lp in layers], axis=0).astype(jnp.bfloat16)  # [L, F, H]

    def small_for(lp):
        rows = jnp.concatenate([lp["bq"] * scale, lp["bk"], lp["bv"], lp["bo"],
                                lp["ln1_g"], lp["ln1_b"], lp["b2"],
                                lp["ln2_g"], lp["ln2_b"]], axis=0)          # [9, H]
        return jnp.zeros((SMALL_ROWS, HIDDEN), jnp.float32).at[:rows.shape[0]].set(rows)

    small = jnp.stack([small_for(lp) for lp in layers], axis=0)             # [L, 16, H]
    b1 = jnp.stack([jnp.zeros((8, FFN_DIM), jnp.float32).at[0:1, :].set(lp["b1"])
                    for lp in layers], axis=0)                              # [L, 8, F]

    label_num = params["cls_w"].shape[1]
    lpad = ((label_num + LANE - 1) // LANE) * LANE
    cls_w = jnp.zeros((HIDDEN, lpad), jnp.float32).at[:, :label_num].set(params["cls_w"])
    cls_b = jnp.zeros((1, lpad), jnp.float32).at[0, :label_num].set(params["cls_b"])

    return {
        "tok_emb": params["tok_emb"], "pos_emb": params["pos_emb"],
        "wqkv": wqkv, "wo": wo, "w1": w1, "w2": w2,
        "small": small, "b1": b1,
        "cls_w": cls_w.astype(jnp.bfloat16), "cls_b": cls_b,
    }


if __name__ == "__main__":
    B, S = 2, 8
    VOCAB = 32
    LABEL_NUM = 119          # iflytek_public has 119 classes

    key = jax.random.PRNGKey(0)
    k_params, k_ids = jax.random.split(key)
    params = init_params(k_params, VOCAB, S, LABEL_NUM)
    packed = pack_params(params)
    token_ids = jax.random.randint(k_ids, (B, S), 0, VOCAB, dtype=jnp.int32)

    fwd = jax.jit(functools.partial(label_classifier_forward, label_num=LABEL_NUM))
    logits = fwd(token_ids, packed)
    jax.block_until_ready(logits)

    assert logits.shape == (B, LABEL_NUM), logits.shape
    assert logits.dtype == jnp.float32
    print("KERNEL_OK")
</pallas_src>

<mosaic_0001>
module attributes {stable_mosaic.version = 11 : i64} {
  func.func @fused_encoder_classifier_kernel(%arg0: i32, %arg1: memref<2x8x256xf32, #tpu.memory_space<vmem>>, %arg2: memref<1x256x768xbf16, #tpu.memory_space<vmem>>, %arg3: memref<1x256x256xbf16, #tpu.memory_space<vmem>>, %arg4: memref<1x256x1024xbf16, #tpu.memory_space<vmem>>, %arg5: memref<1x1024x256xbf16, #tpu.memory_space<vmem>>, %arg6: memref<1x16x256xf32, #tpu.memory_space<vmem>>, %arg7: memref<1x8x1024xf32, #tpu.memory_space<vmem>>, %arg8: memref<256x128xbf16, #tpu.memory_space<vmem>>, %arg9: memref<1x128xf32, #tpu.memory_space<vmem>>, %arg10: memref<2x128xf32, #tpu.memory_space<vmem>>, %arg11: memref<16x256xf32, #tpu.memory_space<vmem>>) attributes {dimension_semantics = [#tpu.dimension_semantics<arbitrary>], iteration_bounds = array<i64: 2>, scalar_prefetch = 0 : i64, scratch_operands = 1 : i64, tpu.core_type = #tpu.core_type<tc>, window_params = [{pipeline_mode = #tpu.pipeline_mode<synchronous>, transform_indices = @transform_0, window_bounds = array<i64: 2, 8, 256>}, {transform_indices = @transform_1, window_bounds = array<i64: 1, 256, 768>}, {transform_indices = @transform_2, window_bounds = array<i64: 1, 256, 256>}, {transform_indices = @transform_3, window_bounds = array<i64: 1, 256, 1024>}, {transform_indices = @transform_4, window_bounds = array<i64: 1, 1024, 256>}, {transform_indices = @transform_5, window_bounds = array<i64: 1, 16, 256>}, {transform_indices = @transform_6, window_bounds = array<i64: 1, 8, 1024>}, {pipeline_mode = #tpu.pipeline_mode<synchronous>, transform_indices = @transform_7, window_bounds = array<i64: 256, 128>}, {pipeline_mode = #tpu.pipeline_mode<synchronous>, transform_indices = @transform_8, window_bounds = array<i64: 1, 128>}, {pipeline_mode = #tpu.pipeline_mode<synchronous>, transform_indices = @transform_9, window_bounds = array<i64: 2, 128>}]} {
    %c0_i32 = arith.constant 0 : i32
    %0 = arith.cmpi eq, %arg0, %c0_i32 : i32
    %1 = arith.extui %0 : i1 to i32
    %c0_i32_0 = arith.constant 0 : i32
    %2 = arith.cmpi ne, %1, %c0_i32_0 : i32
    scf.if %2 {
      %c0_56 = arith.constant 0 : index
      %c0_57 = arith.constant 0 : index
      %c0_58 = arith.constant 0 : index
      %188 = vector.load %arg1[%c0_56, %c0_57, %c0_58] : memref<2x8x256xf32, #tpu.memory_space<vmem>>, vector<2x8x256xf32>
      %189 = vector.shape_cast %188 : vector<2x8x256xf32> to vector<16x256xf32>
      %c0_59 = arith.constant 0 : index
      %c0_60 = arith.constant 0 : index
      %190 = vector.load %arg11[%c0_59, %c0_60] : memref<16x256xf32, #tpu.memory_space<vmem>>, vector<16x256xf32>
      tpu.vector_store %arg11[%c0_59, %c0_60], %189 {strides = array<i32>} : memref<16x256xf32, #tpu.memory_space<vmem>>, vector<16x256xf32>,
    } else {
    }
    %c0 = arith.constant 0 : index
    %c0_1 = arith.constant 0 : index
    %3 = vector.load %arg11[%c0, %c0_1] : memref<16x256xf32, #tpu.memory_space<vmem>>, vector<16x256xf32>
    %c0_2 = arith.constant 0 : index
    %c0_3 = arith.constant 0 : index
    %c0_4 = arith.constant 0 : index
    %4 = vector.load %arg6[%c0_2, %c0_3, %c0_4] : memref<1x16x256xf32, #tpu.memory_space<vmem>>, vector<1x16x256xf32>
    %5 = vector.shape_cast %4 : vector<1x16x256xf32> to vector<16x256xf32>
    %6 = arith.truncf %3 : vector<16x256xf32> to vector<16x256xbf16>
    %c0_5 = arith.constant 0 : index
    %c0_6 = arith.constant 0 : index
    %c0_7 = arith.constant 0 : index
    %7 = vector.load %arg2[%c0_5, %c0_6, %c0_7] : memref<1x256x768xbf16, #tpu.memory_space<vmem>>, vector<1x256x768xbf16>
    %8 = vector.shape_cast %7 : vector<1x256x768xbf16> to vector<256x768xbf16>
    %cst = arith.constant dense<0.000000e+00> : vector<16x768xf32>
    %9 = tpu.matmul %6, %8, %cst {dimension_numbers = #tpu.dot_dimension_numbers<[1], [0], [0], [1], [0, 0, 1, 1], [], []>} : vector<16x256xbf16>, vector<256x768xbf16>, vector<16x768xf32> -> vector<16x768xf32>
    %10 = vector.extract_strided_slice %9 {offsets = [0, 0], sizes = [16, 256], strides = [1, 1]} : vector<16x768xf32> to vector<16x256xf32>
    %11 = vector.extract_strided_slice %5 {offsets = [0, 0], sizes = [1, 256], strides = [1, 1]} : vector<16x256xf32> to vector<1x256xf32>
    %12 = vector.broadcast %11 : vector<1x256xf32> to vector<16x256xf32>
    %13 = arith.addf %10, %12 : vector<16x256xf32>
    %14 = vector.extract_strided_slice %9 {offsets = [0, 256], sizes = [16, 256], strides = [1, 1]} : vector<16x768xf32> to vector<16x256xf32>
    %15 = vector.extract_strided_slice %5 {offsets = [1, 0], sizes = [1, 256], strides = [1, 1]} : vector<16x256xf32> to vector<1x256xf32>
    %16 = vector.broadcast %15 : vector<1x256xf32> to vector<16x256xf32>
    %17 = arith.addf %14, %16 : vector<16x256xf32>
    %18 = vector.extract_strided_slice %9 {offsets = [0, 512], sizes = [16, 256], strides = [1, 1]} : vector<16x768xf32> to vector<16x256xf32>
    %19 = vector.extract_strided_slice %5 {offsets = [2, 0], sizes = [1, 256], strides = [1, 1]} : vector<16x256xf32> to vector<1x256xf32>
    %20 = vector.broadcast %19 : vector<1x256xf32> to vector<16x256xf32>
    %21 = arith.addf %18, %20 : vector<16x256xf32>
    %22 = vector.extract_strided_slice %13 {offsets = [0, 0], sizes = [16, 64], strides = [1, 1]} : vector<16x256xf32> to vector<16x64xf32>
    %23 = vector.shape_cast %22 : vector<16x64xf32> to vector<2x8x64xf32>
    %24 = vector.extract_strided_slice %17 {offsets = [0, 0], sizes = [16, 64], strides = [1, 1]} : vector<16x256xf32> to vector<16x64xf32>
    %25 = vector.shape_cast %24 : vector<16x64xf32> to vector<2x8x64xf32>
    %26 = vector.extract_strided_slice %21 {offsets = [0, 0], sizes = [16, 64], strides = [1, 1]} : vector<16x256xf32> to vector<16x64xf32>
    %27 = vector.shape_cast %26 : vector<16x64xf32> to vector<2x8x64xf32>
    "tpu.trace_start"() <{level = 10 : i32, message = "bqd,bkd->bqk"}> : () -> ()
    %cst_8 = arith.constant dense<0.000000e+00> : vector<2x8x8xf32>
    %28 = tpu.matmul %23, %25, %cst_8 {dimension_numbers = #tpu.dot_dimension_numbers<[2], [2], [1], [1], [0, 0, 0, 1, 1, 1], [0], [0]>} : vector<2x8x64xf32>, vector<2x8x64xf32>, vector<2x8x8xf32> -> vector<2x8x8xf32>
    "tpu.trace_stop"() : () -> ()
    %cst_9 = arith.constant dense<0xFF800000> : vector<2x8xf32>
    %29 = vector.multi_reduction <maximumf>, %28, %cst_9 [2] : vector<2x8x8xf32> to vector<2x8xf32>
    %30 = vector.shape_cast %29 : vector<2x8xf32> to vector<2x8x1xf32>
    %31 = vector.broadcast %30 : vector<2x8x1xf32> to vector<2x8x8xf32>
    %32 = arith.subf %28, %31 : vector<2x8x8xf32>
    %33 = math.exp %32 : vector<2x8x8xf32>
    %cst_10 = arith.constant dense<0.000000e+00> : vector<2x8xf32>
    %34 = vector.multi_reduction <add>, %33, %cst_10 [2] : vector<2x8x8xf32> to vector<2x8xf32>
    %35 = vector.shape_cast %34 : vector<2x8xf32> to vector<2x8x1xf32>
    %36 = tpu.reciprocal %35 {approx = true} : vector<2x8x1xf32> -> vector<2x8x1xf32>
    %37 = vector.broadcast %36 : vector<2x8x1xf32> to vector<2x8x8xf32>
    %38 = arith.mulf %33, %37 : vector<2x8x8xf32>
    "tpu.trace_start"() <{level = 10 : i32, message = "bqk,bkd->bqd"}> : () -> ()
    %cst_11 = arith.constant dense<0.000000e+00> : vector<2x8x64xf32>
    %39 = tpu.matmul %38, %27, %cst_11 {dimension_numbers = #tpu.dot_dimension_numbers<[2], [1], [1], [2], [0, 0, 0, 1, 1, 2], [0], [0]>} : vector<2x8x8xf32>, vector<2x8x64xf32>, vector<2x8x64xf32> -> vector<2x8x64xf32>
    "tpu.trace_stop"() : () -> ()
    %40 = vector.shape_cast %39 : vector<2x8x64xf32> to vector<16x64xf32>
    %41 = vector.extract_strided_slice %13 {offsets = [0, 64], sizes = [16, 64], strides = [1, 1]} : vector<16x256xf32> to vector<16x64xf32>
    %42 = vector.shape_cast %41 : vector<16x64xf32> to vector<2x8x64xf32>
    %43 = vector.extract_strided_slice %17 {offsets = [0, 64], sizes = [16, 64], strides = [1, 1]} : vector<16x256xf32> to vector<16x64xf32>
    %44 = vector.shape_cast %43 : vector<16x64xf32> to vector<2x8x64xf32>
    %45 = vector.extract_strided_slice %21 {offsets = [0, 64], sizes = [16, 64], strides = [1, 1]} : vector<16x256xf32> to vector<16x64xf32>
    %46 = vector.shape_cast %45 : vector<16x64xf32> to vector<2x8x64xf32>
    "tpu.trace_start"() <{level = 10 : i32, message = "bqd,bkd->bqk"}> : () -> ()
    %cst_12 = arith.constant dense<0.000000e+00> : vector<2x8x8xf32>
    %47 = tpu.matmul %42, %44, %cst_12 {dimension_numbers = #tpu.dot_dimension_numbers<[2], [2], [1], [1], [0, 0, 0, 1, 1, 1], [0], [0]>} : vector<2x8x64xf32>, vector<2x8x64xf32>, vector<2x8x8xf32> -> vector<2x8x8xf32>
    "tpu.trace_stop"() : () -> ()
    %cst_13 = arith.constant dense<0xFF800000> : vector<2x8xf32>
    %48 = vector.multi_reduction <maximumf>, %47, %cst_13 [2] : vector<2x8x8xf32> to vector<2x8xf32>
    %49 = vector.shape_cast %48 : vector<2x8xf32> to vector<2x8x1xf32>
    %50 = vector.broadcast %49 : vector<2x8x1xf32> to vector<2x8x8xf32>
    %51 = arith.subf %47, %50 : vector<2x8x8xf32>
    %52 = math.exp %51 : vector<2x8x8xf32>
    %cst_14 = arith.constant dense<0.000000e+00> : vector<2x8xf32>
    %53 = vector.multi_reduction <add>, %52, %cst_14 [2] : vector<2x8x8xf32> to vector<2x8xf32>
    %54 = vector.shape_cast %53 : vector<2x8xf32> to vector<2x8x1xf32>
    %55 = tpu.reciprocal %54 {approx = true} : vector<2x8x1xf32> -> vector<2x8x1xf32>
    %56 = vector.broadcast %55 : vector<2x8x1xf32> to vector<2x8x8xf32>
    %57 = arith.mulf %52, %56 : vector<2x8x8xf32>
    "tpu.trace_start"() <{level = 10 : i32, message = "bqk,bkd->bqd"}> : () -> ()
    %cst_15 = arith.constant dense<0.000000e+00> : vector<2x8x64xf32>
    %58 = tpu.matmul %57, %46, %cst_15 {dimension_numbers = #tpu.dot_dimension_numbers<[2], [1], [1], [2], [0, 0, 0, 1, 1, 2], [0], [0]>} : vector<2x8x8xf32>, vector<2x8x64xf32>, vector<2x8x64xf32> -> vector<2x8x64xf32>
    "tpu.trace_stop"() : () -> ()
    %59 = vector.shape_cast %58 : vector<2x8x64xf32> to vector<16x64xf32>
    %60 = vector.extract_strided_slice %13 {offsets = [0, 128], sizes = [16, 64], strides = [1, 1]} : vector<16x256xf32> to vector<16x64xf32>
    %61 = vector.shape_cast %60 : vector<16x64xf32> to vector<2x8x64xf32>
    %62 = vector.extract_strided_slice %17 {offsets = [0, 128], sizes = [16, 64], strides = [1, 1]} : vector<16x256xf32> to vector<16x64xf32>
    %63 = vector.shape_cast %62 : vector<16x64xf32> to vector<2x8x64xf32>
    %64 = vector.extract_strided_slice %21 {offsets = [0, 128], sizes = [16, 64], strides = [1, 1]} : vector<16x256xf32> to vector<16x64xf32>
    %65 = vector.shape_cast %64 : vector<16x64xf32> to vector<2x8x64xf32>
    "tpu.trace_start"() <{level = 10 : i32, message = "bqd,bkd->bqk"}> : () -> ()
    %cst_16 = arith.constant dense<0.000000e+00> : vector<2x8x8xf32>
    %66 = tpu.matmul %61, %63, %cst_16 {dimension_numbers = #tpu.dot_dimension_numbers<[2], [2], [1], [1], [0, 0, 0, 1, 1, 1], [0], [0]>} : vector<2x8x64xf32>, vector<2x8x64xf32>, vector<2x8x8xf32> -> vector<2x8x8xf32>
    "tpu.trace_stop"() : () -> ()
    %cst_17 = arith.constant dense<0xFF800000> : vector<2x8xf32>
    %67 = vector.multi_reduction <maximumf>, %66, %cst_17 [2] : vector<2x8x8xf32> to vector<2x8xf32>
    %68 = vector.shape_cast %67 : vector<2x8xf32> to vector<2x8x1xf32>
    %69 = vector.broadcast %68 : vector<2x8x1xf32> to vector<2x8x8xf32>
    %70 = arith.subf %66, %69 : vector<2x8x8xf32>
    %71 = math.exp %70 : vector<2x8x8xf32>
    %cst_18 = arith.constant dense<0.000000e+00> : vector<2x8xf32>
    %72 = vector.multi_reduction <add>, %71, %cst_18 [2] : vector<2x8x8xf32> to vector<2x8xf32>
    %73 = vector.shape_cast %72 : vector<2x8xf32> to vector<2x8x1xf32>
    %74 = tpu.reciprocal %73 {approx = true} : vector<2x8x1xf32> -> vector<2x8x1xf32>
    %75 = vector.broadcast %74 : vector<2x8x1xf32> to vector<2x8x8xf32>
    %76 = arith.mulf %71, %75 : vector<2x8x8xf32>
    "tpu.trace_start"() <{level = 10 : i32, message = "bqk,bkd->bqd"}> : () -> ()
    %cst_19 = arith.constant dense<0.000000e+00> : vector<2x8x64xf32>
    %77 = tpu.matmul %76, %65, %cst_19 {dimension_numbers = #tpu.dot_dimension_numbers<[2], [1], [1], [2], [0, 0, 0, 1, 1, 2], [0], [0]>} : vector<2x8x8xf32>, vector<2x8x64xf32>, vector<2x8x64xf32> -> vector<2x8x64xf32>
    "tpu.trace_stop"() : () -> ()
    %78 = vector.shape_cast %77 : vector<2x8x64xf32> to vector<16x64xf32>
    %79 = vector.extract_strided_slice %13 {offsets = [0, 192], sizes = [16, 64], strides = [1, 1]} : vector<16x256xf32> to vector<16x64xf32>
    %80 = vector.shape_cast %79 : vector<16x64xf32> to vector<2x8x64xf32>
    %81 = vector.extract_strided_slice %17 {offsets = [0, 192], sizes = [16, 64], strides = [1, 1]} : vector<16x256xf32> to vector<16x64xf32>
    %82 = vector.shape_cast %81 : vector<16x64xf32> to vector<2x8x64xf32>
    %83 = vector.extract_strided_slice %21 {offsets = [0, 192], sizes = [16, 64], strides = [1, 1]} : vector<16x256xf32> to vector<16x64xf32>
    %84 = vector.shape_cast %83 : vector<16x64xf32> to vector<2x8x64xf32>
    "tpu.trace_start"() <{level = 10 : i32, message = "bqd,bkd->bqk"}> : () -> ()
    %cst_20 = arith.constant dense<0.000000e+00> : vector<2x8x8xf32>
    %85 = tpu.matmul %80, %82, %cst_20 {dimension_numbers = #tpu.dot_dimension_numbers<[2], [2], [1], [1], [0, 0, 0, 1, 1, 1], [0], [0]>} : vector<2x8x64xf32>, vector<2x8x64xf32>, vector<2x8x8xf32> -> vector<2x8x8xf32>
    "tpu.trace_stop"() : () -> ()
    %cst_21 = arith.constant dense<0xFF800000> : vector<2x8xf32>
    %86 = vector.multi_reduction <maximumf>, %85, %cst_21 [2] : vector<2x8x8xf32> to vector<2x8xf32>
    %87 = vector.shape_cast %86 : vector<2x8xf32> to vector<2x8x1xf32>
    %88 = vector.broadcast %87 : vector<2x8x1xf32> to vector<2x8x8xf32>
    %89 = arith.subf %85, %88 : vector<2x8x8xf32>
    %90 = math.exp %89 : vector<2x8x8xf32>
    %cst_22 = arith.constant dense<0.000000e+00> : vector<2x8xf32>
    %91 = vector.multi_reduction <add>, %90, %cst_22 [2] : vector<2x8x8xf32> to vector<2x8xf32>
    %92 = vector.shape_cast %91 : vector<2x8xf32> to vector<2x8x1xf32>
    %93 = tpu.reciprocal %92 {approx = true} : vector<2x8x1xf32> -> vector<2x8x1xf32>
    %94 = vector.broadcast %93 : vector<2x8x1xf32> to vector<2x8x8xf32>
    %95 = arith.mulf %90, %94 : vector<2x8x8xf32>
    "tpu.trace_start"() <{level = 10 : i32, message = "bqk,bkd->bqd"}> : () -> ()
    %cst_23 = arith.constant dense<0.000000e+00> : vector<2x8x64xf32>
    %96 = tpu.matmul %95, %84, %cst_23 {dimension_numbers = #tpu.dot_dimension_numbers<[2], [1], [1], [2], [0, 0, 0, 1, 1, 2], [0], [0]>} : vector<2x8x8xf32>, vector<2x8x64xf32>, vector<2x8x64xf32> -> vector<2x8x64xf32>
    "tpu.trace_stop"() : () -> ()
    %97 = vector.shape_cast %96 : vector<2x8x64xf32> to vector<16x64xf32>
    %98 = tpu.concatenate %40, %59, %78, %97 in 1 : vector<16x64xf32>, vector<16x64xf32>, vector<16x64xf32>, vector<16x64xf32> -> vector<16x256xf32>
    %99 = arith.truncf %98 : vector<16x256xf32> to vector<16x256xbf16>
    %c0_24 = arith.constant 0 : index
    %c0_25 = arith.constant 0 : index
    %c0_26 = arith.constant 0 : index
    %100 = vector.load %arg3[%c0_24, %c0_25, %c0_26] : memref<1x256x256xbf16, #tpu.memory_space<vmem>>, vector<1x256x256xbf16>
    %101 = vector.shape_cast %100 : vector<1x256x256xbf16> to vector<256x256xbf16>
    %cst_27 = arith.constant dense<0.000000e+00> : vector<16x256xf32>
    %102 = tpu.matmul %99, %101, %cst_27 {dimension_numbers = #tpu.dot_dimension_numbers<[1], [0], [0], [1], [0, 0, 1, 1], [], []>} : vector<16x256xbf16>, vector<256x256xbf16>, vector<16x256xf32> -> vector<16x256xf32>
    %103 = vector.extract_strided_slice %5 {offsets = [3, 0], sizes = [1, 256], strides = [1, 1]} : vector<16x256xf32> to vector<1x256xf32>
    %104 = vector.broadcast %103 : vector<1x256xf32> to vector<16x256xf32>
    %105 = arith.addf %102, %104 : vector<16x256xf32>
    %106 = arith.addf %3, %105 : vector<16x256xf32>
    %107 = vector.extract_strided_slice %5 {offsets = [4, 0], sizes = [1, 256], strides = [1, 1]} : vector<16x256xf32> to vector<1x256xf32>
    %108 = vector.extract_strided_slice %5 {offsets = [5, 0], sizes = [1, 256], strides = [1, 1]} : vector<16x256xf32> to vector<1x256xf32>
    %cst_28 = arith.constant dense<0.000000e+00> : vector<16xf32>
    %109 = vector.multi_reduction <add>, %106, %cst_28 [1] : vector<16x256xf32> to vector<16xf32>
    %110 = vector.shape_cast %109 : vector<16xf32> to vector<16x1xf32>
    %cst_29 = arith.constant 2.560000e+02 : f32
    %111 = vector.broadcast %cst_29 : f32 to vector<16x1xf32>
    %112 = arith.divf %110, %111 : vector<16x1xf32>
    %113 = vector.broadcast %112 : vector<16x1xf32> to vector<16x256xf32>
    %114 = arith.subf %106, %113 : vector<16x256xf32>
    %115 = arith.mulf %114, %114 : vector<16x256xf32>
    %cst_30 = arith.constant dense<0.000000e+00> : vector<16xf32>
    %116 = vector.multi_reduction <add>, %115, %cst_30 [1] : vector<16x256xf32> to vector<16xf32>
    %117 = vector.shape_cast %116 : vector<16xf32> to vector<16x1xf32>
    %cst_31 = arith.constant 2.560000e+02 : f32
    %118 = vector.broadcast %cst_31 : f32 to vector<16x1xf32>
    %119 = arith.divf %117, %118 : vector<16x1xf32>
    %120 = vector.broadcast %112 : vector<16x1xf32> to vector<16x256xf32>
    %121 = arith.subf %106, %120 : vector<16x256xf32>
    %cst_32 = arith.constant 9.99999996E-13 : f32
    %122 = vector.broadcast %cst_32 : f32 to vector<16x1xf32>
    %123 = arith.addf %119, %122 : vector<16x1xf32>
    %124 = math.rsqrt %123 : vector<16x1xf32>
    %125 = vector.broadcast %124 : vector<16x1xf32> to vector<16x256xf32>
    %126 = arith.mulf %121, %125 : vector<16x256xf32>
    %127 = vector.broadcast %107 : vector<1x256xf32> to vector<16x256xf32>
    %128 = arith.mulf %126, %127 : vector<16x256xf32>
    %129 = vector.broadcast %108 : vector<1x256xf32> to vector<16x256xf32>
    %130 = arith.addf %128, %129 : vector<16x256xf32>
    %131 = arith.truncf %130 : vector<16x256xf32> to vector<16x256xbf16>
    %c0_33 = arith.constant 0 : index
    %c0_34 = arith.constant 0 : index
    %c0_35 = arith.constant 0 : index
    %132 = vector.load %arg4[%c0_33, %c0_34, %c0_35] : memref<1x256x1024xbf16, #tpu.memory_space<vmem>>, vector<1x256x1024xbf16>
    %133 = vector.shape_cast %132 : vector<1x256x1024xbf16> to vector<256x1024xbf16>
    %cst_36 = arith.constant dense<0.000000e+00> : vector<16x1024xf32>
    %134 = tpu.matmul %131, %133, %cst_36 {dimension_numbers = #tpu.dot_dimension_numbers<[1], [0], [0], [1], [0, 0, 1, 1], [], []>} : vector<16x256xbf16>, vector<256x1024xbf16>, vector<16x1024xf32> -> vector<16x1024xf32>
    %c0_37 = arith.constant 0 : index
    %c0_38 = arith.constant 0 : index
    %c0_39 = arith.constant 0 : index
    %135 = vector.load %arg7[%c0_37, %c0_38, %c0_39] : memref<1x8x1024xf32, #tpu.memory_space<vmem>>, vector<1x1x1024xf32>
    %136 = vector.shape_cast %135 : vector<1x1x1024xf32> to vector<1x1024xf32>
    %137 = vector.broadcast %136 : vector<1x1024xf32> to vector<16x1024xf32>
    %138 = arith.addf %134, %137 : vector<16x1024xf32>
    %139 = arith.mulf %138, %138 : vector<16x1024xf32>
    %140 = arith.mulf %138, %139 : vector<16x1024xf32>
    %cst_40 = arith.constant 4.471500e-02 : f32
    %141 = vector.broadcast %cst_40 : f32 to vector<16x1024xf32>
    %142 = arith.mulf %141, %140 : vector<16x1024xf32>
    %143 = arith.addf %138, %142 : vector<16x1024xf32>
    %cst_41 = arith.constant 0.797884583 : f32
    %144 = vector.broadcast %cst_41 : f32 to vector<16x1024xf32>
    %145 = arith.mulf %144, %143 : vector<16x1024xf32>
    %146 = math.tanh %145 : vector<16x1024xf32>
    %cst_42 = arith.constant 1.000000e+00 : f32
    %147 = vector.broadcast %cst_42 : f32 to vector<16x1024xf32>
    %148 = arith.addf %147, %146 : vector<16x1024xf32>
    %cst_43 = arith.constant 5.000000e-01 : f32
    %149 = vector.broadcast %cst_43 : f32 to vector<16x1024xf32>
    %150 = arith.mulf %149, %148 : vector<16x1024xf32>
    %151 = arith.mulf %138, %150 : vector<16x1024xf32>
    %152 = arith.truncf %151 : vector<16x1024xf32> to vector<16x1024xbf16>
    %c0_44 = arith.constant 0 : index
    %c0_45 = arith.constant 0 : index
    %c0_46 = arith.constant 0 : index
    %153 = vector.load %arg5[%c0_44, %c0_45, %c0_46] : memref<1x1024x256xbf16, #tpu.memory_space<vmem>>, vector<1x1024x256xbf16>
    %154 = vector.shape_cast %153 : vector<1x1024x256xbf16> to vector<1024x256xbf16>
    %cst_47 = arith.constant dense<0.000000e+00> : vector<16x256xf32>
    %155 = tpu.matmul %152, %154, %cst_47 {dimension_numbers = #tpu.dot_dimension_numbers<[1], [0], [0], [1], [0, 0, 1, 1], [], []>} : vector<16x1024xbf16>, vector<1024x256xbf16>, vector<16x256xf32> -> vector<16x256xf32>
    %156 = vector.extract_strided_slice %5 {offsets = [6, 0], sizes = [1, 256], strides = [1, 1]} : vector<16x256xf32> to vector<1x256xf32>
    %157 = vector.broadcast %156 : vector<1x256xf32> to vector<16x256xf32>
    %158 = arith.addf %155, %157 : vector<16x256xf32>
    %159 = arith.addf %130, %158 : vector<16x256xf32>
    %160 = vector.extract_strided_slice %5 {offsets = [7, 0], sizes = [1, 256], strides = [1, 1]} : vector<16x256xf32> to vector<1x256xf32>
    %161 = vector.extract_strided_slice %5 {offsets = [8, 0], sizes = [1, 256], strides = [1, 1]} : vector<16x256xf32> to vector<1x256xf32>
    %cst_48 = arith.constant dense<0.000000e+00> : vector<16xf32>
    %162 = vector.multi_reduction <add>, %159, %cst_48 [1] : vector<16x256xf32> to vector<16xf32>
    %163 = vector.shape_cast %162 : vector<16xf32> to vector<16x1xf32>
    %cst_49 = arith.constant 2.560000e+02 : f32
    %164 = vector.broadcast %cst_49 : f32 to vector<16x1xf32>
    %165 = arith.divf %163, %164 : vector<16x1xf32>
    %166 = vector.broadcast %165 : vector<16x1xf32> to vector<16x256xf32>
    %167 = arith.subf %159, %166 : vector<16x256xf32>
    %168 = arith.mulf %167, %167 : vector<16x256xf32>
    %cst_50 = arith.constant dense<0.000000e+00> : vector<16xf32>
    %169 = vector.multi_reduction <add>, %168, %cst_50 [1] : vector<16x256xf32> to vector<16xf32>
    %170 = vector.shape_cast %169 : vector<16xf32> to vector<16x1xf32>
    %cst_51 = arith.constant 2.560000e+02 : f32
    %171 = vector.broadcast %cst_51 : f32 to vector<16x1xf32>
    %172 = arith.divf %170, %171 : vector<16x1xf32>
    %173 = vector.broadcast %165 : vector<16x1xf32> to vector<16x256xf32>
    %174 = arith.subf %159, %173 : vector<16x256xf32>
    %cst_52 = arith.constant 9.99999996E-13 : f32
    %175 = vector.broadcast %cst_52 : f32 to vector<16x1xf32>
    %176 = arith.addf %172, %175 : vector<16x1xf32>
    %177 = math.rsqrt %176 : vector<16x1xf32>
    %178 = vector.broadcast %177 : vector<16x1xf32> to vector<16x256xf32>
    %179 = arith.mulf %174, %178 : vector<16x256xf32>
    %180 = vector.broadcast %160 : vector<1x256xf32> to vector<16x256xf32>
    %181 = arith.mulf %179, %180 : vector<16x256xf32>
    %182 = vector.broadcast %161 : vector<1x256xf32> to vector<16x256xf32>
    %183 = arith.addf %181, %182 : vector<16x256xf32>
    %c0_53 = arith.constant 0 : index
    %c0_54 = arith.constant 0 : index
    %184 = vector.load %arg11[%c0_53, %c0_54] : memref<16x256xf32, #tpu.memory_space<vmem>>, vector<16x256xf32>
    tpu.vector_store %arg11[%c0_53, %c0_54], %183 {strides = array<i32>} : memref<16x256xf32, #tpu.memory_space<vmem>>, vector<16x256xf32>,
    %c1_i32 = arith.constant 1 : i32
    %185 = arith.cmpi eq, %arg0, %c1_i32 : i32
    %186 = arith.extui %185 : i1 to i32
    %c0_i32_55 = arith.constant 0 : i32
    %187 = arith.cmpi ne, %186, %c0_i32_55 : i32
    scf.if %187 {
      %188 = vector.shape_cast %183 : vector<16x256xf32> to vector<2x8x256xf32>
      %189 = vector.extract_strided_slice %188 {offsets = [0, 0, 0], sizes = [2, 1, 256], strides = [1, 1, 1]} : vector<2x8x256xf32> to vector<2x1x256xf32>
      %190 = vector.shape_cast %189 : vector<2x1x256xf32> to vector<2x256xf32>
      %191 = arith.truncf %190 : vector<2x256xf32> to vector<2x256xbf16>
      %c0_56 = arith.constant 0 : index
      %c0_57 = arith.constant 0 : index
      %192 = vector.load %arg8[%c0_56, %c0_57] : memref<256x128xbf16, #tpu.memory_space<vmem>>, vector<256x128xbf16>
      %cst_58 = arith.constant dense<0.000000e+00> : vector<2x128xf32>
      %193 = tpu.matmul %191, %192, %cst_58 {dimension_numbers = #tpu.dot_dimension_numbers<[1], [0], [0], [1], [0, 0, 1, 1], [], []>} : vector<2x256xbf16>, vector<256x128xbf16>, vector<2x128xf32> -> vector<2x128xf32>
      %c0_59 = arith.constant 0 : index
      %c0_60 = arith.constant 0 : index
      %194 = vector.load %arg9[%c0_59, %c0_60] : memref<1x128xf32, #tpu.memory_space<vmem>>, vector<1x128xf32>
      %195 = vector.broadcast %194 : vector<1x128xf32> to vector<2x128xf32>
      %196 = arith.addf %193, %195 : vector<2x128xf32>
      %c0_61 = arith.constant 0 : index
      %c0_62 = arith.constant 0 : index
      %197 = vector.load %arg10[%c0_61, %c0_62] : memref<2x128xf32, #tpu.memory_space<vmem>>, vector<2x128xf32>
      tpu.vector_store %arg10[%c0_61, %c0_62], %196 {strides = array<i32>} : memref<2x128xf32, #tpu.memory_space<vmem>>, vector<2x128xf32>,
    } else {
    }
    return
  }
  func.func @transform_0(%arg0: i32) -> (i32, i32, i32) {
    %c0_i32 = arith.constant 0 : i32
    %c0_i32_0 = arith.constant 0 : i32
    %c0_i32_1 = arith.constant 0 : i32
    %c0_i32_2 = arith.constant 0 : i32
    return %c0_i32, %c0_i32_0, %c0_i32_1 : i32, i32, i32
  }
  func.func @transform_1(%arg0: i32) -> (i32, i32, i32) {
    %c0_i32 = arith.constant 0 : i32
    %c0_i32_0 = arith.constant 0 : i32
    %c0_i32_1 = arith.constant 0 : i32
    return %arg0, %c0_i32, %c0_i32_0 : i32, i32, i32
  }
  func.func @transform_2(%arg0: i32) -> (i32, i32, i32) {
    %c0_i32 = arith.constant 0 : i32
    %c0_i32_0 = arith.constant 0 : i32
    %c0_i32_1 = arith.constant 0 : i32
    return %arg0, %c0_i32, %c0_i32_0 : i32, i32, i32
  }
  func.func @transform_3(%arg0: i32) -> (i32, i32, i32) {
    %c0_i32 = arith.constant 0 : i32
    %c0_i32_0 = arith.constant 0 : i32
    %c0_i32_1 = arith.constant 0 : i32
    return %arg0, %c0_i32, %c0_i32_0 : i32, i32, i32
  }
  func.func @transform_4(%arg0: i32) -> (i32, i32, i32) {
    %c0_i32 = arith.constant 0 : i32
    %c0_i32_0 = arith.constant 0 : i32
    %c0_i32_1 = arith.constant 0 : i32
    return %arg0, %c0_i32, %c0_i32_0 : i32, i32, i32
  }
  func.func @transform_5(%arg0: i32) -> (i32, i32, i32) {
    %c0_i32 = arith.constant 0 : i32
    %c0_i32_0 = arith.constant 0 : i32
    %c0_i32_1 = arith.constant 0 : i32
    return %arg0, %c0_i32, %c0_i32_0 : i32, i32, i32
  }
  func.func @transform_6(%arg0: i32) -> (i32, i32, i32) {
    %c0_i32 = arith.constant 0 : i32
    %c0_i32_0 = arith.constant 0 : i32
    %c0_i32_1 = arith.constant 0 : i32
    return %arg0, %c0_i32, %c0_i32_0 : i32, i32, i32
  }
  func.func @transform_7(%arg0: i32) -> (i32, i32) {
    %c0_i32 = arith.constant 0 : i32
    %c0_i32_0 = arith.constant 0 : i32
    %c0_i32_1 = arith.constant 0 : i32
    return %c0_i32, %c0_i32_0 : i32, i32
  }
  func.func @transform_8(%arg0: i32) -> (i32, i32) {
    %c0_i32 = arith.constant 0 : i32
    %c0_i32_0 = arith.constant 0 : i32
    %c0_i32_1 = arith.constant 0 : i32
    return %c0_i32, %c0_i32_0 : i32, i32
  }
  func.func @transform_9(%arg0: i32) -> (i32, i32) {
    %c0_i32 = arith.constant 0 : i32
    %c0_i32_0 = arith.constant 0 : i32
    %c0_i32_1 = arith.constant 0 : i32
    return %c0_i32, %c0_i32_0 : i32, i32
  }
}

</mosaic_0001>

<llo_original>
// kernel: label_classifier_forward.1
$region0: #{label_classifier_forward.1}
  #allocation0 [shape = 'u32[]', space=smem, size = 0x4, offset = 0x4, fixed_abs, tag = 'smem constant byte address 0x4 - core index']
  #allocation1 [shape = 'u32[72,128]{1,0:T(1,128)}', space=vmem, size = 0x9000, scoped, tag = 'internal scratch']
  #allocation2 [shape = 'f32[16,256]{1,0:T(8,128)}', space=vmem, size = 0x4000, scoped, tag = 'scratch operand']
  %s0 = inlined_call_operand.vmem [shape: f32[2,8,256], index: 0, kind: input, shape index: {}]
  %s1 = inlined_call_operand.hbm [shape: bf16[2,256,768], index: 1, kind: input, shape index: {}]
  %s2 = inlined_call_operand.hbm [shape: bf16[2,256,256], index: 2, kind: input, shape index: {}]
  %s3 = inlined_call_operand.hbm [shape: bf16[2,256,1024], index: 3, kind: input, shape index: {}]
  %s4 = inlined_call_operand.hbm [shape: bf16[2,1024,256], index: 4, kind: input, shape index: {}]
  %s5 = inlined_call_operand.vmem [shape: f32[2,16,256], index: 5, kind: input, shape index: {}]
  %s6 = inlined_call_operand.vmem [shape: f32[2,8,1024], index: 6, kind: input, shape index: {}]
  %s7 = inlined_call_operand.vmem [shape: bf16[256,128], index: 7, kind: input, shape index: {}]
  %s8 = inlined_call_operand.vmem [shape: f32[1,128], index: 8, kind: input, shape index: {}]
  %s9 = inlined_call_operand.hbm [shape: f32[2,128], index: 9, kind: output, shape index: {}]
  %s10 = sld [smem:[#allocation0]]
  $region93: #{label_classifier_forward.1} parent=0
    _
  %s12 = ssub.s32 1, %s10
  %s13 = scalar_select 0, %s12, %s10
  $region1: #{label_classifier_forward.1} parent=0
    #allocation3 [shape = 'u8[786432]{0}', space=vmem, size = 0xc0000, scoped, tag = 'input window, operand 1']
    #allocation4 [shape = 's32[2]{0}', space=sflag, size = 0x8, scoped, tag = 'scoped memory for label_classifier_forward.1']
    #allocation5 [shape = 's32[2]{0}', space=sflag, size = 0x8, scoped, tag = 'scoped memory for label_classifier_forward.1']
    #allocation6 [shape = 'u8[262144]{0}', space=vmem, size = 0x40000, scoped, tag = 'input window, operand 2']
    #allocation7 [shape = 's32[2]{0}', space=sflag, size = 0x8, scoped, tag = 'scoped memory for label_classifier_forward.1']
    #allocation8 [shape = 'u8[1048576]{0}', space=vmem, size = 0x100000, scoped, tag = 'input window, operand 3']
    #allocation9 [shape = 'u8[1048576]{0}', space=vmem, size = 0x100000, scoped, tag = 'input window, operand 4']
    #allocation10 [shape = 's32[2]{0}', space=sflag, size = 0x8, scoped, tag = 'scoped memory for label_classifier_forward.1']
    #allocation11 [shape = 'u8[1024]{0}', space=vmem, size = 0x400, scoped, tag = 'output window, operand 0, single buffered']
    %14 = vsyncpa [#allocation4], 0
    %s15 = scalar_lea.sflag [#allocation4], 1
    %16 = vsyncpa %s15, 0
    %17 = vsyncpa [#allocation7], 0
    %s18 = scalar_lea.sflag [#allocation7], 1
    %19 = vsyncpa %s18, 0
    %20 = vsyncpa [#allocation10], 0
    %s21 = scalar_lea.sflag [#allocation10], 1
    %22 = vsyncpa %s21, 0
    %23 = vsyncpa [#allocation5], 0
    loop: start=0, step=1, limit=4
    $region2: #{label_classifier_forward.1} parent=1 // loop_pre_header
      _
    $region3: #{label_classifier_forward.1} parent=1 // loop_header
      %s25 = sphi 0, %s29
      %p26 = scmp.ge.s32.totalorder %s25, 4
      %s33 = sphi 0, %s33
      %s35 = sphi 0, %s33
      %s36 = sphi 0, %s35
      %s50 = sphi 0, %s36
      %s56 = sphi 0, %s58
      %s59 = sphi 0, %s56
      %s60 = sphi 0, %s59
      %s76 = sphi 0, %s60
      %s82 = sphi 0, %s84
      %s85 = sphi 0, %s82
      %s86 = sphi 0, %s85
      %s102 = sphi 0, %s86
      %s108 = sphi 0, %s110
      %s111 = sphi 0, %s108
      %s112 = sphi 0, %s111
      %s128 = sphi 0, %s112
      %s134 = sphi 0, %s136
      %s137 = sphi 0, %s134
      %s138 = sphi 0, %s137
      %s154 = sphi 0, %s138
      %s160 = sphi 0, %s162
      %s163 = sphi 0, %s160
      %s164 = sphi 0, %s163
      %s180 = sphi 0, %s164
      %s186 = sphi 0, %s188
      %s189 = sphi 0, %s186
      %s190 = sphi 0, %s189
      %s206 = sphi 0, %s190
      %s210 = sphi 0, %s210
      %s212 = sphi 0, %s210
      %s213 = sphi 0, %s212
      %s227 = sphi 0, %s213
      %s231 = sphi 0, %s231
      %s233 = sphi 0, %s231
      %s234 = sphi 0, %s233
      %s248 = sphi 0, %s234
      %s252 = sphi 0, %s252
      %s254 = sphi 0, %s252
      %s255 = sphi 0, %s254
      %s269 = sphi 0, %s255
    $region4: #{label_classifier_forward.1} parent=1 // loop_header_branch
      %28 = sbr.rel (%p26) target = $region8
    $region5: #{label_classifier_forward.1} parent=1 // loop_body
      %s30 = ssub.s32 %s25, 1
      %s31 = ssub.s32 %s25, 2
      %s32 = sadd.s32 %s25, 1
      %s34 = sadd.s32 %s33, 1
      %p37 = scmp.eq.s32.totalorder %s25, 1
      %p38 = scmp.ne.s32.totalorder %s33, %s35
      %p39 = scmp.eq.s32.totalorder %s25, 0
      %p40 = por %p38, %p39
      %p41 = scmp.ne.s32.totalorder %s33, %s35
      %p42 = scmp.eq.s32.totalorder %s30, 1
      %p43 = por %p41, %p42
      %p44 = scmp.ne.s32.totalorder %s35, %s36
      %p45 = scmp.eq.s32.totalorder %s30, 0
      %p46 = por %p44, %p45
      %p47 = scmp.ne.s32.totalorder %s35, %s36
      %p48 = scmp.eq.s32.totalorder %s31, 1
      %p49 = por %p47, %p48
      %p51 = scmp.ne.s32.totalorder %s36, %s50
      %p52 = scmp.eq.s32.totalorder %s31, 0
      %p53 = por %p51, %p52
      %s54 = ssub.s32 %s25, %s32
      %p55 = scmp.eq.s32.totalorder %s54, 0
      %s57 = sadd.s32 %s56, 1
      %s58 = scalar_select %p55, %s56, %s57
      %p61 = pneg %p55
      %p62 = scmp.eq.s32.totalorder %s25, 1
      %p63 = por %p61, %p62
      %p64 = scmp.ne.s32.totalorder %s56, %s59
      %p65 = scmp.eq.s32.totalorder %s25, 0
      %p66 = por %p64, %p65
      %p67 = scmp.ne.s32.totalorder %s56, %s59
      %p68 = scmp.eq.s32.totalorder %s30, 1
      %p69 = por %p67, %p68
      %p70 = scmp.ne.s32.totalorder %s59, %s60
      %p71 = scmp.eq.s32.totalorder %s30, 0
      %p72 = por %p70, %p71
      %p73 = scmp.ne.s32.totalorder %s59, %s60
      %p74 = scmp.eq.s32.totalorder %s31, 1
      %p75 = por %p73, %p74
      %p77 = scmp.ne.s32.totalorder %s60, %s76
      %p78 = scmp.eq.s32.totalorder %s31, 0
      %p79 = por %p77, %p78
      %s80 = ssub.s32 %s25, %s32
      %p81 = scmp.eq.s32.totalorder %s80, 0
      %s83 = sadd.s32 %s82, 1
      %s84 = scalar_select %p81, %s82, %s83
      %p87 = pneg %p81
      %p88 = scmp.eq.s32.totalorder %s25, 1
      %p89 = por %p87, %p88
      %p90 = scmp.ne.s32.totalorder %s82, %s85
      %p91 = scmp.eq.s32.totalorder %s25, 0
      %p92 = por %p90, %p91
      %p93 = scmp.ne.s32.totalorder %s82, %s85
      %p94 = scmp.eq.s32.totalorder %s30, 1
      %p95 = por %p93, %p94
      %p96 = scmp.ne.s32.totalorder %s85, %s86
      %p97 = scmp.eq.s32.totalorder %s30, 0
      %p98 = por %p96, %p97
      %p99 = scmp.ne.s32.totalorder %s85, %s86
      %p100 = scmp.eq.s32.totalorder %s31, 1
      %p101 = por %p99, %p100
      %p103 = scmp.ne.s32.totalorder %s86, %s102
      %p104 = scmp.eq.s32.totalorder %s31, 0
      %p105 = por %p103, %p104
      %s106 = ssub.s32 %s25, %s32
      %p107 = scmp.eq.s32.totalorder %s106, 0
      %s109 = sadd.s32 %s108, 1
      %s110 = scalar_select %p107, %s108, %s109
      %p113 = pneg %p107
      %p114 = scmp.eq.s32.totalorder %s25, 1
      %p115 = por %p113, %p114
      %p116 = scmp.ne.s32.totalorder %s108, %s111
      %p117 = scmp.eq.s32.totalorder %s25, 0
      %p118 = por %p116, %p117
      %p119 = scmp.ne.s32.totalorder %s108, %s111
      %p120 = scmp.eq.s32.totalorder %s30, 1
      %p121 = por %p119, %p120
      %p122 = scmp.ne.s32.totalorder %s111, %s112
      %p123 = scmp.eq.s32.totalorder %s30, 0
      %p124 = por %p122, %p123
      %p125 = scmp.ne.s32.totalorder %s111, %s112
      %p126 = scmp.eq.s32.totalorder %s31, 1
      %p127 = por %p125, %p126
      %p129 = scmp.ne.s32.totalorder %s112, %s128
      %p130 = scmp.eq.s32.totalorder %s31, 0
      %p131 = por %p129, %p130
      %s132 = ssub.s32 %s25, %s32
      %p133 = scmp.eq.s32.totalorder %s132, 0
      %s135 = sadd.s32 %s134, 1
      %s136 = scalar_select %p133, %s134, %s135
      %p139 = pneg %p133
      %p140 = scmp.eq.s32.totalorder %s25, 1
      %p141 = por %p139, %p140
      %p142 = scmp.ne.s32.totalorder %s134, %s137
      %p143 = scmp.eq.s32.totalorder %s25, 0
      %p144 = por %p142, %p143
      %p145 = scmp.ne.s32.totalorder %s134, %s137
      %p146 = scmp.eq.s32.totalorder %s30, 1
      %p147 = por %p145, %p146
      %p148 = scmp.ne.s32.totalorder %s137, %s138
      %p149 = scmp.eq.s32.totalorder %s30, 0
      %p150 = por %p148, %p149
      %p151 = scmp.ne.s32.totalorder %s137, %s138
      %p152 = scmp.eq.s32.totalorder %s31, 1
      %p153 = por %p151, %p152
      %p155 = scmp.ne.s32.totalorder %s138, %s154
      %p156 = scmp.eq.s32.totalorder %s31, 0
      %p157 = por %p155, %p156
      %s158 = ssub.s32 %s25, %s32
      %p159 = scmp.eq.s32.totalorder %s158, 0
      %s161 = sadd.s32 %s160, 1
      %s162 = scalar_select %p159, %s160, %s161
      %p165 = pneg %p159
      %p166 = scmp.eq.s32.totalorder %s25, 1
      %p167 = por %p165, %p166
      %p168 = scmp.ne.s32.totalorder %s160, %s163
      %p169 = scmp.eq.s32.totalorder %s25, 0
      %p170 = por %p168, %p169
      %p171 = scmp.ne.s32.totalorder %s160, %s163
      %p172 = scmp.eq.s32.totalorder %s30, 1
      %p173 = por %p171, %p172
      %p174 = scmp.ne.s32.totalorder %s163, %s164
      %p175 = scmp.eq.s32.totalorder %s30, 0
      %p176 = por %p174, %p175
      %p177 = scmp.ne.s32.totalorder %s163, %s164
      %p178 = scmp.eq.s32.totalorder %s31, 1
      %p179 = por %p177, %p178
      %p181 = scmp.ne.s32.totalorder %s164, %s180
      %p182 = scmp.eq.s32.totalorder %s31, 0
      %p183 = por %p181, %p182
      %s184 = ssub.s32 %s25, %s32
      %p185 = scmp.eq.s32.totalorder %s184, 0
      %s187 = sadd.s32 %s186, 1
      %s188 = scalar_select %p185, %s186, %s187
      %p191 = pneg %p185
      %p192 = scmp.eq.s32.totalorder %s25, 1
      %p193 = por %p191, %p192
      %p194 = scmp.ne.s32.totalorder %s186, %s189
      %p195 = scmp.eq.s32.totalorder %s25, 0
      %p196 = por %p194, %p195
      %p197 = scmp.ne.s32.totalorder %s186, %s189
      %p198 = scmp.eq.s32.totalorder %s30, 1
      %p199 = por %p197, %p198
      %p200 = scmp.ne.s32.totalorder %s189, %s190
      %p201 = scmp.eq.s32.totalorder %s30, 0
      %p202 = por %p200, %p201
      %p203 = scmp.ne.s32.totalorder %s189, %s190
      %p204 = scmp.eq.s32.totalorder %s31, 1
      %p205 = por %p203, %p204
      %p207 = scmp.ne.s32.totalorder %s190, %s206
      %p208 = scmp.eq.s32.totalorder %s31, 0
      %p209 = por %p207, %p208
      %s211 = sadd.s32 %s210, 1
      %p214 = scmp.eq.s32.totalorder %s25, 1
      %p215 = scmp.ne.s32.totalorder %s210, %s212
      %p216 = scmp.eq.s32.totalorder %s25, 0
      %p217 = por %p215, %p216
      %p218 = scmp.ne.s32.totalorder %s210, %s212
      %p219 = scmp.eq.s32.totalorder %s30, 1
      %p220 = por %p218, %p219
      %p221 = scmp.ne.s32.totalorder %s212, %s213
      %p222 = scmp.eq.s32.totalorder %s30, 0
      %p223 = por %p221, %p222
      %p224 = scmp.ne.s32.totalorder %s212, %s213
      %p225 = scmp.eq.s32.totalorder %s31, 1
      %p226 = por %p224, %p225
      %p228 = scmp.ne.s32.totalorder %s213, %s227
      %p229 = scmp.eq.s32.totalorder %s31, 0
      %p230 = por %p228, %p229
      %s232 = sadd.s32 %s231, 1
      %p235 = scmp.eq.s32.totalorder %s25, 1
      %p236 = scmp.ne.s32.totalorder %s231, %s233
      %p237 = scmp.eq.s32.totalorder %s25, 0
      %p238 = por %p236, %p237
      %p239 = scmp.ne.s32.totalorder %s231, %s233
      %p240 = scmp.eq.s32.totalorder %s30, 1
      %p241 = por %p239, %p240
      %p242 = scmp.ne.s32.totalorder %s233, %s234
      %p243 = scmp.eq.s32.totalorder %s30, 0
      %p244 = por %p242, %p243
      %p245 = scmp.ne.s32.totalorder %s233, %s234
      %p246 = scmp.eq.s32.totalorder %s31, 1
      %p247 = por %p245, %p246
      %p249 = scmp.ne.s32.totalorder %s234, %s248
      %p250 = scmp.eq.s32.totalorder %s31, 0
      %p251 = por %p249, %p250
      %s253 = sadd.s32 %s252, 1
      %p256 = scmp.eq.s32.totalorder %s25, 1
      %p257 = scmp.ne.s32.totalorder %s252, %s254
      %p258 = scmp.eq.s32.totalorder %s25, 0
      %p259 = por %p257, %p258
      %p260 = scmp.ne.s32.totalorder %s252, %s254
      %p261 = scmp.eq.s32.totalorder %s30, 1
      %p262 = por %p260, %p261
      %p263 = scmp.ne.s32.totalorder %s254, %s255
      %p264 = scmp.eq.s32.totalorder %s30, 0
      %p265 = por %p263, %p264
      %p266 = scmp.ne.s32.totalorder %s254, %s255
      %p267 = scmp.eq.s32.totalorder %s31, 1
      %p268 = por %p266, %p267
      %p270 = scmp.ne.s32.totalorder %s255, %s269
      %p271 = scmp.eq.s32.totalorder %s31, 0
      %p272 = por %p270, %p271
      %p273 = scmp.le.s32.totalorder 1, %s25
      %p274 = scmp.lt.s32.totalorder %s25, 3
      %p275 = pnand %p273, %p274
      %p276 = pneg %p275
      // Predicated region
      $region9: #{label_classifier_forward.1} parent=5 // pred_check
        _
      $region10: #{label_classifier_forward.1} parent=5 // pred_check_branch
        %278 = sbr.rel (%p275) target = $region12
      $region11: #{label_classifier_forward.1} parent=5 // pred_region
        %s279 = ssub.s32 %s25, 1
        // Predicated region
        $region13: #{label_classifier_forward.1} parent=11 // pred_check
          %p280 = pneg %p46
        $region14: #{label_classifier_forward.1} parent=11 // pred_check_branch
          %282 = sbr.rel (%p280) target = $region16
        $region15: #{label_classifier_forward.1} parent=11 // pred_region
          _
        $region16: #{label_classifier_forward.1} parent=11 // pred_fallthru
          _
        // Predicated region
        $region17: #{label_classifier_forward.1} parent=11 // pred_check
          %p283 = pneg %p223
        $region18: #{label_classifier_forward.1} parent=11 // pred_check_branch
          %285 = sbr.rel (%p283) target = $region20
        $region19: #{label_classifier_forward.1} parent=11 // pred_region
          _
        $region20: #{label_classifier_forward.1} parent=11 // pred_fallthru
          _
        // Predicated region
        $region21: #{label_classifier_forward.1} parent=11 // pred_check
          %p286 = pneg %p244
        $region22: #{label_classifier_forward.1} parent=11 // pred_check_branch
          %288 = sbr.rel (%p286) target = $region24
        $region23: #{label_classifier_forward.1} parent=11 // pred_region
          _
        $region24: #{label_classifier_forward.1} parent=11 // pred_fallthru
          _
      $region12: #{label_classifier_forward.1} parent=5 // pred_fallthru
        _
      %p289 = scmp.lt.s32.totalorder %s25, 2
      // Predicated region
      $region25: #{label_classifier_forward.1} parent=5 // pred_check
        %p290 = pneg %p289
      $region26: #{label_classifier_forward.1} parent=5 // pred_check_branch
        %292 = sbr.rel (%p290) target = $region28
      $region27: #{label_classifier_forward.1} parent=5 // pred_region
        // Predicated region
        $region29: #{label_classifier_forward.1} parent=27 // pred_check
          %p293 = pneg %p66
        $region30: #{label_classifier_forward.1} parent=27 // pred_check_branch
          %295 = sbr.rel (%p293) target = $region32
        $region31: #{label_classifier_forward.1} parent=27 // pred_region
          %s296 = sand.u32 %s56, 1
          %s297 = scalar_lea.sflag [#allocation4], %s296
          %s298 = sand.u32 %s56, 1
          %s299 = smul.addr %s298, 768
          %s300 = scalar_lea.vmem [#allocation3], %s299
          %302 = vsyncadd %s297, 0
          %s303 = smul.addr %s25, 192
          %s304 = smul.addr %s303, 4
          %s305 = scalar_lea.hbm %s1, %s304
          %s306 = sshll.u32 %s305, 4
          %s307 = int_to_ptr.hbm [resolvable:$true] %s306
          %s308 = sshll.u32 %s300, 4
          %s309 = int_to_ptr.vmem [resolvable:$true] %s308
          %314 = dma.hbm_to_vmem [thread:$0]  %s307, 12288, %s309, %s297, 384, 384, 24
        $region32: #{label_classifier_forward.1} parent=27 // pred_fallthru
          _
        // Predicated region
        $region33: #{label_classifier_forward.1} parent=27 // pred_check
          %p315 = pneg %p92
        $region34: #{label_classifier_forward.1} parent=27 // pred_check_branch
          %317 = sbr.rel (%p315) target = $region36
        $region35: #{label_classifier_forward.1} parent=27 // pred_region
          %s318 = sand.u32 %s25, 1
          %s319 = scalar_lea.sflag [#allocation7], %s318
          %s320 = sand.u32 %s82, 1
          %s321 = smul.addr %s320, 256
          %s322 = scalar_lea.vmem [#allocation6], %s321
          %324 = vsyncadd %s319, 0
          %s325 = smul.addr %s25, 64
          %s326 = smul.addr %s325, 4
          %s327 = scalar_lea.hbm %s2, %s326
          %s328 = sshll.u32 %s327, 4
          %s329 = int_to_ptr.hbm [resolvable:$true] %s328
          %s330 = sshll.u32 %s322, 4
          %s331 = int_to_ptr.vmem [resolvable:$true] %s330
          %336 = dma.hbm_to_vmem [thread:$0]  %s329, 4096, %s331, %s319, 128, 128, 8
        $region36: #{label_classifier_forward.1} parent=27 // pred_fallthru
          _
        // Predicated region
        $region37: #{label_classifier_forward.1} parent=27 // pred_check
          %p337 = pneg %p118
        $region38: #{label_classifier_forward.1} parent=27 // pred_check_branch
          %339 = sbr.rel (%p337) target = $region40
        $region39: #{label_classifier_forward.1} parent=27 // pred_region
          %s340 = sand.u32 %s25, 1
          %s341 = scalar_lea.sflag [#allocation7], %s340
          %s342 = sand.u32 %s108, 1
          %s343 = smul.addr %s342, 1024
          %s344 = scalar_lea.vmem [#allocation8], %s343
          %346 = vsyncadd %s341, 0
          %s347 = smul.addr %s25, 256
          %s348 = smul.addr %s347, 4
          %s349 = scalar_lea.hbm %s3, %s348
          %s350 = sshll.u32 %s349, 4
          %s351 = int_to_ptr.hbm [resolvable:$true] %s350
          %s352 = sshll.u32 %s344, 4
          %s353 = int_to_ptr.vmem [resolvable:$true] %s352
          %358 = dma.hbm_to_vmem [thread:$0]  %s351, 16384, %s353, %s341, 512, 512, 32
        $region40: #{label_classifier_forward.1} parent=27 // pred_fallthru
          _
        // Predicated region
        $region41: #{label_classifier_forward.1} parent=27 // pred_check
          %p359 = pneg %p144
        $region42: #{label_classifier_forward.1} parent=27 // pred_check_branch
          %361 = sbr.rel (%p359) target = $region44
        $region43: #{label_classifier_forward.1} parent=27 // pred_region
          %s362 = sand.u32 %s134, 1
          %s363 = scalar_lea.sflag [#allocation10], %s362
          %s364 = sand.u32 %s134, 1
          %s365 = smul.addr %s364, 1024
          %s366 = scalar_lea.vmem [#allocation9], %s365
          %368 = vsyncadd %s363, 0
          %s369 = smul.addr %s25, 256
          %s370 = smul.addr %s369, 4
          %s371 = scalar_lea.hbm %s4, %s370
          %s372 = sshll.u32 %s371, 4
          %s373 = int_to_ptr.hbm [resolvable:$true] %s372
          %s374 = sshll.u32 %s366, 4
          %s375 = int_to_ptr.vmem [resolvable:$true] %s374
          %380 = dma.hbm_to_vmem [thread:$0]  %s373, 16384, %s375, %s363, 128, 128, 8
        $region44: #{label_classifier_forward.1} parent=27 // pred_fallthru
          _
        // Predicated region
        $region45: #{label_classifier_forward.1} parent=27 // pred_check
          %p381 = pneg %p170
        $region46: #{label_classifier_forward.1} parent=27 // pred_check_branch
          %383 = sbr.rel (%p381) target = $region48
        $region47: #{label_classifier_forward.1} parent=27 // pred_region
          %p384 = scmp.lt.s32.totalorder %s25, 1
          %s385 = scalar_select %p384, %s25, 1
          %s386 = smul.addr %s385, 4
          %s387 = smul.addr %s386, 8
          %s388 = scalar_lea.vmem %s5, %s387
        $region48: #{label_classifier_forward.1} parent=27 // pred_fallthru
          _
        // Predicated region
        $region49: #{label_classifier_forward.1} parent=27 // pred_check
          %p389 = pneg %p196
        $region50: #{label_classifier_forward.1} parent=27 // pred_check_branch
          %391 = sbr.rel (%p389) target = $region52
        $region51: #{label_classifier_forward.1} parent=27 // pred_region
          %p392 = scmp.lt.s32.totalorder %s25, 1
          %s393 = scalar_select %p392, %s25, 1
          %s394 = smul.addr %s393, 8
          %s395 = smul.addr %s394, 8
          %s396 = scalar_lea.vmem %s6, %s395
        $region52: #{label_classifier_forward.1} parent=27 // pred_fallthru
          _
      $region28: #{label_classifier_forward.1} parent=5 // pred_fallthru
        _
      %p397 = scmp.le.s32.totalorder 1, %s25
      %p398 = scmp.lt.s32.totalorder %s25, 3
      %p399 = pnand %p397, %p398
      %p400 = pneg %p399
      // Predicated region
      $region53: #{label_classifier_forward.1} parent=5 // pred_check
        _
      $region54: #{label_classifier_forward.1} parent=5 // pred_check_branch
        %402 = sbr.rel (%p399) target = $region56
      $region55: #{label_classifier_forward.1} parent=5 // pred_region
        %s403 = ssub.s32 %s25, 1
        %s404 = sand.u32 %s59, 1
        %s405 = scalar_lea.sflag [#allocation4], %s404
        %s406 = sand.u32 %s59, 1
        %s407 = smul.addr %s406, 768
        %s408 = scalar_lea.vmem [#allocation3], %s407
        // Predicated region
        $region57: #{label_classifier_forward.1} parent=55 // pred_check
          %p409 = pneg %p72
        $region58: #{label_classifier_forward.1} parent=55 // pred_check_branch
          %411 = sbr.rel (%p409) target = $region60
        $region59: #{label_classifier_forward.1} parent=55 // pred_region
          %413 = dma.done %s405, 12288
        $region60: #{label_classifier_forward.1} parent=55 // pred_fallthru
          _
        %s414 = sand.u32 %s30, 1
        %s415 = scalar_lea.sflag [#allocation7], %s414
        %s416 = sand.u32 %s85, 1
        %s417 = smul.addr %s416, 256
        %s418 = scalar_lea.vmem [#allocation6], %s417
        // Predicated region
        $region61: #{label_classifier_forward.1} parent=55 // pred_check
          %p419 = pneg %p98
        $region62: #{label_classifier_forward.1} parent=55 // pred_check_branch
          %421 = sbr.rel (%p419) target = $region64
        $region63: #{label_classifier_forward.1} parent=55 // pred_region
          %423 = dma.done %s415, 4096
        $region64: #{label_classifier_forward.1} parent=55 // pred_fallthru
          _
        %s424 = sand.u32 %s30, 1
        %s425 = scalar_lea.sflag [#allocation7], %s424
        %s426 = sand.u32 %s111, 1
        %s427 = smul.addr %s426, 1024
        %s428 = scalar_lea.vmem [#allocation8], %s427
        // Predicated region
        $region65: #{label_classifier_forward.1} parent=55 // pred_check
          %p429 = pneg %p124
        $region66: #{label_classifier_forward.1} parent=55 // pred_check_branch
          %431 = sbr.rel (%p429) target = $region68
        $region67: #{label_classifier_forward.1} parent=55 // pred_region
          %433 = dma.done %s425, 16384
        $region68: #{label_classifier_forward.1} parent=55 // pred_fallthru
          _
        %s434 = sand.u32 %s137, 1
        %s435 = scalar_lea.sflag [#allocation10], %s434
        %s436 = sand.u32 %s137, 1
        %s437 = smul.addr %s436, 1024
        %s438 = scalar_lea.vmem [#allocation9], %s437
        // Predicated region
        $region69: #{label_classifier_forward.1} parent=55 // pred_check
          %p439 = pneg %p150
        $region70: #{label_classifier_forward.1} parent=55 // pred_check_branch
          %441 = sbr.rel (%p439) target = $region72
        $region71: #{label_classifier_forward.1} parent=55 // pred_region
          %443 = dma.done %s435, 16384
        $region72: #{label_classifier_forward.1} parent=55 // pred_fallthru
          _
        %p444 = pneg %p46
        %p445 = pneg %p43
        %s446 = sand.u32 %s59, 1
        %s447 = scalar_lea.sflag [#allocation4], %s446
        %s448 = sand.u32 %s59, 1
        %s449 = smul.addr %s448, 768
        %s450 = scalar_lea.vmem [#allocation3], %s449
        %p451 = pneg %p72
        %p452 = pneg %p69
        %s453 = sand.u32 %s30, 1
        %s454 = scalar_lea.sflag [#allocation7], %s453
        %s455 = sand.u32 %s85, 1
        %s456 = smul.addr %s455, 256
        %s457 = scalar_lea.vmem [#allocation6], %s456
        %p458 = pneg %p98
        %p459 = pneg %p95
        %s460 = sand.u32 %s30, 1
        %s461 = scalar_lea.sflag [#allocation7], %s460
        %s462 = sand.u32 %s111, 1
        %s463 = smul.addr %s462, 1024
        %s464 = scalar_lea.vmem [#allocation8], %s463
        %p465 = pneg %p124
        %p466 = pneg %p121
        %s467 = sand.u32 %s137, 1
        %s468 = scalar_lea.sflag [#allocation10], %s467
        %s469 = sand.u32 %s137, 1
        %s470 = smul.addr %s469, 1024
        %s471 = scalar_lea.vmem [#allocation9], %s470
        %p472 = pneg %p150
        %p473 = pneg %p147
        %p474 = scmp.lt.s32.totalorder %s30, 1
        %s475 = scalar_select %p474, %s30, 1
        %s476 = smul.addr %s475, 4
        %s477 = smul.addr %s476, 8
        %s478 = scalar_lea.vmem %s5, %s477
        %p479 = pneg %p176
        %p480 = pneg %p173
        %p481 = scmp.lt.s32.totalorder %s30, 1
        %s482 = scalar_select %p481, %s30, 1
        %s483 = smul.addr %s482, 8
        %s484 = smul.addr %s483, 8
        %s485 = scalar_lea.vmem %s6, %s484
        %p486 = pneg %p202
        %p487 = pneg %p199
        %p488 = pneg %p223
        %p489 = pneg %p220
        %p490 = pneg %p244
        %p491 = pneg %p241
        %p492 = pneg %p265
        %p493 = pneg %p262
        %p494 = scmp.lt.s32.totalorder %s30, 1
        %s495 = scalar_select %p494, %s30, 1
        %s496 = smul.addr %s495, 4
        %s497 = smul.addr %s496, 8
        %s498 = scalar_lea.vmem %s5, %s497
        %p499 = scmp.lt.s32.totalorder %s30, 1
        %s500 = scalar_select %p499, %s30, 1
        %s501 = smul.addr %s500, 8
        %s502 = smul.addr %s501, 8
        %s503 = scalar_lea.vmem %s6, %s502
        %p504 = scmp.eq.s32.totalorder %s30, 0
        // Predicated region
        $region73: #{label_classifier_forward.1} parent=55 // pred_check
          %p505 = pneg %p504
        $region74: #{label_classifier_forward.1} parent=55 // pred_check_branch
          %507 = sbr.rel (%p505) target = $region76
        $region75: #{label_classifier_forward.1} parent=55 // pred_region
          %v508 = vld [vmem:[%s0] sm:$0xff]
          %v509 = vld [vmem:[%s0 + $0x8] sm:$0xff]
          %v510 = vld [vmem:[%s0 + $0x10] sm:$0xff]
          %v511 = vld [vmem:[%s0 + $0x18] sm:$0xff]
          %512 = vst [vmem:[#allocation2] sm:$0xff] %v508
          %513 = vst [vmem:[#allocation2 + $0x8] sm:$0xff] %v509
          %514 = vst [vmem:[#allocation2 + $0x10] sm:$0xff] %v510
          %515 = vst [vmem:[#allocation2 + $0x18] sm:$0xff] %v511
        $region76: #{label_classifier_forward.1} parent=55 // pred_fallthru
          _
        %v516 = vld [vmem:[#allocation2] sm:$0xff]
        %v517 = vld [vmem:[#allocation2 + $0x8] sm:$0xff]
        %v518 = vld [vmem:[#allocation2 + $0x10] sm:$0xff]
        %v519 = vld [vmem:[#allocation2 + $0x18] sm:$0xff]
        %v520 = vld [vmem:[%s498] sm:$0xff]
        %v521 = vld [vmem:[%s498 + $0x8] sm:$0xff]
        %v522 = vld [vmem:[%s498 + $0x10] sm:$0xff]
        %v523 = vld [vmem:[%s498 + $0x18] sm:$0xff]
        %v524 = vpack.c.bf16 %v518, %v516
        %v525 = vpack.c.bf16 %v519, %v517
        %v526 = vld [vmem:[%s408] sm:$0xff]
        %v527 = vld [vmem:[%s408 + $0x8] sm:$0xff]
        %v528 = vld [vmem:[%s408 + $0x10] sm:$0xff]
        %v529 = vld [vmem:[%s408 + $0x18] sm:$0xff]
        %v530 = vld [vmem:[%s408 + $0x20] sm:$0xff]
        %v531 = vld [vmem:[%s408 + $0x28] sm:$0xff]
        %v532 = vld [vmem:[%s408 + $0x30] sm:$0xff]
        %v533 = vld [vmem:[%s408 + $0x38] sm:$0xff]
        %v534 = vld [vmem:[%s408 + $0x40] sm:$0xff]
        %v535 = vld [vmem:[%s408 + $0x48] sm:$0xff]
        %v536 = vld [vmem:[%s408 + $0x50] sm:$0xff]
        %v537 = vld [vmem:[%s408 + $0x58] sm:$0xff]
        %v538 = vld [vmem:[%s408 + $0x60] sm:$0xff]
        %v539 = vld [vmem:[%s408 + $0x68] sm:$0xff]
        %v540 = vld [vmem:[%s408 + $0x70] sm:$0xff]
        %v541 = vld [vmem:[%s408 + $0x78] sm:$0xff]
        %v542 = vld [vmem:[%s408 + $0x80] sm:$0xff]
        %v543 = vld [vmem:[%s408 + $0x88] sm:$0xff]
        %v544 = vld [vmem:[%s408 + $0x90] sm:$0xff]
        %v545 = vld [vmem:[%s408 + $0x98] sm:$0xff]
        %v546 = vld [vmem:[%s408 + $0xa0] sm:$0xff]
        %v547 = vld [vmem:[%s408 + $0xa8] sm:$0xff]
        %v548 = vld [vmem:[%s408 + $0xb0] sm:$0xff]
        %v549 = vld [vmem:[%s408 + $0xb8] sm:$0xff]
        %v550 = vld [vmem:[%s408 + $0xc0] sm:$0xff]
        %v551 = vld [vmem:[%s408 + $0xc8] sm:$0xff]
        %v552 = vld [vmem:[%s408 + $0xd0] sm:$0xff]
        %v553 = vld [vmem:[%s408 + $0xd8] sm:$0xff]
        %v554 = vld [vmem:[%s408 + $0xe0] sm:$0xff]
        %v555 = vld [vmem:[%s408 + $0xe8] sm:$0xff]
        %v556 = vld [vmem:[%s408 + $0xf0] sm:$0xff]
        %v557 = vld [vmem:[%s408 + $0xf8] sm:$0xff]
        %v558 = vld [vmem:[%s408 + $0x100] sm:$0xff]
        %v559 = vld [vmem:[%s408 + $0x108] sm:$0xff]
        %v560 = vld [vmem:[%s408 + $0x110] sm:$0xff]
        %v561 = vld [vmem:[%s408 + $0x118] sm:$0xff]
        %v562 = vld [vmem:[%s408 + $0x120] sm:$0xff]
        %v563 = vld [vmem:[%s408 + $0x128] sm:$0xff]
        %v564 = vld [vmem:[%s408 + $0x130] sm:$0xff]
        %v565 = vld [vmem:[%s408 + $0x138] sm:$0xff]
        %v566 = vld [vmem:[%s408 + $0x140] sm:$0xff]
        %v567 = vld [vmem:[%s408 + $0x148] sm:$0xff]
        %v568 = vld [vmem:[%s408 + $0x150] sm:$0xff]
        %v569 = vld [vmem:[%s408 + $0x158] sm:$0xff]
        %v570 = vld [vmem:[%s408 + $0x160] sm:$0xff]
        %v571 = vld [vmem:[%s408 + $0x168] sm:$0xff]
        %v572 = vld [vmem:[%s408 + $0x170] sm:$0xff]
        %v573 = vld [vmem:[%s408 + $0x178] sm:$0xff]
        %v574 = vld [vmem:[%s408 + $0x180] sm:$0xff]
        %v575 = vld [vmem:[%s408 + $0x188] sm:$0xff]
        %v576 = vld [vmem:[%s408 + $0x190] sm:$0xff]
        %v577 = vld [vmem:[%s408 + $0x198] sm:$0xff]
        %v578 = vld [vmem:[%s408 + $0x1a0] sm:$0xff]
        %v579 = vld [vmem:[%s408 + $0x1a8] sm:$0xff]
        %v580 = vld [vmem:[%s408 + $0x1b0] sm:$0xff]
        %v581 = vld [vmem:[%s408 + $0x1b8] sm:$0xff]
        %v582 = vld [vmem:[%s408 + $0x1c0] sm:$0xff]
        %v583 = vld [vmem:[%s408 + $0x1c8] sm:$0xff]
        %v584 = vld [vmem:[%s408 + $0x1d0] sm:$0xff]
        %v585 = vld [vmem:[%s408 + $0x1d8] sm:$0xff]
        %v586 = vld [vmem:[%s408 + $0x1e0] sm:$0xff]
        %v587 = vld [vmem:[%s408 + $0x1e8] sm:$0xff]
        %v588 = vld [vmem:[%s408 + $0x1f0] sm:$0xff]
        %v589 = vld [vmem:[%s408 + $0x1f8] sm:$0xff]
        %v590 = vld [vmem:[%s408 + $0x200] sm:$0xff]
        %v591 = vld [vmem:[%s408 + $0x208] sm:$0xff]
        %v592 = vld [vmem:[%s408 + $0x210] sm:$0xff]
        %v593 = vld [vmem:[%s408 + $0x218] sm:$0xff]
        %v594 = vld [vmem:[%s408 + $0x220] sm:$0xff]
        %v595 = vld [vmem:[%s408 + $0x228] sm:$0xff]
        %v596 = vld [vmem:[%s408 + $0x230] sm:$0xff]
        %v597 = vld [vmem:[%s408 + $0x238] sm:$0xff]
        %v598 = vld [vmem:[%s408 + $0x240] sm:$0xff]
        %v599 = vld [vmem:[%s408 + $0x248] sm:$0xff]
        %v600 = vld [vmem:[%s408 + $0x250] sm:$0xff]
        %v601 = vld [vmem:[%s408 + $0x258] sm:$0xff]
        %v602 = vld [vmem:[%s408 + $0x260] sm:$0xff]
        %v603 = vld [vmem:[%s408 + $0x268] sm:$0xff]
        %v604 = vld [vmem:[%s408 + $0x270] sm:$0xff]
        %v605 = vld [vmem:[%s408 + $0x278] sm:$0xff]
        %v606 = vld [vmem:[%s408 + $0x280] sm:$0xff]
        %v607 = vld [vmem:[%s408 + $0x288] sm:$0xff]
        %v608 = vld [vmem:[%s408 + $0x290] sm:$0xff]
        %v609 = vld [vmem:[%s408 + $0x298] sm:$0xff]
        %v610 = vld [vmem:[%s408 + $0x2a0] sm:$0xff]
        %v611 = vld [vmem:[%s408 + $0x2a8] sm:$0xff]
        %v612 = vld [vmem:[%s408 + $0x2b0] sm:$0xff]
        %v613 = vld [vmem:[%s408 + $0x2b8] sm:$0xff]
        %v614 = vld [vmem:[%s408 + $0x2c0] sm:$0xff]
        %v615 = vld [vmem:[%s408 + $0x2c8] sm:$0xff]
        %v616 = vld [vmem:[%s408 + $0x2d0] sm:$0xff]
        %v617 = vld [vmem:[%s408 + $0x2d8] sm:$0xff]
        %v618 = vld [vmem:[%s408 + $0x2e0] sm:$0xff]
        %v619 = vld [vmem:[%s408 + $0x2e8] sm:$0xff]
        %v620 = vld [vmem:[%s408 + $0x2f0] sm:$0xff]
        %v621 = vld [vmem:[%s408 + $0x2f8] sm:$0xff]
        %v718 = vunpack.c.l.b16 %v526
        %v719 = vunpack.c.h.b16 %v526
        %v720 = vunpack.c.l.b16 %v527
        %v721 = vunpack.c.h.b16 %v527
        %v722 = vunpack.c.l.b16 %v528
        %v723 = vunpack.c.h.b16 %v528
        %v724 = vunpack.c.l.b16 %v529
        %v725 = vunpack.c.h.b16 %v529
        %v726 = vunpack.c.l.b16 %v530
        %v727 = vunpack.c.h.b16 %v530
        %v728 = vunpack.c.l.b16 %v531
        %v729 = vunpack.c.h.b16 %v531
        %v730 = vunpack.c.l.b16 %v532
        %v731 = vunpack.c.h.b16 %v532
        %v732 = vunpack.c.l.b16 %v533
        %v733 = vunpack.c.h.b16 %v533
        %v734 = vunpack.c.l.b16 %v534
        %v735 = vunpack.c.h.b16 %v534
        %v736 = vunpack.c.l.b16 %v535
        %v737 = vunpack.c.h.b16 %v535
        %v738 = vunpack.c.l.b16 %v536
        %v739 = vunpack.c.h.b16 %v536
        %v740 = vunpack.c.l.b16 %v537
        %v741 = vunpack.c.h.b16 %v537
        %v742 = vunpack.c.l.b16 %v538
        %v743 = vunpack.c.h.b16 %v538
        %v744 = vunpack.c.l.b16 %v539
        %v745 = vunpack.c.h.b16 %v539
        %v746 = vunpack.c.l.b16 %v540
        %v747 = vunpack.c.h.b16 %v540
        %v748 = vunpack.c.l.b16 %v541
        %v749 = vunpack.c.h.b16 %v541
        %v750 = vunpack.c.l.b16 %v542
        %v751 = vunpack.c.h.b16 %v542
        %v752 = vunpack.c.l.b16 %v543
        %v753 = vunpack.c.h.b16 %v543
        %v754 = vunpack.c.l.b16 %v544
        %v755 = vunpack.c.h.b16 %v544
        %v756 = vunpack.c.l.b16 %v545
        %v757 = vunpack.c.h.b16 %v545
        %v758 = vunpack.c.l.b16 %v546
        %v759 = vunpack.c.h.b16 %v546
        %v760 = vunpack.c.l.b16 %v547
        %v761 = vunpack.c.h.b16 %v547
        %v762 = vunpack.c.l.b16 %v548
        %v763 = vunpack.c.h.b16 %v548
        %v764 = vunpack.c.l.b16 %v549
        %v765 = vunpack.c.h.b16 %v549
        %v766 = vunpack.c.l.b16 %v550
        %v767 = vunpack.c.h.b16 %v550
        %v768 = vunpack.c.l.b16 %v551
        %v769 = vunpack.c.h.b16 %v551
        %v770 = vunpack.c.l.b16 %v552
        %v771 = vunpack.c.h.b16 %v552
        %v772 = vunpack.c.l.b16 %v553
        %v773 = vunpack.c.h.b16 %v553
        %v774 = vunpack.c.l.b16 %v554
        %v775 = vunpack.c.h.b16 %v554
        %v776 = vunpack.c.l.b16 %v555
        %v777 = vunpack.c.h.b16 %v555
        %v778 = vunpack.c.l.b16 %v556
        %v779 = vunpack.c.h.b16 %v556
        %v780 = vunpack.c.l.b16 %v557
        %v781 = vunpack.c.h.b16 %v557
        %v782 = vunpack.c.l.b16 %v558
        %v783 = vunpack.c.h.b16 %v558
        %v784 = vunpack.c.l.b16 %v559
        %v785 = vunpack.c.h.b16 %v559
        %v786 = vunpack.c.l.b16 %v560
        %v787 = vunpack.c.h.b16 %v560
        %v788 = vunpack.c.l.b16 %v561
        %v789 = vunpack.c.h.b16 %v561
        %v790 = vunpack.c.l.b16 %v562
        %v791 = vunpack.c.h.b16 %v562
        %v792 = vunpack.c.l.b16 %v563
        %v793 = vunpack.c.h.b16 %v563
        %v794 = vunpack.c.l.b16 %v564
        %v795 = vunpack.c.h.b16 %v564
        %v796 = vunpack.c.l.b16 %v565
        %v797 = vunpack.c.h.b16 %v565
        %v798 = vunpack.c.l.b16 %v566
        %v799 = vunpack.c.h.b16 %v566
        %v800 = vunpack.c.l.b16 %v567
        %v801 = vunpack.c.h.b16 %v567
        %v802 = vunpack.c.l.b16 %v568
        %v803 = vunpack.c.h.b16 %v568
        %v804 = vunpack.c.l.b16 %v569
        %v805 = vunpack.c.h.b16 %v569
        %v806 = vunpack.c.l.b16 %v570
        %v807 = vunpack.c.h.b16 %v570
        %v808 = vunpack.c.l.b16 %v571
        %v809 = vunpack.c.h.b16 %v571
        %v810 = vunpack.c.l.b16 %v572
        %v811 = vunpack.c.h.b16 %v572
        %v812 = vunpack.c.l.b16 %v573
        %v813 = vunpack.c.h.b16 %v573
        %v814 = vunpack.c.l.b16 %v574
        %v815 = vunpack.c.h.b16 %v574
        %v816 = vunpack.c.l.b16 %v575
        %v817 = vunpack.c.h.b16 %v575
        %v818 = vunpack.c.l.b16 %v576
        %v819 = vunpack.c.h.b16 %v576
        %v820 = vunpack.c.l.b16 %v577
        %v821 = vunpack.c.h.b16 %v577
        %v822 = vunpack.c.l.b16 %v578
        %v823 = vunpack.c.h.b16 %v578
        %v824 = vunpack.c.l.b16 %v579
        %v825 = vunpack.c.h.b16 %v579
        %v826 = vunpack.c.l.b16 %v580
        %v827 = vunpack.c.h.b16 %v580
        %v828 = vunpack.c.l.b16 %v581
        %v829 = vunpack.c.h.b16 %v581
        %v830 = vunpack.c.l.b16 %v582
        %v831 = vunpack.c.h.b16 %v582
        %v832 = vunpack.c.l.b16 %v583
        %v833 = vunpack.c.h.b16 %v583
        %v834 = vunpack.c.l.b16 %v584
        %v835 = vunpack.c.h.b16 %v584
        %v836 = vunpack.c.l.b16 %v585
        %v837 = vunpack.c.h.b16 %v585
        %v838 = vunpack.c.l.b16 %v586
        %v839 = vunpack.c.h.b16 %v586
        %v840 = vunpack.c.l.b16 %v587
        %v841 = vunpack.c.h.b16 %v587
        %v842 = vunpack.c.l.b16 %v588
        %v843 = vunpack.c.h.b16 %v588
        %v844 = vunpack.c.l.b16 %v589
        %v845 = vunpack.c.h.b16 %v589
        %v846 = vunpack.c.l.b16 %v590
        %v847 = vunpack.c.h.b16 %v590
        %v848 = vunpack.c.l.b16 %v591
        %v849 = vunpack.c.h.b16 %v591
        %v850 = vunpack.c.l.b16 %v592
        %v851 = vunpack.c.h.b16 %v592
        %v852 = vunpack.c.l.b16 %v593
        %v853 = vunpack.c.h.b16 %v593
        %v854 = vunpack.c.l.b16 %v594
        %v855 = vunpack.c.h.b16 %v594
        %v856 = vunpack.c.l.b16 %v595
        %v857 = vunpack.c.h.b16 %v595
        %v858 = vunpack.c.l.b16 %v596
        %v859 = vunpack.c.h.b16 %v596
        %v860 = vunpack.c.l.b16 %v597
        %v861 = vunpack.c.h.b16 %v597
        %v862 = vunpack.c.l.b16 %v598
        %v863 = vunpack.c.h.b16 %v598
        %v864 = vunpack.c.l.b16 %v599
        %v865 = vunpack.c.h.b16 %v599
        %v866 = vunpack.c.l.b16 %v600
        %v867 = vunpack.c.h.b16 %v600
        %v868 = vunpack.c.l.b16 %v601
        %v869 = vunpack.c.h.b16 %v601
        %v870 = vunpack.c.l.b16 %v602
        %v871 = vunpack.c.h.b16 %v602
        %v872 = vunpack.c.l.b16 %v603
        %v873 = vunpack.c.h.b16 %v603
        %v874 = vunpack.c.l.b16 %v604
        %v875 = vunpack.c.h.b16 %v604
        %v876 = vunpack.c.l.b16 %v605
        %v877 = vunpack.c.h.b16 %v605
        %v878 = vunpack.c.l.b16 %v606
        %v879 = vunpack.c.h.b16 %v606
        %v880 = vunpack.c.l.b16 %v607
        %v881 = vunpack.c.h.b16 %v607
        %v882 = vunpack.c.l.b16 %v608
        %v883 = vunpack.c.h.b16 %v608
        %v884 = vunpack.c.l.b16 %v609
        %v885 = vunpack.c.h.b16 %v609
        %v886 = vunpack.c.l.b16 %v610
        %v887 = vunpack.c.h.b16 %v610
        %v888 = vunpack.c.l.b16 %v611
        %v889 = vunpack.c.h.b16 %v611
        %v890 = vunpack.c.l.b16 %v612
        %v891 = vunpack.c.h.b16 %v612
        %v892 = vunpack.c.l.b16 %v613
        %v893 = vunpack.c.h.b16 %v613
        %v894 = vunpack.c.l.b16 %v614
        %v895 = vunpack.c.h.b16 %v614
        %v896 = vunpack.c.l.b16 %v615
        %v897 = vunpack.c.h.b16 %v615
        %v898 = vunpack.c.l.b16 %v616
        %v899 = vunpack.c.h.b16 %v616
        %v900 = vunpack.c.l.b16 %v617
        %v901 = vunpack.c.h.b16 %v617
        %v902 = vunpack.c.l.b16 %v618
        %v903 = vunpack.c.h.b16 %v618
        %v904 = vunpack.c.l.b16 %v619
        %v905 = vunpack.c.h.b16 %v619
        %v906 = vunpack.c.l.b16 %v620
        %v907 = vunpack.c.h.b16 %v620
        %v908 = vunpack.c.l.b16 %v621
        %v909 = vunpack.c.h.b16 %v621
        %v910 = vpack.c.b16 %v724, %v718
        %v911 = vpack.c.b16 %v725, %v719
        %v912 = vpack.c.b16 %v726, %v720
        %v913 = vpack.c.b16 %v727, %v721
        %v914 = vpack.c.b16 %v728, %v722
        %v915 = vpack.c.b16 %v729, %v723
        %v916 = vpack.c.b16 %v736, %v730
        %v917 = vpack.c.b16 %v737, %v731
        %v918 = vpack.c.b16 %v738, %v732
        %v919 = vpack.c.b16 %v739, %v733
        %v920 = vpack.c.b16 %v740, %v734
        %v921 = vpack.c.b16 %v741, %v735
        %v922 = vpack.c.b16 %v748, %v742
        %v923 = vpack.c.b16 %v749, %v743
        %v924 = vpack.c.b16 %v750, %v744
        %v925 = vpack.c.b16 %v751, %v745
        %v926 = vpack.c.b16 %v752, %v746
        %v927 = vpack.c.b16 %v753, %v747
        %v928 = vpack.c.b16 %v760, %v754
        %v929 = vpack.c.b16 %v761, %v755
        %v930 = vpack.c.b16 %v762, %v756
        %v931 = vpack.c.b16 %v763, %v757
        %v932 = vpack.c.b16 %v764, %v758
        %v933 = vpack.c.b16 %v765, %v759
        %v934 = vpack.c.b16 %v772, %v766
        %v935 = vpack.c.b16 %v773, %v767
        %v936 = vpack.c.b16 %v774, %v768
        %v937 = vpack.c.b16 %v775, %v769
        %v938 = vpack.c.b16 %v776, %v770
        %v939 = vpack.c.b16 %v777, %v771
        %v940 = vpack.c.b16 %v784, %v778
        %v941 = vpack.c.b16 %v785, %v779
        %v942 = vpack.c.b16 %v786, %v780
        %v943 = vpack.c.b16 %v787, %v781
        %v944 = vpack.c.b16 %v788, %v782
        %v945 = vpack.c.b16 %v789, %v783
        %v946 = vpack.c.b16 %v796, %v790
        %v947 = vpack.c.b16 %v797, %v791
        %v948 = vpack.c.b16 %v798, %v792
        %v949 = vpack.c.b16 %v799, %v793
        %v950 = vpack.c.b16 %v800, %v794
        %v951 = vpack.c.b16 %v801, %v795
        %v952 = vpack.c.b16 %v808, %v802
        %v953 = vpack.c.b16 %v809, %v803
        %v954 = vpack.c.b16 %v810, %v804
        %v955 = vpack.c.b16 %v811, %v805
        %v956 = vpack.c.b16 %v812, %v806
        %v957 = vpack.c.b16 %v813, %v807
        %v958 = vpack.c.b16 %v820, %v814
        %v959 = vpack.c.b16 %v821, %v815
        %v960 = vpack.c.b16 %v822, %v816
        %v961 = vpack.c.b16 %v823, %v817
        %v962 = vpack.c.b16 %v824, %v818
        %v963 = vpack.c.b16 %v825, %v819
        %v964 = vpack.c.b16 %v832, %v826
        %v965 = vpack.c.b16 %v833, %v827
        %v966 = vpack.c.b16 %v834, %v828
        %v967 = vpack.c.b16 %v835, %v829
        %v968 = vpack.c.b16 %v836, %v830
        %v969 = vpack.c.b16 %v837, %v831
        %v970 = vpack.c.b16 %v844, %v838
        %v971 = vpack.c.b16 %v845, %v839
        %v972 = vpack.c.b16 %v846, %v840
        %v973 = vpack.c.b16 %v847, %v841
        %v974 = vpack.c.b16 %v848, %v842
        %v975 = vpack.c.b16 %v849, %v843
        %v976 = vpack.c.b16 %v856, %v850
        %v977 = vpack.c.b16 %v857, %v851
        %v978 = vpack.c.b16 %v858, %v852
        %v979 = vpack.c.b16 %v859, %v853
        %v980 = vpack.c.b16 %v860, %v854
        %v981 = vpack.c.b16 %v861, %v855
        %v982 = vpack.c.b16 %v868, %v862
        %v983 = vpack.c.b16 %v869, %v863
        %v984 = vpack.c.b16 %v870, %v864
        %v985 = vpack.c.b16 %v871, %v865
        %v986 = vpack.c.b16 %v872, %v866
        %v987 = vpack.c.b16 %v873, %v867
        %v988 = vpack.c.b16 %v880, %v874
        %v989 = vpack.c.b16 %v881, %v875
        %v990 = vpack.c.b16 %v882, %v876
        %v991 = vpack.c.b16 %v883, %v877
        %v992 = vpack.c.b16 %v884, %v878
        %v993 = vpack.c.b16 %v885, %v879
        %v994 = vpack.c.b16 %v892, %v886
        %v995 = vpack.c.b16 %v893, %v887
        %v996 = vpack.c.b16 %v894, %v888
        %v997 = vpack.c.b16 %v895, %v889
        %v998 = vpack.c.b16 %v896, %v890
        %v999 = vpack.c.b16 %v897, %v891
        %v1000 = vpack.c.b16 %v904, %v898
        %v1001 = vpack.c.b16 %v905, %v899
        %v1002 = vpack.c.b16 %v906, %v900
        %v1003 = vpack.c.b16 %v907, %v901
        %v1004 = vpack.c.b16 %v908, %v902
        %v1005 = vpack.c.b16 %v909, %v903
        %1102 = vmatpush.bf16.msra.mxu0 %v952
        %1103 = vmatpush.bf16.msra.mxu0 %v946
        %1104 = vmatpush.bf16.msra.mxu0 %v940
        %1105 = vmatpush.bf16.msra.mxu0 %v934
        %1106 = vmatpush.bf16.msra.mxu0 %v928
        %1107 = vmatpush.bf16.msra.mxu0 %v922
        %1108 = vmatpush.bf16.msra.mxu0 %v916
        %1109 = vmatpush.bf16.msra.mxu0 %v910
        %1110 = vmatmul.bf16.gmra.mxu0 %v524
        %v1111 = vpop.f32.mrf.mxu0
        %v1112 = vadd.f32 0.0, %v1111
        %v1113 = vpop.f32.mrf.mxu0
        %v1114 = vadd.f32 0.0, %v1113
        %1115 = vdwg.mxu0
        %1116 = vmatpush.bf16.msra.mxu0 %v1000
        %1117 = vmatpush.bf16.msra.mxu0 %v994
        %1118 = vmatpush.bf16.msra.mxu0 %v988
        %1119 = vmatpush.bf16.msra.mxu0 %v982
        %1120 = vmatpush.bf16.msra.mxu0 %v976
        %1121 = vmatpush.bf16.msra.mxu0 %v970
        %1122 = vmatpush.bf16.msra.mxu0 %v964
        %1123 = vmatpush.bf16.msra.mxu0 %v958
        %1124 = vmatmul.bf16.gmra.mxu0 %v525
        %v1125 = vpop.f32.mrf.mxu0
        %v1126 = vadd.f32 %v1112, %v1125
        %v1127 = vpop.f32.mrf.mxu0
        %v1128 = vadd.f32 %v1114, %v1127
        %1129 = vdwg.mxu0
        %1130 = vmatpush.bf16.msra.mxu0 %v953
        %1131 = vmatpush.bf16.msra.mxu0 %v947
        %1132 = vmatpush.bf16.msra.mxu0 %v941
        %1133 = vmatpush.bf16.msra.mxu0 %v935
        %1134 = vmatpush.bf16.msra.mxu0 %v929
        %1135 = vmatpush.bf16.msra.mxu0 %v923
        %1136 = vmatpush.bf16.msra.mxu0 %v917
        %1137 = vmatpush.bf16.msra.mxu0 %v911
        %1138 = vmatmul.bf16.gmra.mxu0 %v524
        %v1139 = vpop.f32.mrf.mxu0
        %v1140 = vadd.f32 0.0, %v1139
        %v1141 = vpop.f32.mrf.mxu0
        %v1142 = vadd.f32 0.0, %v1141
        %1143 = vdwg.mxu0
        %1144 = vmatpush.bf16.msra.mxu0 %v1001
        %1145 = vmatpush.bf16.msra.mxu0 %v995
        %1146 = vmatpush.bf16.msra.mxu0 %v989
        %1147 = vmatpush.bf16.msra.mxu0 %v983
        %1148 = vmatpush.bf16.msra.mxu0 %v977
        %1149 = vmatpush.bf16.msra.mxu0 %v971
        %1150 = vmatpush.bf16.msra.mxu0 %v965
        %1151 = vmatpush.bf16.msra.mxu0 %v959
        %1152 = vmatmul.bf16.gmra.mxu0 %v525
        %v1153 = vpop.f32.mrf.mxu0
        %v1154 = vadd.f32 %v1140, %v1153
        %v1155 = vpop.f32.mrf.mxu0
        %v1156 = vadd.f32 %v1142, %v1155
        %1157 = vdwg.mxu0
        %1158 = vmatpush.bf16.msra.mxu0 %v954
        %1159 = vmatpush.bf16.msra.mxu0 %v948
        %1160 = vmatpush.bf16.msra.mxu0 %v942
        %1161 = vmatpush.bf16.msra.mxu0 %v936
        %1162 = vmatpush.bf16.msra.mxu0 %v930
        %1163 = vmatpush.bf16.msra.mxu0 %v924
        %1164 = vmatpush.bf16.msra.mxu0 %v918
        %1165 = vmatpush.bf16.msra.mxu0 %v912
        %1166 = vmatmul.bf16.gmra.mxu0 %v524
        %v1167 = vpop.f32.mrf.mxu0
        %v1168 = vadd.f32 0.0, %v1167
        %v1169 = vpop.f32.mrf.mxu0
        %v1170 = vadd.f32 0.0, %v1169
        %1171 = vdwg.mxu0
        %1172 = vmatpush.bf16.msra.mxu0 %v1002
        %1173 = vmatpush.bf16.msra.mxu0 %v996
        %1174 = vmatpush.bf16.msra.mxu0 %v990
        %1175 = vmatpush.bf16.msra.mxu0 %v984
        %1176 = vmatpush.bf16.msra.mxu0 %v978
        %1177 = vmatpush.bf16.msra.mxu0 %v972
        %1178 = vmatpush.bf16.msra.mxu0 %v966
        %1179 = vmatpush.bf16.msra.mxu0 %v960
        %1180 = vmatmul.bf16.gmra.mxu0 %v525
        %v1181 = vpop.f32.mrf.mxu0
        %v1182 = vadd.f32 %v1168, %v1181
        %v1183 = vpop.f32.mrf.mxu0
        %v1184 = vadd.f32 %v1170, %v1183
        %1185 = vdwg.mxu0
        %1186 = vmatpush.bf16.msra.mxu0 %v955
        %1187 = vmatpush.bf16.msra.mxu0 %v949
        %1188 = vmatpush.bf16.msra.mxu0 %v943
        %1189 = vmatpush.bf16.msra.mxu0 %v937
        %1190 = vmatpush.bf16.msra.mxu0 %v931
        %1191 = vmatpush.bf16.msra.mxu0 %v925
        %1192 = vmatpush.bf16.msra.mxu0 %v919
        %1193 = vmatpush.bf16.msra.mxu0 %v913
        %1194 = vmatmul.bf16.gmra.mxu0 %v524
        %v1195 = vpop.f32.mrf.mxu0
        %v1196 = vadd.f32 0.0, %v1195
        %v1197 = vpop.f32.mrf.mxu0
        %v1198 = vadd.f32 0.0, %v1197
        %1199 = vdwg.mxu0
        %1200 = vmatpush.bf16.msra.mxu0 %v1003
        %1201 = vmatpush.bf16.msra.mxu0 %v997
        %1202 = vmatpush.bf16.msra.mxu0 %v991
        %1203 = vmatpush.bf16.msra.mxu0 %v985
        %1204 = vmatpush.bf16.msra.mxu0 %v979
        %1205 = vmatpush.bf16.msra.mxu0 %v973
        %1206 = vmatpush.bf16.msra.mxu0 %v967
        %1207 = vmatpush.bf16.msra.mxu0 %v961
        %1208 = vmatmul.bf16.gmra.mxu0 %v525
        %v1209 = vpop.f32.mrf.mxu0
        %v1210 = vadd.f32 %v1196, %v1209
        %v1211 = vpop.f32.mrf.mxu0
        %v1212 = vadd.f32 %v1198, %v1211
        %1213 = vdwg.mxu0
        %1214 = vmatpush.bf16.msra.mxu0 %v956
        %1215 = vmatpush.bf16.msra.mxu0 %v950
        %1216 = vmatpush.bf16.msra.mxu0 %v944
        %1217 = vmatpush.bf16.msra.mxu0 %v938
        %1218 = vmatpush.bf16.msra.mxu0 %v932
        %1219 = vmatpush.bf16.msra.mxu0 %v926
        %1220 = vmatpush.bf16.msra.mxu0 %v920
        %1221 = vmatpush.bf16.msra.mxu0 %v914
        %1222 = vmatmul.bf16.gmra.mxu0 %v524
        %v1223 = vpop.f32.mrf.mxu0
        %v1224 = vadd.f32 0.0, %v1223
        %v1225 = vpop.f32.mrf.mxu0
        %v1226 = vadd.f32 0.0, %v1225
        %1227 = vdwg.mxu0
        %1228 = vmatpush.bf16.msra.mxu0 %v1004
        %1229 = vmatpush.bf16.msra.mxu0 %v998
        %1230 = vmatpush.bf16.msra.mxu0 %v992
        %1231 = vmatpush.bf16.msra.mxu0 %v986
        %1232 = vmatpush.bf16.msra.mxu0 %v980
        %1233 = vmatpush.bf16.msra.mxu0 %v974
        %1234 = vmatpush.bf16.msra.mxu0 %v968
        %1235 = vmatpush.bf16.msra.mxu0 %v962
        %1236 = vmatmul.bf16.gmra.mxu0 %v525
        %v1237 = vpop.f32.mrf.mxu0
        %v1238 = vadd.f32 %v1224, %v1237
        %v1239 = vpop.f32.mrf.mxu0
        %v1240 = vadd.f32 %v1226, %v1239
        %1241 = vdwg.mxu0
        %1242 = vmatpush.bf16.msra.mxu0 %v957
        %1243 = vmatpush.bf16.msra.mxu0 %v951
        %1244 = vmatpush.bf16.msra.mxu0 %v945
        %1245 = vmatpush.bf16.msra.mxu0 %v939
        %1246 = vmatpush.bf16.msra.mxu0 %v933
        %1247 = vmatpush.bf16.msra.mxu0 %v927
        %1248 = vmatpush.bf16.msra.mxu0 %v921
        %1249 = vmatpush.bf16.msra.mxu0 %v915
        %1250 = vmatmul.bf16.gmra.mxu0 %v524
        %v1251 = vpop.f32.mrf.mxu0
        %v1252 = vadd.f32 0.0, %v1251
        %v1253 = vpop.f32.mrf.mxu0
        %v1254 = vadd.f32 0.0, %v1253
        %1255 = vdwg.mxu0
        %1256 = vmatpush.bf16.msra.mxu0 %v1005
        %1257 = vmatpush.bf16.msra.mxu0 %v999
        %1258 = vmatpush.bf16.msra.mxu0 %v993
        %1259 = vmatpush.bf16.msra.mxu0 %v987
        %1260 = vmatpush.bf16.msra.mxu0 %v981
        %1261 = vmatpush.bf16.msra.mxu0 %v975
        %1262 = vmatpush.bf16.msra.mxu0 %v969
        %1263 = vmatpush.bf16.msra.mxu0 %v963
        %1264 = vmatmul.bf16.gmra.mxu0 %v525
        %v1265 = vpop.f32.mrf.mxu0
        %v1266 = vadd.f32 %v1252, %v1265
        %v1267 = vpop.f32.mrf.mxu0
        %v1268 = vadd.f32 %v1254, %v1267
        %1269 = vdwg.mxu0
        %v1270 = vperm.slane %v520, 0
        %v1271 = vperm.slane %v521, 0
        %v1272 = vadd.f32 %v1126, %v1270
        %v1273 = vadd.f32 %v1154, %v1271
        %v1274 = vadd.f32 %v1128, %v1270
        %v1275 = vadd.f32 %v1156, %v1271
        %v1276 = vperm.slane %v520, 1
        %v1277 = vperm.slane %v521, 1
        %v1278 = vadd.f32 %v1182, %v1276
        %v1279 = vadd.f32 %v1210, %v1277
        %v1280 = vadd.f32 %v1184, %v1276
        %v1281 = vadd.f32 %v1212, %v1277
        %v1282 = vperm.slane %v520, 2
        %v1283 = vperm.slane %v521, 2
        %v1284 = vadd.f32 %v1238, %v1282
        %v1285 = vadd.f32 %v1266, %v1283
        %v1286 = vadd.f32 %v1240, %v1282
        %v1287 = vadd.f32 %v1268, %v1283
        %vm1288 = vcmask 523264
        %v1290 = vsel %vm1288, %v1272, 0
        %v1293 = vsel %vm1288, %v1278, 0
        %1295 = vmatpush.xpose.msra.mxu0 0.0
        %1296 = vmatpush.xpose.msra.mxu0 0.0
        %1297 = vmatpush.xpose.msra.mxu0 0.0
        %1298 = vmatpush.xpose.msra.mxu0 0.0
        %1299 = vmatpush.xpose.msra.mxu0 0.0
        %1300 = vmatpush.xpose.msra.mxu0 0.0
        %1301 = vmatpush.xpose.msra.mxu0 0.0
        %1302 = vmatpush.xpose.msra.mxu0 0.0
        %1303 = vmatpush.xpose.msra.mxu0 0.0
        %1304 = vmatpush.xpose.msra.mxu0 0.0
        %1305 = vmatpush.xpose.msra.mxu0 0.0
        %1306 = vmatpush.xpose.msra.mxu0 0.0
        %1307 = vmatpush.xpose.msra.mxu0 0.0
        %1308 = vmatpush.xpose.msra.mxu0 0.0
        %1309 = vmatpush.xpose.msra.mxu0 0.0
        %1310 = vmatpush.xpose.msra.mxu0 %v1293
        %1311 = vmatmul.f32.gmra.mxu0 %v1290
        %v1312 = vpop.f32.mrf.mxu0
        %v1313 = vadd.f32 0.0, %v1312
        %1314 = vdwg.mxu0
        %v1316 = vsel %vm1288, %v1274, 0
        %v1319 = vsel %vm1288, %v1280, 0
        %1321 = vmatpush.xpose.msra.mxu0 0.0
        %1322 = vmatpush.xpose.msra.mxu0 0.0
        %1323 = vmatpush.xpose.msra.mxu0 0.0
        %1324 = vmatpush.xpose.msra.mxu0 0.0
        %1325 = vmatpush.xpose.msra.mxu0 0.0
        %1326 = vmatpush.xpose.msra.mxu0 0.0
        %1327 = vmatpush.xpose.msra.mxu0 0.0
        %1328 = vmatpush.xpose.msra.mxu0 0.0
        %1329 = vmatpush.xpose.msra.mxu0 0.0
        %1330 = vmatpush.xpose.msra.mxu0 0.0
        %1331 = vmatpush.xpose.msra.mxu0 0.0
        %1332 = vmatpush.xpose.msra.mxu0 0.0
        %1333 = vmatpush.xpose.msra.mxu0 0.0
        %1334 = vmatpush.xpose.msra.mxu0 0.0
        %1335 = vmatpush.xpose.msra.mxu0 0.0
        %1336 = vmatpush.xpose.msra.mxu0 %v1319
        %1337 = vmatmul.f32.gmra.mxu0 %v1316
        %v1338 = vpop.f32.mrf.mxu0
        %v1339 = vadd.f32 0.0, %v1338
        %1340 = vdwg.mxu0
        %vm1341 = vcmask 64512
        %v1342 = vsel %vm1341, %v1313, -inf
        %1343 = vmax.xlane.f32.xlu0 %v1342
        %v1344 = vpop.xlane.xlu0 %1343
        %v1345 = vsel %vm1341, %v1339, -inf
        %1346 = vmax.xlane.f32.xlu0 %v1345
        %v1347 = vpop.xlane.xlu0 %1346
        %v1348 = vsub.f32 %v1313, %v1344
        %v1349 = vsub.f32 %v1339, %v1347
        %v1350 = vmul.f32 %v1348, 1.442695
        %v1351 = vpow.pop %v1350
        %v1352 = vmul.f32 %v1349, 1.442695
        %v1353 = vpow.pop %v1352
        %v1354 = vsel %vm1341, %v1351, 0.0
        %1355 = vadd.xlane.f32.xlu0 %v1354
        %v1356 = vpop.xlane.xlu0 %1355
        %v1357 = vsel %vm1341, %v1353, 0.0
        %1358 = vadd.xlane.f32.xlu0 %v1357
        %v1359 = vpop.xlane.xlu0 %1358
        %v1360 = vrcp.pop %v1356
        %v1361 = vrcp.pop %v1359
        %v1362 = vmul.f32 %v1351, %v1360
        %v1363 = vmul.f32 %v1353, %v1361
        %v1365 = vsel %vm1341, %v1362, 0
        %1367 = vmatpush.msra.mxu0 0.0
        %1368 = vmatpush.msra.mxu0 0.0
        %1369 = vmatpush.msra.mxu0 0.0
        %1370 = vmatpush.msra.mxu0 0.0
        %1371 = vmatpush.msra.mxu0 0.0
        %1372 = vmatpush.msra.mxu0 0.0
        %1373 = vmatpush.msra.mxu0 0.0
        %1374 = vmatpush.msra.mxu0 0.0
        %1375 = vmatpush.msra.mxu0 0.0
        %1376 = vmatpush.msra.mxu0 0.0
        %1377 = vmatpush.msra.mxu0 0.0
        %1378 = vmatpush.msra.mxu0 0.0
        %1379 = vmatpush.msra.mxu0 0.0
        %1380 = vmatpush.msra.mxu0 0.0
        %1381 = vmatpush.msra.mxu0 0.0
        %1382 = vmatpush.msra.mxu0 %v1284
        %1383 = vmatmul.f32.gmra.mxu0 %v1365
        %v1384 = vpop.f32.mrf.mxu0
        %v1385 = vadd.f32 0.0, %v1384
        %1386 = vdwg.mxu0
        %v1388 = vsel %vm1341, %v1363, 0
        %1390 = vmatpush.msra.mxu0 0.0
        %1391 = vmatpush.msra.mxu0 0.0
        %1392 = vmatpush.msra.mxu0 0.0
        %1393 = vmatpush.msra.mxu0 0.0
        %1394 = vmatpush.msra.mxu0 0.0
        %1395 = vmatpush.msra.mxu0 0.0
        %1396 = vmatpush.msra.mxu0 0.0
        %1397 = vmatpush.msra.mxu0 0.0
        %1398 = vmatpush.msra.mxu0 0.0
        %1399 = vmatpush.msra.mxu0 0.0
        %1400 = vmatpush.msra.mxu0 0.0
        %1401 = vmatpush.msra.mxu0 0.0
        %1402 = vmatpush.msra.mxu0 0.0
        %1403 = vmatpush.msra.mxu0 0.0
        %1404 = vmatpush.msra.mxu0 0.0
        %1405 = vmatpush.msra.mxu0 %v1286
        %1406 = vmatmul.f32.gmra.mxu0 %v1388
        %v1407 = vpop.f32.mrf.mxu0
        %v1408 = vadd.f32 0.0, %v1407
        %1409 = vdwg.mxu0
        %1410 = vrot.lane.b32.xlu0 %v1272, 64
        %v1411 = vpop.permute.xlu0 %1410
        %1412 = vrot.lane.b32.xlu0 %v1278, 64
        %v1413 = vpop.permute.xlu0 %1412
        %v1414 = vsel %vm1288, %v1411, 0
        %v1416 = vsel %vm1288, %v1413, 0
        %1418 = vmatpush.xpose.msra.mxu0 0.0
        %1419 = vmatpush.xpose.msra.mxu0 0.0
        %1420 = vmatpush.xpose.msra.mxu0 0.0
        %1421 = vmatpush.xpose.msra.mxu0 0.0
        %1422 = vmatpush.xpose.msra.mxu0 0.0
        %1423 = vmatpush.xpose.msra.mxu0 0.0
        %1424 = vmatpush.xpose.msra.mxu0 0.0
        %1425 = vmatpush.xpose.msra.mxu0 0.0
        %1426 = vmatpush.xpose.msra.mxu0 0.0
        %1427 = vmatpush.xpose.msra.mxu0 0.0
        %1428 = vmatpush.xpose.msra.mxu0 0.0
        %1429 = vmatpush.xpose.msra.mxu0 0.0
        %1430 = vmatpush.xpose.msra.mxu0 0.0
        %1431 = vmatpush.xpose.msra.mxu0 0.0
        %1432 = vmatpush.xpose.msra.mxu0 0.0
        %1433 = vmatpush.xpose.msra.mxu0 %v1416
        %1434 = vmatmul.f32.gmra.mxu0 %v1414
        %v1435 = vpop.f32.mrf.mxu0
        %v1436 = vadd.f32 0.0, %v1435
        %1437 = vdwg.mxu0
        %1438 = vrot.lane.b32.xlu0 %v1274, 64
        %v1439 = vpop.permute.xlu0 %1438
        %1440 = vrot.lane.b32.xlu0 %v1280, 64
        %v1441 = vpop.permute.xlu0 %1440
        %v1442 = vsel %vm1288, %v1439, 0
        %v1444 = vsel %vm1288, %v1441, 0
        %1446 = vmatpush.xpose.msra.mxu0 0.0
        %1447 = vmatpush.xpose.msra.mxu0 0.0
        %1448 = vmatpush.xpose.msra.mxu0 0.0
        %1449 = vmatpush.xpose.msra.mxu0 0.0
        %1450 = vmatpush.xpose.msra.mxu0 0.0
        %1451 = vmatpush.xpose.msra.mxu0 0.0
        %1452 = vmatpush.xpose.msra.mxu0 0.0
        %1453 = vmatpush.xpose.msra.mxu0 0.0
        %1454 = vmatpush.xpose.msra.mxu0 0.0
        %1455 = vmatpush.xpose.msra.mxu0 0.0
        %1456 = vmatpush.xpose.msra.mxu0 0.0
        %1457 = vmatpush.xpose.msra.mxu0 0.0
        %1458 = vmatpush.xpose.msra.mxu0 0.0
        %1459 = vmatpush.xpose.msra.mxu0 0.0
        %1460 = vmatpush.xpose.msra.mxu0 0.0
        %1461 = vmatpush.xpose.msra.mxu0 %v1444
        %1462 = vmatmul.f32.gmra.mxu0 %v1442
        %v1463 = vpop.f32.mrf.mxu0
        %v1464 = vadd.f32 0.0, %v1463
        %1465 = vdwg.mxu0
        %v1466 = vsel %vm1341, %v1436, -inf
        %1467 = vmax.xlane.f32.xlu0 %v1466
        %v1468 = vpop.xlane.xlu0 %1467
        %v1469 = vsel %vm1341, %v1464, -inf
        %1470 = vmax.xlane.f32.xlu0 %v1469
        %v1471 = vpop.xlane.xlu0 %1470
        %v1472 = vsub.f32 %v1436, %v1468
        %v1473 = vsub.f32 %v1464, %v1471
        %v1474 = vmul.f32 %v1472, 1.442695
        %v1475 = vpow.pop %v1474
        %v1476 = vmul.f32 %v1473, 1.442695
        %v1477 = vpow.pop %v1476
        %v1478 = vsel %vm1341, %v1475, 0.0
        %1479 = vadd.xlane.f32.xlu0 %v1478
        %v1480 = vpop.xlane.xlu0 %1479
        %v1481 = vsel %vm1341, %v1477, 0.0
        %1482 = vadd.xlane.f32.xlu0 %v1481
        %v1483 = vpop.xlane.xlu0 %1482
        %v1484 = vrcp.pop %v1480
        %v1485 = vrcp.pop %v1483
        %v1486 = vmul.f32 %v1475, %v1484
        %v1487 = vmul.f32 %v1477, %v1485
        %1489 = vrot.lane.b32.xlu0 %v1284, 64
        %v1490 = vpop.permute.xlu0 %1489
        %v1493 = vsel %vm1341, %v1486, 0
        %1495 = vmatpush.msra.mxu0 0.0
        %1496 = vmatpush.msra.mxu0 0.0
        %1497 = vmatpush.msra.mxu0 0.0
        %1498 = vmatpush.msra.mxu0 0.0
        %1499 = vmatpush.msra.mxu0 0.0
        %1500 = vmatpush.msra.mxu0 0.0
        %1501 = vmatpush.msra.mxu0 0.0
        %1502 = vmatpush.msra.mxu0 0.0
        %1503 = vmatpush.msra.mxu0 0.0
        %1504 = vmatpush.msra.mxu0 0.0
        %1505 = vmatpush.msra.mxu0 0.0
        %1506 = vmatpush.msra.mxu0 0.0
        %1507 = vmatpush.msra.mxu0 0.0
        %1508 = vmatpush.msra.mxu0 0.0
        %1509 = vmatpush.msra.mxu0 0.0
        %1510 = vmatpush.msra.mxu0 %v1490
        %1511 = vmatmul.f32.gmra.mxu0 %v1493
        %v1512 = vpop.f32.mrf.mxu0
        %v1513 = vadd.f32 0.0, %v1512
        %1514 = vdwg.mxu0
        %1516 = vrot.lane.b32.xlu0 %v1286, 64
        %v1517 = vpop.permute.xlu0 %1516
        %v1520 = vsel %vm1341, %v1487, 0
        %1522 = vmatpush.msra.mxu0 0.0
        %1523 = vmatpush.msra.mxu0 0.0
        %1524 = vmatpush.msra.mxu0 0.0
        %1525 = vmatpush.msra.mxu0 0.0
        %1526 = vmatpush.msra.mxu0 0.0
        %1527 = vmatpush.msra.mxu0 0.0
        %1528 = vmatpush.msra.mxu0 0.0
        %1529 = vmatpush.msra.mxu0 0.0
        %1530 = vmatpush.msra.mxu0 0.0
        %1531 = vmatpush.msra.mxu0 0.0
        %1532 = vmatpush.msra.mxu0 0.0
        %1533 = vmatpush.msra.mxu0 0.0
        %1534 = vmatpush.msra.mxu0 0.0
        %1535 = vmatpush.msra.mxu0 0.0
        %1536 = vmatpush.msra.mxu0 0.0
        %1537 = vmatpush.msra.mxu0 %v1517
        %1538 = vmatmul.f32.gmra.mxu0 %v1520
        %v1539 = vpop.f32.mrf.mxu0
        %v1540 = vadd.f32 0.0, %v1539
        %1541 = vdwg.mxu0
        %v1543 = vsel %vm1288, %v1273, 0
        %v1546 = vsel %vm1288, %v1279, 0
        %1548 = vmatpush.xpose.msra.mxu0 0.0
        %1549 = vmatpush.xpose.msra.mxu0 0.0
        %1550 = vmatpush.xpose.msra.mxu0 0.0
        %1551 = vmatpush.xpose.msra.mxu0 0.0
        %1552 = vmatpush.xpose.msra.mxu0 0.0
        %1553 = vmatpush.xpose.msra.mxu0 0.0
        %1554 = vmatpush.xpose.msra.mxu0 0.0
        %1555 = vmatpush.xpose.msra.mxu0 0.0
        %1556 = vmatpush.xpose.msra.mxu0 0.0
        %1557 = vmatpush.xpose.msra.mxu0 0.0
        %1558 = vmatpush.xpose.msra.mxu0 0.0
        %1559 = vmatpush.xpose.msra.mxu0 0.0
        %1560 = vmatpush.xpose.msra.mxu0 0.0
        %1561 = vmatpush.xpose.msra.mxu0 0.0
        %1562 = vmatpush.xpose.msra.mxu0 0.0
        %1563 = vmatpush.xpose.msra.mxu0 %v1546
        %1564 = vmatmul.f32.gmra.mxu0 %v1543
        %v1565 = vpop.f32.mrf.mxu0
        %v1566 = vadd.f32 0.0, %v1565
        %1567 = vdwg.mxu0
        %v1569 = vsel %vm1288, %v1275, 0
        %v1572 = vsel %vm1288, %v1281, 0
        %1574 = vmatpush.xpose.msra.mxu0 0.0
        %1575 = vmatpush.xpose.msra.mxu0 0.0
        %1576 = vmatpush.xpose.msra.mxu0 0.0
        %1577 = vmatpush.xpose.msra.mxu0 0.0
        %1578 = vmatpush.xpose.msra.mxu0 0.0
        %1579 = vmatpush.xpose.msra.mxu0 0.0
        %1580 = vmatpush.xpose.msra.mxu0 0.0
        %1581 = vmatpush.xpose.msra.mxu0 0.0
        %1582 = vmatpush.xpose.msra.mxu0 0.0
        %1583 = vmatpush.xpose.msra.mxu0 0.0
        %1584 = vmatpush.xpose.msra.mxu0 0.0
        %1585 = vmatpush.xpose.msra.mxu0 0.0
        %1586 = vmatpush.xpose.msra.mxu0 0.0
        %1587 = vmatpush.xpose.msra.mxu0 0.0
        %1588 = vmatpush.xpose.msra.mxu0 0.0
        %1589 = vmatpush.xpose.msra.mxu0 %v1572
        %1590 = vmatmul.f32.gmra.mxu0 %v1569
        %v1591 = vpop.f32.mrf.mxu0
        %v1592 = vadd.f32 0.0, %v1591
        %1593 = vdwg.mxu0
        %v1594 = vsel %vm1341, %v1566, -inf
        %1595 = vmax.xlane.f32.xlu0 %v1594
        %v1596 = vpop.xlane.xlu0 %1595
        %v1597 = vsel %vm1341, %v1592, -inf
        %1598 = vmax.xlane.f32.xlu0 %v1597
        %v1599 = vpop.xlane.xlu0 %1598
        %v1600 = vsub.f32 %v1566, %v1596
        %v1601 = vsub.f32 %v1592, %v1599
        %v1602 = vmul.f32 %v1600, 1.442695
        %v1603 = vpow.pop %v1602
        %v1604 = vmul.f32 %v1601, 1.442695
        %v1605 = vpow.pop %v1604
        %v1606 = vsel %vm1341, %v1603, 0.0
        %1607 = vadd.xlane.f32.xlu0 %v1606
        %v1608 = vpop.xlane.xlu0 %1607
        %v1609 = vsel %vm1341, %v1605, 0.0
        %1610 = vadd.xlane.f32.xlu0 %v1609
        %v1611 = vpop.xlane.xlu0 %1610
        %v1612 = vrcp.pop %v1608
        %v1613 = vrcp.pop %v1611
        %v1614 = vmul.f32 %v1603, %v1612
        %v1615 = vmul.f32 %v1605, %v1613
        %v1617 = vsel %vm1341, %v1614, 0
        %1619 = vmatpush.msra.mxu0 0.0
        %1620 = vmatpush.msra.mxu0 0.0
        %1621 = vmatpush.msra.mxu0 0.0
        %1622 = vmatpush.msra.mxu0 0.0
        %1623 = vmatpush.msra.mxu0 0.0
        %1624 = vmatpush.msra.mxu0 0.0
        %1625 = vmatpush.msra.mxu0 0.0
        %1626 = vmatpush.msra.mxu0 0.0
        %1627 = vmatpush.msra.mxu0 0.0
        %1628 = vmatpush.msra.mxu0 0.0
        %1629 = vmatpush.msra.mxu0 0.0
        %1630 = vmatpush.msra.mxu0 0.0
        %1631 = vmatpush.msra.mxu0 0.0
        %1632 = vmatpush.msra.mxu0 0.0
        %1633 = vmatpush.msra.mxu0 0.0
        %1634 = vmatpush.msra.mxu0 %v1285
        %1635 = vmatmul.f32.gmra.mxu0 %v1617
        %v1636 = vpop.f32.mrf.mxu0
        %v1637 = vadd.f32 0.0, %v1636
        %1638 = vdwg.mxu0
        %v1640 = vsel %vm1341, %v1615, 0
        %1642 = vmatpush.msra.mxu0 0.0
        %1643 = vmatpush.msra.mxu0 0.0
        %1644 = vmatpush.msra.mxu0 0.0
        %1645 = vmatpush.msra.mxu0 0.0
        %1646 = vmatpush.msra.mxu0 0.0
        %1647 = vmatpush.msra.mxu0 0.0
        %1648 = vmatpush.msra.mxu0 0.0
        %1649 = vmatpush.msra.mxu0 0.0
        %1650 = vmatpush.msra.mxu0 0.0
        %1651 = vmatpush.msra.mxu0 0.0
        %1652 = vmatpush.msra.mxu0 0.0
        %1653 = vmatpush.msra.mxu0 0.0
        %1654 = vmatpush.msra.mxu0 0.0
        %1655 = vmatpush.msra.mxu0 0.0
        %1656 = vmatpush.msra.mxu0 0.0
        %1657 = vmatpush.msra.mxu0 %v1287
        %1658 = vmatmul.f32.gmra.mxu0 %v1640
        %v1659 = vpop.f32.mrf.mxu0
        %v1660 = vadd.f32 0.0, %v1659
        %1661 = vdwg.mxu0
        %1662 = vrot.lane.b32.xlu0 %v1273, 64
        %v1663 = vpop.permute.xlu0 %1662
        %1664 = vrot.lane.b32.xlu0 %v1279, 64
        %v1665 = vpop.permute.xlu0 %1664
        %v1666 = vsel %vm1288, %v1663, 0
        %v1668 = vsel %vm1288, %v1665, 0
        %1670 = vmatpush.xpose.msra.mxu0 0.0
        %1671 = vmatpush.xpose.msra.mxu0 0.0
        %1672 = vmatpush.xpose.msra.mxu0 0.0
        %1673 = vmatpush.xpose.msra.mxu0 0.0
        %1674 = vmatpush.xpose.msra.mxu0 0.0
        %1675 = vmatpush.xpose.msra.mxu0 0.0
        %1676 = vmatpush.xpose.msra.mxu0 0.0
        %1677 = vmatpush.xpose.msra.mxu0 0.0
        %1678 = vmatpush.xpose.msra.mxu0 0.0
        %1679 = vmatpush.xpose.msra.mxu0 0.0
        %1680 = vmatpush.xpose.msra.mxu0 0.0
        %1681 = vmatpush.xpose.msra.mxu0 0.0
        %1682 = vmatpush.xpose.msra.mxu0 0.0
        %1683 = vmatpush.xpose.msra.mxu0 0.0
        %1684 = vmatpush.xpose.msra.mxu0 0.0
        %1685 = vmatpush.xpose.msra.mxu0 %v1668
        %1686 = vmatmul.f32.gmra.mxu0 %v1666
        %v1687 = vpop.f32.mrf.mxu0
        %v1688 = vadd.f32 0.0, %v1687
        %1689 = vdwg.mxu0
        %1690 = vrot.lane.b32.xlu0 %v1275, 64
        %v1691 = vpop.permute.xlu0 %1690
        %1692 = vrot.lane.b32.xlu0 %v1281, 64
        %v1693 = vpop.permute.xlu0 %1692
        %v1694 = vsel %vm1288, %v1691, 0
        %v1696 = vsel %vm1288, %v1693, 0
        %1698 = vmatpush.xpose.msra.mxu0 0.0
        %1699 = vmatpush.xpose.msra.mxu0 0.0
        %1700 = vmatpush.xpose.msra.mxu0 0.0
        %1701 = vmatpush.xpose.msra.mxu0 0.0
        %1702 = vmatpush.xpose.msra.mxu0 0.0
        %1703 = vmatpush.xpose.msra.mxu0 0.0
        %1704 = vmatpush.xpose.msra.mxu0 0.0
        %1705 = vmatpush.xpose.msra.mxu0 0.0
        %1706 = vmatpush.xpose.msra.mxu0 0.0
        %1707 = vmatpush.xpose.msra.mxu0 0.0
        %1708 = vmatpush.xpose.msra.mxu0 0.0
        %1709 = vmatpush.xpose.msra.mxu0 0.0
        %1710 = vmatpush.xpose.msra.mxu0 0.0
        %1711 = vmatpush.xpose.msra.mxu0 0.0
        %1712 = vmatpush.xpose.msra.mxu0 0.0
        %1713 = vmatpush.xpose.msra.mxu0 %v1696
        %1714 = vmatmul.f32.gmra.mxu0 %v1694
        %v1715 = vpop.f32.mrf.mxu0
        %v1716 = vadd.f32 0.0, %v1715
        %1717 = vdwg.mxu0
        %v1718 = vsel %vm1341, %v1688, -inf
        %1719 = vmax.xlane.f32.xlu0 %v1718
        %v1720 = vpop.xlane.xlu0 %1719
        %v1721 = vsel %vm1341, %v1716, -inf
        %1722 = vmax.xlane.f32.xlu0 %v1721
        %v1723 = vpop.xlane.xlu0 %1722
        %v1724 = vsub.f32 %v1688, %v1720
        %v1725 = vsub.f32 %v1716, %v1723
        %v1726 = vmul.f32 %v1724, 1.442695
        %v1727 = vpow.pop %v1726
        %v1728 = vmul.f32 %v1725, 1.442695
        %v1729 = vpow.pop %v1728
        %v1730 = vsel %vm1341, %v1727, 0.0
        %1731 = vadd.xlane.f32.xlu0 %v1730
        %v1732 = vpop.xlane.xlu0 %1731
        %v1733 = vsel %vm1341, %v1729, 0.0
        %1734 = vadd.xlane.f32.xlu0 %v1733
        %v1735 = vpop.xlane.xlu0 %1734
        %v1736 = vrcp.pop %v1732
        %v1737 = vrcp.pop %v1735
        %v1738 = vmul.f32 %v1727, %v1736
        %v1739 = vmul.f32 %v1729, %v1737
        %1741 = vrot.lane.b32.xlu0 %v1285, 64
        %v1742 = vpop.permute.xlu0 %1741
        %v1745 = vsel %vm1341, %v1738, 0
        %1747 = vmatpush.msra.mxu0 0.0
        %1748 = vmatpush.msra.mxu0 0.0
        %1749 = vmatpush.msra.mxu0 0.0
        %1750 = vmatpush.msra.mxu0 0.0
        %1751 = vmatpush.msra.mxu0 0.0
        %1752 = vmatpush.msra.mxu0 0.0
        %1753 = vmatpush.msra.mxu0 0.0
        %1754 = vmatpush.msra.mxu0 0.0
        %1755 = vmatpush.msra.mxu0 0.0
        %1756 = vmatpush.msra.mxu0 0.0
        %1757 = vmatpush.msra.mxu0 0.0
        %1758 = vmatpush.msra.mxu0 0.0
        %1759 = vmatpush.msra.mxu0 0.0
        %1760 = vmatpush.msra.mxu0 0.0
        %1761 = vmatpush.msra.mxu0 0.0
        %1762 = vmatpush.msra.mxu0 %v1742
        %1763 = vmatmul.f32.gmra.mxu0 %v1745
        %v1764 = vpop.f32.mrf.mxu0
        %v1765 = vadd.f32 0.0, %v1764
        %1766 = vdwg.mxu0
        %1768 = vrot.lane.b32.xlu0 %v1287, 64
        %v1769 = vpop.permute.xlu0 %1768
        %v1772 = vsel %vm1341, %v1739, 0
        %1774 = vmatpush.msra.mxu0 0.0
        %1775 = vmatpush.msra.mxu0 0.0
        %1776 = vmatpush.msra.mxu0 0.0
        %1777 = vmatpush.msra.mxu0 0.0
        %1778 = vmatpush.msra.mxu0 0.0
        %1779 = vmatpush.msra.mxu0 0.0
        %1780 = vmatpush.msra.mxu0 0.0
        %1781 = vmatpush.msra.mxu0 0.0
        %1782 = vmatpush.msra.mxu0 0.0
        %1783 = vmatpush.msra.mxu0 0.0
        %1784 = vmatpush.msra.mxu0 0.0
        %1785 = vmatpush.msra.mxu0 0.0
        %1786 = vmatpush.msra.mxu0 0.0
        %1787 = vmatpush.msra.mxu0 0.0
        %1788 = vmatpush.msra.mxu0 0.0
        %1789 = vmatpush.msra.mxu0 %v1769
        %1790 = vmatmul.f32.gmra.mxu0 %v1772
        %v1791 = vpop.f32.mrf.mxu0
        %v1792 = vadd.f32 0.0, %v1791
        %1793 = vdwg.mxu0
        %1796 = vrot.lane.b32.xlu0 %v1513, 64
        %v1797 = vpop.permute.xlu0 %1796
        %1798 = vrot.lane.b32.xlu0 %v1540, 64
        %v1799 = vpop.permute.xlu0 %1798
        %1804 = vrot.lane.b32.xlu0 %v1765, 64
        %v1805 = vpop.permute.xlu0 %1804
        %1806 = vrot.lane.b32.xlu0 %v1792, 64
        %v1807 = vpop.permute.xlu0 %1806
        %v1810 = vsel %vm1288, %v1385, %v1797
        %v1811 = vsel %vm1288, %v1408, %v1799
        %v1812 = vsel %vm1288, %v1637, %v1805
        %v1813 = vsel %vm1288, %v1660, %v1807
        %v1814 = vpack.c.bf16 %v1811, %v1810
        %v1815 = vpack.c.bf16 %v1813, %v1812
        %v1816 = vld [vmem:[%s418] sm:$0xff]
        %v1817 = vld [vmem:[%s418 + $0x8] sm:$0xff]
        %v1818 = vld [vmem:[%s418 + $0x10] sm:$0xff]
        %v1819 = vld [vmem:[%s418 + $0x18] sm:$0xff]
        %v1820 = vld [vmem:[%s418 + $0x20] sm:$0xff]
        %v1821 = vld [vmem:[%s418 + $0x28] sm:$0xff]
        %v1822 = vld [vmem:[%s418 + $0x30] sm:$0xff]
        %v1823 = vld [vmem:[%s418 + $0x38] sm:$0xff]
        %v1824 = vld [vmem:[%s418 + $0x40] sm:$0xff]
        %v1825 = vld [vmem:[%s418 + $0x48] sm:$0xff]
        %v1826 = vld [vmem:[%s418 + $0x50] sm:$0xff]
        %v1827 = vld [vmem:[%s418 + $0x58] sm:$0xff]
        %v1828 = vld [vmem:[%s418 + $0x60] sm:$0xff]
        %v1829 = vld [vmem:[%s418 + $0x68] sm:$0xff]
        %v1830 = vld [vmem:[%s418 + $0x70] sm:$0xff]
        %v1831 = vld [vmem:[%s418 + $0x78] sm:$0xff]
        %v1832 = vld [vmem:[%s418 + $0x80] sm:$0xff]
        %v1833 = vld [vmem:[%s418 + $0x88] sm:$0xff]
        %v1834 = vld [vmem:[%s418 + $0x90] sm:$0xff]
        %v1835 = vld [vmem:[%s418 + $0x98] sm:$0xff]
        %v1836 = vld [vmem:[%s418 + $0xa0] sm:$0xff]
        %v1837 = vld [vmem:[%s418 + $0xa8] sm:$0xff]
        %v1838 = vld [vmem:[%s418 + $0xb0] sm:$0xff]
        %v1839 = vld [vmem:[%s418 + $0xb8] sm:$0xff]
        %v1840 = vld [vmem:[%s418 + $0xc0] sm:$0xff]
        %v1841 = vld [vmem:[%s418 + $0xc8] sm:$0xff]
        %v1842 = vld [vmem:[%s418 + $0xd0] sm:$0xff]
        %v1843 = vld [vmem:[%s418 + $0xd8] sm:$0xff]
        %v1844 = vld [vmem:[%s418 + $0xe0] sm:$0xff]
        %v1845 = vld [vmem:[%s418 + $0xe8] sm:$0xff]
        %v1846 = vld [vmem:[%s418 + $0xf0] sm:$0xff]
        %v1847 = vld [vmem:[%s418 + $0xf8] sm:$0xff]
        %v1848 = vperm.slane %v520, 3
        %v1849 = vperm.slane %v521, 3
        %v1882 = vunpack.c.l.b16 %v1816
        %v1883 = vunpack.c.h.b16 %v1816
        %v1884 = vunpack.c.l.b16 %v1817
        %v1885 = vunpack.c.h.b16 %v1817
        %v1886 = vunpack.c.l.b16 %v1818
        %v1887 = vunpack.c.h.b16 %v1818
        %v1888 = vunpack.c.l.b16 %v1819
        %v1889 = vunpack.c.h.b16 %v1819
        %v1890 = vunpack.c.l.b16 %v1820
        %v1891 = vunpack.c.h.b16 %v1820
        %v1892 = vunpack.c.l.b16 %v1821
        %v1893 = vunpack.c.h.b16 %v1821
        %v1894 = vunpack.c.l.b16 %v1822
        %v1895 = vunpack.c.h.b16 %v1822
        %v1896 = vunpack.c.l.b16 %v1823
        %v1897 = vunpack.c.h.b16 %v1823
        %v1898 = vunpack.c.l.b16 %v1824
        %v1899 = vunpack.c.h.b16 %v1824
        %v1900 = vunpack.c.l.b16 %v1825
        %v1901 = vunpack.c.h.b16 %v1825
        %v1902 = vunpack.c.l.b16 %v1826
        %v1903 = vunpack.c.h.b16 %v1826
        %v1904 = vunpack.c.l.b16 %v1827
        %v1905 = vunpack.c.h.b16 %v1827
        %v1906 = vunpack.c.l.b16 %v1828
        %v1907 = vunpack.c.h.b16 %v1828
        %v1908 = vunpack.c.l.b16 %v1829
        %v1909 = vunpack.c.h.b16 %v1829
        %v1910 = vunpack.c.l.b16 %v1830
        %v1911 = vunpack.c.h.b16 %v1830
        %v1912 = vunpack.c.l.b16 %v1831
        %v1913 = vunpack.c.h.b16 %v1831
        %v1914 = vunpack.c.l.b16 %v1832
        %v1915 = vunpack.c.h.b16 %v1832
        %v1916 = vunpack.c.l.b16 %v1833
        %v1917 = vunpack.c.h.b16 %v1833
        %v1918 = vunpack.c.l.b16 %v1834
        %v1919 = vunpack.c.h.b16 %v1834
        %v1920 = vunpack.c.l.b16 %v1835
        %v1921 = vunpack.c.h.b16 %v1835
        %v1922 = vunpack.c.l.b16 %v1836
        %v1923 = vunpack.c.h.b16 %v1836
        %v1924 = vunpack.c.l.b16 %v1837
        %v1925 = vunpack.c.h.b16 %v1837
        %v1926 = vunpack.c.l.b16 %v1838
        %v1927 = vunpack.c.h.b16 %v1838
        %v1928 = vunpack.c.l.b16 %v1839
        %v1929 = vunpack.c.h.b16 %v1839
        %v1930 = vunpack.c.l.b16 %v1840
        %v1931 = vunpack.c.h.b16 %v1840
        %v1932 = vunpack.c.l.b16 %v1841
        %v1933 = vunpack.c.h.b16 %v1841
        %v1934 = vunpack.c.l.b16 %v1842
        %v1935 = vunpack.c.h.b16 %v1842
        %v1936 = vunpack.c.l.b16 %v1843
        %v1937 = vunpack.c.h.b16 %v1843
        %v1938 = vunpack.c.l.b16 %v1844
        %v1939 = vunpack.c.h.b16 %v1844
        %v1940 = vunpack.c.l.b16 %v1845
        %v1941 = vunpack.c.h.b16 %v1845
        %v1942 = vunpack.c.l.b16 %v1846
        %v1943 = vunpack.c.h.b16 %v1846
        %v1944 = vunpack.c.l.b16 %v1847
        %v1945 = vunpack.c.h.b16 %v1847
        %v1946 = vpack.c.b16 %v1884, %v1882
        %v1947 = vpack.c.b16 %v1885, %v1883
        %v1948 = vpack.c.b16 %v1888, %v1886
        %v1949 = vpack.c.b16 %v1889, %v1887
        %v1950 = vpack.c.b16 %v1892, %v1890
        %v1951 = vpack.c.b16 %v1893, %v1891
        %v1952 = vpack.c.b16 %v1896, %v1894
        %v1953 = vpack.c.b16 %v1897, %v1895
        %v1954 = vpack.c.b16 %v1900, %v1898
        %v1955 = vpack.c.b16 %v1901, %v1899
        %v1956 = vpack.c.b16 %v1904, %v1902
        %v1957 = vpack.c.b16 %v1905, %v1903
        %v1958 = vpack.c.b16 %v1908, %v1906
        %v1959 = vpack.c.b16 %v1909, %v1907
        %v1960 = vpack.c.b16 %v1912, %v1910
        %v1961 = vpack.c.b16 %v1913, %v1911
        %v1962 = vpack.c.b16 %v1916, %v1914
        %v1963 = vpack.c.b16 %v1917, %v1915
        %v1964 = vpack.c.b16 %v1920, %v1918
        %v1965 = vpack.c.b16 %v1921, %v1919
        %v1966 = vpack.c.b16 %v1924, %v1922
        %v1967 = vpack.c.b16 %v1925, %v1923
        %v1968 = vpack.c.b16 %v1928, %v1926
        %v1969 = vpack.c.b16 %v1929, %v1927
        %v1970 = vpack.c.b16 %v1932, %v1930
        %v1971 = vpack.c.b16 %v1933, %v1931
        %v1972 = vpack.c.b16 %v1936, %v1934
        %v1973 = vpack.c.b16 %v1937, %v1935
        %v1974 = vpack.c.b16 %v1940, %v1938
        %v1975 = vpack.c.b16 %v1941, %v1939
        %v1976 = vpack.c.b16 %v1944, %v1942
        %v1977 = vpack.c.b16 %v1945, %v1943
        %2010 = vmatpush.bf16.msra.mxu0 %v1960
        %2011 = vmatpush.bf16.msra.mxu0 %v1958
        %2012 = vmatpush.bf16.msra.mxu0 %v1956
        %2013 = vmatpush.bf16.msra.mxu0 %v1954
        %2014 = vmatpush.bf16.msra.mxu0 %v1952
        %2015 = vmatpush.bf16.msra.mxu0 %v1950
        %2016 = vmatpush.bf16.msra.mxu0 %v1948
        %2017 = vmatpush.bf16.msra.mxu0 %v1946
        %2018 = vmatmul.bf16.gmra.mxu0 %v1814
        %v2019 = vpop.f32.mrf.mxu0
        %v2020 = vadd.f32 %v1848, %v2019
        %v2021 = vpop.f32.mrf.mxu0
        %v2022 = vadd.f32 %v1848, %v2021
        %2023 = vdwg.mxu0
        %2024 = vmatpush.bf16.msra.mxu0 %v1976
        %2025 = vmatpush.bf16.msra.mxu0 %v1974
        %2026 = vmatpush.bf16.msra.mxu0 %v1972
        %2027 = vmatpush.bf16.msra.mxu0 %v1970
        %2028 = vmatpush.bf16.msra.mxu0 %v1968
        %2029 = vmatpush.bf16.msra.mxu0 %v1966
        %2030 = vmatpush.bf16.msra.mxu0 %v1964
        %2031 = vmatpush.bf16.msra.mxu0 %v1962
        %2032 = vmatmul.bf16.gmra.mxu0 %v1815
        %v2033 = vpop.f32.mrf.mxu0
        %v2034 = vadd.f32 %v2020, %v2033
        %v2035 = vpop.f32.mrf.mxu0
        %v2036 = vadd.f32 %v2022, %v2035
        %2037 = vdwg.mxu0
        %2038 = vmatpush.bf16.msra.mxu0 %v1961
        %2039 = vmatpush.bf16.msra.mxu0 %v1959
        %2040 = vmatpush.bf16.msra.mxu0 %v1957
        %2041 = vmatpush.bf16.msra.mxu0 %v1955
        %2042 = vmatpush.bf16.msra.mxu0 %v1953
        %2043 = vmatpush.bf16.msra.mxu0 %v1951
        %2044 = vmatpush.bf16.msra.mxu0 %v1949
        %2045 = vmatpush.bf16.msra.mxu0 %v1947
        %2046 = vmatmul.bf16.gmra.mxu0 %v1814
        %v2047 = vpop.f32.mrf.mxu0
        %v2048 = vadd.f32 %v1849, %v2047
        %v2049 = vpop.f32.mrf.mxu0
        %v2050 = vadd.f32 %v1849, %v2049
        %2051 = vdwg.mxu0
        %2052 = vmatpush.bf16.msra.mxu0 %v1977
        %2053 = vmatpush.bf16.msra.mxu0 %v1975
        %2054 = vmatpush.bf16.msra.mxu0 %v1973
        %2055 = vmatpush.bf16.msra.mxu0 %v1971
        %2056 = vmatpush.bf16.msra.mxu0 %v1969
        %2057 = vmatpush.bf16.msra.mxu0 %v1967
        %2058 = vmatpush.bf16.msra.mxu0 %v1965
        %2059 = vmatpush.bf16.msra.mxu0 %v1963
        %2060 = vmatmul.bf16.gmra.mxu0 %v1815
        %v2061 = vpop.f32.mrf.mxu0
        %v2062 = vadd.f32 %v2048, %v2061
        %v2063 = vpop.f32.mrf.mxu0
        %v2064 = vadd.f32 %v2050, %v2063
        %2065 = vdwg.mxu0
        %v2066 = vadd.f32 %v516, %v2034
        %v2067 = vadd.f32 %v517, %v2062
        %v2068 = vadd.f32 %v518, %v2036
        %v2069 = vadd.f32 %v519, %v2064
        %v2070 = vadd.f32 %v2066, %v2067
        %2071 = vadd.xlane.f32.xlu0 %v2070
        %v2072 = vpop.xlane.xlu0 %2071
        %v2073 = vadd.f32 %v2068, %v2069
        %2074 = vadd.xlane.f32.xlu0 %v2073
        %v2075 = vpop.xlane.xlu0 %2074
        %v2076 = vrcp.pop 256.0
        %v2077 = vmul.f32 256.0, %v2076
        %v2078 = vsub.f32 1.0, %v2077
        %v2079 = vmul.f32 %v2076, %v2078
        %v2080 = vadd.f32 %v2076, %v2079
        %vm2081 = vweird.f32 %v2076
        %v2082 = vsel %vm2081, %v2076, %v2080
        %v2083 = vmul.f32 %v2072, %v2082
        %v2084 = vmul.f32 %v2075, %v2082
        %v2085 = vsub.f32 %v2066, %v2083
        %v2086 = vsub.f32 %v2067, %v2083
        %v2087 = vsub.f32 %v2068, %v2084
        %v2088 = vsub.f32 %v2069, %v2084
        %v2089 = vmul.f32 %v2085, %v2085
        %v2090 = vmul.f32 %v2086, %v2086
        %v2091 = vmul.f32 %v2087, %v2087
        %v2092 = vmul.f32 %v2088, %v2088
        %v2093 = vadd.f32 %v2089, %v2090
        %2094 = vadd.xlane.f32.xlu0 %v2093
        %v2095 = vpop.xlane.xlu0 %2094
        %v2096 = vadd.f32 %v2091, %v2092
        %2097 = vadd.xlane.f32.xlu0 %v2096
        %v2098 = vpop.xlane.xlu0 %2097
        %v2099 = vmul.f32 %v2095, %v2082
        %v2100 = vmul.f32 %v2098, %v2082
        %v2101 = vadd.f32 %v2099, 1e-12
        %v2102 = vadd.f32 %v2100, 1e-12
        %v2103 = vrsqrt.pop %v2101
        %v2104 = vmul.f32 %v2103, %v2101
        %v2105 = vmul.f32 %v2104, %v2103
        %v2106 = vmul.f32 0.5, %v2105
        %v2107 = vsub.f32 1.5, %v2106
        %v2108 = vmul.f32 %v2103, %v2107
        %vm2109 = vweird.f32 %v2101
        %vm2110 = vweird.f32 %v2103
        %vm2111 = vmor %vm2109, %vm2110
        %v2112 = vsel %vm2111, %v2103, %v2108
        %v2113 = vrsqrt.pop %v2102
        %v2114 = vmul.f32 %v2113, %v2102
        %v2115 = vmul.f32 %v2114, %v2113
        %v2116 = vmul.f32 0.5, %v2115
        %v2117 = vsub.f32 1.5, %v2116
        %v2118 = vmul.f32 %v2113, %v2117
        %vm2119 = vweird.f32 %v2102
        %vm2120 = vweird.f32 %v2113
        %vm2121 = vmor %vm2119, %vm2120
        %v2122 = vsel %vm2121, %v2113, %v2118
        %v2123 = vmul.f32 %v2085, %v2112
        %v2124 = vmul.f32 %v2086, %v2112
        %v2125 = vmul.f32 %v2087, %v2122
        %v2126 = vmul.f32 %v2088, %v2122
        %v2127 = vperm.slane %v520, 4
        %v2128 = vperm.slane %v521, 4
        %v2129 = vmul.f32 %v2123, %v2127
        %v2130 = vmul.f32 %v2124, %v2128
        %v2131 = vmul.f32 %v2125, %v2127
        %v2132 = vmul.f32 %v2126, %v2128
        %v2133 = vperm.slane %v520, 5
        %v2134 = vperm.slane %v521, 5
        %v2135 = vadd.f32 %v2129, %v2133
        %v2136 = vadd.f32 %v2130, %v2134
        %v2137 = vadd.f32 %v2131, %v2133
        %v2138 = vadd.f32 %v2132, %v2134
        %v2139 = vpack.c.bf16 %v2137, %v2135
        %v2140 = vpack.c.bf16 %v2138, %v2136
        %v2141 = vld [vmem:[%s428] sm:$0xff]
        %v2142 = vld [vmem:[%s428 + $0x8] sm:$0xff]
        %v2143 = vld [vmem:[%s428 + $0x10] sm:$0xff]
        %v2144 = vld [vmem:[%s428 + $0x18] sm:$0xff]
        %v2145 = vld [vmem:[%s428 + $0x20] sm:$0xff]
        %v2146 = vld [vmem:[%s428 + $0x28] sm:$0xff]
        %v2147 = vld [vmem:[%s428 + $0x30] sm:$0xff]
        %v2148 = vld [vmem:[%s428 + $0x38] sm:$0xff]
        %v2149 = vld [vmem:[%s428 + $0x40] sm:$0xff]
        %v2150 = vld [vmem:[%s428 + $0x48] sm:$0xff]
        %v2151 = vld [vmem:[%s428 + $0x50] sm:$0xff]
        %v2152 = vld [vmem:[%s428 + $0x58] sm:$0xff]
        %v2153 = vld [vmem:[%s428 + $0x60] sm:$0xff]
        %v2154 = vld [vmem:[%s428 + $0x68] sm:$0xff]
        %v2155 = vld [vmem:[%s428 + $0x70] sm:$0xff]
        %v2156 = vld [vmem:[%s428 + $0x78] sm:$0xff]
        %v2157 = vld [vmem:[%s428 + $0x80] sm:$0xff]
        %v2158 = vld [vmem:[%s428 + $0x88] sm:$0xff]
        %v2159 = vld [vmem:[%s428 + $0x90] sm:$0xff]
        %v2160 = vld [vmem:[%s428 + $0x98] sm:$0xff]
        %v2161 = vld [vmem:[%s428 + $0xa0] sm:$0xff]
        %v2162 = vld [vmem:[%s428 + $0xa8] sm:$0xff]
        %v2163 = vld [vmem:[%s428 + $0xb0] sm:$0xff]
        %v2164 = vld [vmem:[%s428 + $0xb8] sm:$0xff]
        %v2165 = vld [vmem:[%s428 + $0xc0] sm:$0xff]
        %v2166 = vld [vmem:[%s428 + $0xc8] sm:$0xff]
        %v2167 = vld [vmem:[%s428 + $0xd0] sm:$0xff]
        %v2168 = vld [vmem:[%s428 + $0xd8] sm:$0xff]
        %v2169 = vld [vmem:[%s428 + $0xe0] sm:$0xff]
        %v2170 = vld [vmem:[%s428 + $0xe8] sm:$0xff]
        %v2171 = vld [vmem:[%s428 + $0xf0] sm:$0xff]
        %v2172 = vld [vmem:[%s428 + $0xf8] sm:$0xff]
        %v2173 = vld [vmem:[%s428 + $0x100] sm:$0xff]
        %v2174 = vld [vmem:[%s428 + $0x108] sm:$0xff]
        %v2175 = vld [vmem:[%s428 + $0x110] sm:$0xff]
        %v2176 = vld [vmem:[%s428 + $0x118] sm:$0xff]
        %v2177 = vld [vmem:[%s428 + $0x120] sm:$0xff]
        %v2178 = vld [vmem:[%s428 + $0x128] sm:$0xff]
        %v2179 = vld [vmem:[%s428 + $0x130] sm:$0xff]
        %v2180 = vld [vmem:[%s428 + $0x138] sm:$0xff]
        %v2181 = vld [vmem:[%s428 + $0x140] sm:$0xff]
        %v2182 = vld [vmem:[%s428 + $0x148] sm:$0xff]
        %v2183 = vld [vmem:[%s428 + $0x150] sm:$0xff]
        %v2184 = vld [vmem:[%s428 + $0x158] sm:$0xff]
        %v2185 = vld [vmem:[%s428 + $0x160] sm:$0xff]
        %v2186 = vld [vmem:[%s428 + $0x168] sm:$0xff]
        %v2187 = vld [vmem:[%s428 + $0x170] sm:$0xff]
        %v2188 = vld [vmem:[%s428 + $0x178] sm:$0xff]
        %v2189 = vld [vmem:[%s428 + $0x180] sm:$0xff]
        %v2190 = vld [vmem:[%s428 + $0x188] sm:$0xff]
        %v2191 = vld [vmem:[%s428 + $0x190] sm:$0xff]
        %v2192 = vld [vmem:[%s428 + $0x198] sm:$0xff]
        %v2193 = vld [vmem:[%s428 + $0x1a0] sm:$0xff]
        %v2194 = vld [vmem:[%s428 + $0x1a8] sm:$0xff]
        %v2195 = vld [vmem:[%s428 + $0x1b0] sm:$0xff]
        %v2196 = vld [vmem:[%s428 + $0x1b8] sm:$0xff]
        %v2197 = vld [vmem:[%s428 + $0x1c0] sm:$0xff]
        %v2198 = vld [vmem:[%s428 + $0x1c8] sm:$0xff]
        %v2199 = vld [vmem:[%s428 + $0x1d0] sm:$0xff]
        %v2200 = vld [vmem:[%s428 + $0x1d8] sm:$0xff]
        %v2201 = vld [vmem:[%s428 + $0x1e0] sm:$0xff]
        %v2202 = vld [vmem:[%s428 + $0x1e8] sm:$0xff]
        %v2203 = vld [vmem:[%s428 + $0x1f0] sm:$0xff]
        %v2204 = vld [vmem:[%s428 + $0x1f8] sm:$0xff]
        %v2205 = vld [vmem:[%s428 + $0x200] sm:$0xff]
        %v2206 = vld [vmem:[%s428 + $0x208] sm:$0xff]
        %v2207 = vld [vmem:[%s428 + $0x210] sm:$0xff]
        %v2208 = vld [vmem:[%s428 + $0x218] sm:$0xff]
        %v2209 = vld [vmem:[%s428 + $0x220] sm:$0xff]
        %v2210 = vld [vmem:[%s428 + $0x228] sm:$0xff]
        %v2211 = vld [vmem:[%s428 + $0x230] sm:$0xff]
        %v2212 = vld [vmem:[%s428 + $0x238] sm:$0xff]
        %v2213 = vld [vmem:[%s428 + $0x240] sm:$0xff]
        %v2214 = vld [vmem:[%s428 + $0x248] sm:$0xff]
        %v2215 = vld [vmem:[%s428 + $0x250] sm:$0xff]
        %v2216 = vld [vmem:[%s428 + $0x258] sm:$0xff]
        %v2217 = vld [vmem:[%s428 + $0x260] sm:$0xff]
        %v2218 = vld [vmem:[%s428 + $0x268] sm:$0xff]
        %v2219 = vld [vmem:[%s428 + $0x270] sm:$0xff]
        %v2220 = vld [vmem:[%s428 + $0x278] sm:$0xff]
        %v2221 = vld [vmem:[%s428 + $0x280] sm:$0xff]
        %v2222 = vld [vmem:[%s428 + $0x288] sm:$0xff]
        %v2223 = vld [vmem:[%s428 + $0x290] sm:$0xff]
        %v2224 = vld [vmem:[%s428 + $0x298] sm:$0xff]
        %v2225 = vld [vmem:[%s428 + $0x2a0] sm:$0xff]
        %v2226 = vld [vmem:[%s428 + $0x2a8] sm:$0xff]
        %v2227 = vld [vmem:[%s428 + $0x2b0] sm:$0xff]
        %v2228 = vld [vmem:[%s428 + $0x2b8] sm:$0xff]
        %v2229 = vld [vmem:[%s428 + $0x2c0] sm:$0xff]
        %v2230 = vld [vmem:[%s428 + $0x2c8] sm:$0xff]
        %v2231 = vld [vmem:[%s428 + $0x2d0] sm:$0xff]
        %v2232 = vld [vmem:[%s428 + $0x2d8] sm:$0xff]
        %v2233 = vld [vmem:[%s428 + $0x2e0] sm:$0xff]
        %v2234 = vld [vmem:[%s428 + $0x2e8] sm:$0xff]
        %v2235 = vld [vmem:[%s428 + $0x2f0] sm:$0xff]
        %v2236 = vld [vmem:[%s428 + $0x2f8] sm:$0xff]
        %v2237 = vld [vmem:[%s428 + $0x300] sm:$0xff]
        %v2238 = vld [vmem:[%s428 + $0x308] sm:$0xff]
        %v2239 = vld [vmem:[%s428 + $0x310] sm:$0xff]
        %v2240 = vld [vmem:[%s428 + $0x318] sm:$0xff]
        %v2241 = vld [vmem:[%s428 + $0x320] sm:$0xff]
        %v2242 = vld [vmem:[%s428 + $0x328] sm:$0xff]
        %v2243 = vld [vmem:[%s428 + $0x330] sm:$0xff]
        %v2244 = vld [vmem:[%s428 + $0x338] sm:$0xff]
        %v2245 = vld [vmem:[%s428 + $0x340] sm:$0xff]
        %v2246 = vld [vmem:[%s428 + $0x348] sm:$0xff]
        %v2247 = vld [vmem:[%s428 + $0x350] sm:$0xff]
        %v2248 = vld [vmem:[%s428 + $0x358] sm:$0xff]
        %v2249 = vld [vmem:[%s428 + $0x360] sm:$0xff]
        %v2250 = vld [vmem:[%s428 + $0x368] sm:$0xff]
        %v2251 = vld [vmem:[%s428 + $0x370] sm:$0xff]
        %v2252 = vld [vmem:[%s428 + $0x378] sm:$0xff]
        %v2253 = vld [vmem:[%s428 + $0x380] sm:$0xff]
        %v2254 = vld [vmem:[%s428 + $0x388] sm:$0xff]
        %v2255 = vld [vmem:[%s428 + $0x390] sm:$0xff]
        %v2256 = vld [vmem:[%s428 + $0x398] sm:$0xff]
        %v2257 = vld [vmem:[%s428 + $0x3a0] sm:$0xff]
        %v2258 = vld [vmem:[%s428 + $0x3a8] sm:$0xff]
        %v2259 = vld [vmem:[%s428 + $0x3b0] sm:$0xff]
        %v2260 = vld [vmem:[%s428 + $0x3b8] sm:$0xff]
        %v2261 = vld [vmem:[%s428 + $0x3c0] sm:$0xff]
        %v2262 = vld [vmem:[%s428 + $0x3c8] sm:$0xff]
        %v2263 = vld [vmem:[%s428 + $0x3d0] sm:$0xff]
        %v2264 = vld [vmem:[%s428 + $0x3d8] sm:$0xff]
        %v2265 = vld [vmem:[%s428 + $0x3e0] sm:$0xff]
        %v2266 = vld [vmem:[%s428 + $0x3e8] sm:$0xff]
        %v2267 = vld [vmem:[%s428 + $0x3f0] sm:$0xff]
        %v2268 = vld [vmem:[%s428 + $0x3f8] sm:$0xff]
        %v2269 = vld [vmem:[%s503] ss:$8 sm:$0xf]
        %v2270 = vld [vmem:[%s503] ss:$8 sm:$0xf0]
        %v2271 = vor.u32 %v2269, %v2270
        %v2273 = vperm.slane %v2271, 0
        %v2274 = vperm.slane %v2271, 1
        %v2275 = vperm.slane %v2271, 2
        %v2276 = vperm.slane %v2271, 3
        %v2277 = vperm.slane %v2271, 4
        %v2278 = vperm.slane %v2271, 5
        %v2279 = vperm.slane %v2271, 6
        %v2280 = vperm.slane %v2271, 7
        %v2417 = vunpack.c.l.b16 %v2141
        %v2418 = vunpack.c.h.b16 %v2141
        %v2419 = vunpack.c.l.b16 %v2142
        %v2420 = vunpack.c.h.b16 %v2142
        %v2421 = vunpack.c.l.b16 %v2143
        %v2422 = vunpack.c.h.b16 %v2143
        %v2423 = vunpack.c.l.b16 %v2144
        %v2424 = vunpack.c.h.b16 %v2144
        %v2425 = vunpack.c.l.b16 %v2145
        %v2426 = vunpack.c.h.b16 %v2145
        %v2427 = vunpack.c.l.b16 %v2146
        %v2428 = vunpack.c.h.b16 %v2146
        %v2429 = vunpack.c.l.b16 %v2147
        %v2430 = vunpack.c.h.b16 %v2147
        %v2431 = vunpack.c.l.b16 %v2148
        %v2432 = vunpack.c.h.b16 %v2148
        %v2433 = vunpack.c.l.b16 %v2149
        %v2434 = vunpack.c.h.b16 %v2149
        %v2435 = vunpack.c.l.b16 %v2150
        %v2436 = vunpack.c.h.b16 %v2150
        %v2437 = vunpack.c.l.b16 %v2151
        %v2438 = vunpack.c.h.b16 %v2151
        %v2439 = vunpack.c.l.b16 %v2152
        %v2440 = vunpack.c.h.b16 %v2152
        %v2441 = vunpack.c.l.b16 %v2153
        %v2442 = vunpack.c.h.b16 %v2153
        %v2443 = vunpack.c.l.b16 %v2154
        %v2444 = vunpack.c.h.b16 %v2154
        %v2445 = vunpack.c.l.b16 %v2155
        %v2446 = vunpack.c.h.b16 %v2155
        %v2447 = vunpack.c.l.b16 %v2156
        %v2448 = vunpack.c.h.b16 %v2156
        %v2449 = vunpack.c.l.b16 %v2157
        %v2450 = vunpack.c.h.b16 %v2157
        %v2451 = vunpack.c.l.b16 %v2158
        %v2452 = vunpack.c.h.b16 %v2158
        %v2453 = vunpack.c.l.b16 %v2159
        %v2454 = vunpack.c.h.b16 %v2159
        %v2455 = vunpack.c.l.b16 %v2160
        %v2456 = vunpack.c.h.b16 %v2160
        %v2457 = vunpack.c.l.b16 %v2161
        %v2458 = vunpack.c.h.b16 %v2161
        %v2459 = vunpack.c.l.b16 %v2162
        %v2460 = vunpack.c.h.b16 %v2162
        %v2461 = vunpack.c.l.b16 %v2163
        %v2462 = vunpack.c.h.b16 %v2163
        %v2463 = vunpack.c.l.b16 %v2164
        %v2464 = vunpack.c.h.b16 %v2164
        %v2465 = vunpack.c.l.b16 %v2165
        %v2466 = vunpack.c.h.b16 %v2165
        %v2467 = vunpack.c.l.b16 %v2166
        %v2468 = vunpack.c.h.b16 %v2166
        %v2469 = vunpack.c.l.b16 %v2167
        %v2470 = vunpack.c.h.b16 %v2167
        %v2471 = vunpack.c.l.b16 %v2168
        %v2472 = vunpack.c.h.b16 %v2168
        %v2473 = vunpack.c.l.b16 %v2169
        %v2474 = vunpack.c.h.b16 %v2169
        %v2475 = vunpack.c.l.b16 %v2170
        %v2476 = vunpack.c.h.b16 %v2170
        %v2477 = vunpack.c.l.b16 %v2171
        %v2478 = vunpack.c.h.b16 %v2171
        %v2479 = vunpack.c.l.b16 %v2172
        %v2480 = vunpack.c.h.b16 %v2172
        %v2481 = vunpack.c.l.b16 %v2173
        %v2482 = vunpack.c.h.b16 %v2173
        %v2483 = vunpack.c.l.b16 %v2174
        %v2484 = vunpack.c.h.b16 %v2174
        %v2485 = vunpack.c.l.b16 %v2175
        %v2486 = vunpack.c.h.b16 %v2175
        %v2487 = vunpack.c.l.b16 %v2176
        %v2488 = vunpack.c.h.b16 %v2176
        %v2489 = vunpack.c.l.b16 %v2177
        %v2490 = vunpack.c.h.b16 %v2177
        %v2491 = vunpack.c.l.b16 %v2178
        %v2492 = vunpack.c.h.b16 %v2178
        %v2493 = vunpack.c.l.b16 %v2179
        %v2494 = vunpack.c.h.b16 %v2179
        %v2495 = vunpack.c.l.b16 %v2180
        %v2496 = vunpack.c.h.b16 %v2180
        %v2497 = vunpack.c.l.b16 %v2181
        %v2498 = vunpack.c.h.b16 %v2181
        %v2499 = vunpack.c.l.b16 %v2182
        %v2500 = vunpack.c.h.b16 %v2182
        %v2501 = vunpack.c.l.b16 %v2183
        %v2502 = vunpack.c.h.b16 %v2183
        %v2503 = vunpack.c.l.b16 %v2184
        %v2504 = vunpack.c.h.b16 %v2184
        %v2505 = vunpack.c.l.b16 %v2185
        %v2506 = vunpack.c.h.b16 %v2185
        %v2507 = vunpack.c.l.b16 %v2186
        %v2508 = vunpack.c.h.b16 %v2186
        %v2509 = vunpack.c.l.b16 %v2187
        %v2510 = vunpack.c.h.b16 %v2187
        %v2511 = vunpack.c.l.b16 %v2188
        %v2512 = vunpack.c.h.b16 %v2188
        %v2513 = vunpack.c.l.b16 %v2189
        %v2514 = vunpack.c.h.b16 %v2189
        %v2515 = vunpack.c.l.b16 %v2190
        %v2516 = vunpack.c.h.b16 %v2190
        %v2517 = vunpack.c.l.b16 %v2191
        %v2518 = vunpack.c.h.b16 %v2191
        %v2519 = vunpack.c.l.b16 %v2192
        %v2520 = vunpack.c.h.b16 %v2192
        %v2521 = vunpack.c.l.b16 %v2193
        %v2522 = vunpack.c.h.b16 %v2193
        %v2523 = vunpack.c.l.b16 %v2194
        %v2524 = vunpack.c.h.b16 %v2194
        %v2525 = vunpack.c.l.b16 %v2195
        %v2526 = vunpack.c.h.b16 %v2195
        %v2527 = vunpack.c.l.b16 %v2196
        %v2528 = vunpack.c.h.b16 %v2196
        %v2529 = vunpack.c.l.b16 %v2197
        %v2530 = vunpack.c.h.b16 %v2197
        %v2531 = vunpack.c.l.b16 %v2198
        %v2532 = vunpack.c.h.b16 %v2198
        %v2533 = vunpack.c.l.b16 %v2199
        %v2534 = vunpack.c.h.b16 %v2199
        %v2535 = vunpack.c.l.b16 %v2200
        %v2536 = vunpack.c.h.b16 %v2200
        %v2537 = vunpack.c.l.b16 %v2201
        %v2538 = vunpack.c.h.b16 %v2201
        %v2539 = vunpack.c.l.b16 %v2202
        %v2540 = vunpack.c.h.b16 %v2202
        %v2541 = vunpack.c.l.b16 %v2203
        %v2542 = vunpack.c.h.b16 %v2203
        %v2543 = vunpack.c.l.b16 %v2204
        %v2544 = vunpack.c.h.b16 %v2204
        %v2545 = vunpack.c.l.b16 %v2205
        %v2546 = vunpack.c.h.b16 %v2205
        %v2547 = vunpack.c.l.b16 %v2206
        %v2548 = vunpack.c.h.b16 %v2206
        %v2549 = vunpack.c.l.b16 %v2207
        %v2550 = vunpack.c.h.b16 %v2207
        %v2551 = vunpack.c.l.b16 %v2208
        %v2552 = vunpack.c.h.b16 %v2208
        %v2553 = vunpack.c.l.b16 %v2209
        %v2554 = vunpack.c.h.b16 %v2209
        %v2555 = vunpack.c.l.b16 %v2210
        %v2556 = vunpack.c.h.b16 %v2210
        %v2557 = vunpack.c.l.b16 %v2211
        %v2558 = vunpack.c.h.b16 %v2211
        %v2559 = vunpack.c.l.b16 %v2212
        %v2560 = vunpack.c.h.b16 %v2212
        %v2561 = vunpack.c.l.b16 %v2213
        %v2562 = vunpack.c.h.b16 %v2213
        %v2563 = vunpack.c.l.b16 %v2214
        %v2564 = vunpack.c.h.b16 %v2214
        %v2565 = vunpack.c.l.b16 %v2215
        %v2566 = vunpack.c.h.b16 %v2215
        %v2567 = vunpack.c.l.b16 %v2216
        %v2568 = vunpack.c.h.b16 %v2216
        %v2569 = vunpack.c.l.b16 %v2217
        %v2570 = vunpack.c.h.b16 %v2217
        %v2571 = vunpack.c.l.b16 %v2218
        %v2572 = vunpack.c.h.b16 %v2218
        %v2573 = vunpack.c.l.b16 %v2219
        %v2574 = vunpack.c.h.b16 %v2219
        %v2575 = vunpack.c.l.b16 %v2220
        %v2576 = vunpack.c.h.b16 %v2220
        %v2577 = vunpack.c.l.b16 %v2221
        %v2578 = vunpack.c.h.b16 %v2221
        %v2579 = vunpack.c.l.b16 %v2222
        %v2580 = vunpack.c.h.b16 %v2222
        %v2581 = vunpack.c.l.b16 %v2223
        %v2582 = vunpack.c.h.b16 %v2223
        %v2583 = vunpack.c.l.b16 %v2224
        %v2584 = vunpack.c.h.b16 %v2224
        %v2585 = vunpack.c.l.b16 %v2225
        %v2586 = vunpack.c.h.b16 %v2225
        %v2587 = vunpack.c.l.b16 %v2226
        %v2588 = vunpack.c.h.b16 %v2226
        %v2589 = vunpack.c.l.b16 %v2227
        %v2590 = vunpack.c.h.b16 %v2227
        %v2591 = vunpack.c.l.b16 %v2228
        %v2592 = vunpack.c.h.b16 %v2228
        %v2593 = vunpack.c.l.b16 %v2229
        %v2594 = vunpack.c.h.b16 %v2229
        %v2595 = vunpack.c.l.b16 %v2230
        %v2596 = vunpack.c.h.b16 %v2230
        %v2597 = vunpack.c.l.b16 %v2231
        %v2598 = vunpack.c.h.b16 %v2231
        %v2599 = vunpack.c.l.b16 %v2232
        %v2600 = vunpack.c.h.b16 %v2232
        %v2601 = vunpack.c.l.b16 %v2233
        %v2602 = vunpack.c.h.b16 %v2233
        %v2603 = vunpack.c.l.b16 %v2234
        %v2604 = vunpack.c.h.b16 %v2234
        %v2605 = vunpack.c.l.b16 %v2235
        %v2606 = vunpack.c.h.b16 %v2235
        %v2607 = vunpack.c.l.b16 %v2236
        %v2608 = vunpack.c.h.b16 %v2236
        %v2609 = vunpack.c.l.b16 %v2237
        %v2610 = vunpack.c.h.b16 %v2237
        %v2611 = vunpack.c.l.b16 %v2238
        %v2612 = vunpack.c.h.b16 %v2238
        %v2613 = vunpack.c.l.b16 %v2239
        %v2614 = vunpack.c.h.b16 %v2239
        %v2615 = vunpack.c.l.b16 %v2240
        %v2616 = vunpack.c.h.b16 %v2240
        %v2617 = vunpack.c.l.b16 %v2241
        %v2618 = vunpack.c.h.b16 %v2241
        %v2619 = vunpack.c.l.b16 %v2242
        %v2620 = vunpack.c.h.b16 %v2242
        %v2621 = vunpack.c.l.b16 %v2243
        %v2622 = vunpack.c.h.b16 %v2243
        %v2623 = vunpack.c.l.b16 %v2244
        %v2624 = vunpack.c.h.b16 %v2244
        %v2625 = vunpack.c.l.b16 %v2245
        %v2626 = vunpack.c.h.b16 %v2245
        %v2627 = vunpack.c.l.b16 %v2246
        %v2628 = vunpack.c.h.b16 %v2246
        %v2629 = vunpack.c.l.b16 %v2247
        %v2630 = vunpack.c.h.b16 %v2247
        %v2631 = vunpack.c.l.b16 %v2248
        %v2632 = vunpack.c.h.b16 %v2248
        %v2633 = vunpack.c.l.b16 %v2249
        %v2634 = vunpack.c.h.b16 %v2249
        %v2635 = vunpack.c.l.b16 %v2250
        %v2636 = vunpack.c.h.b16 %v2250
        %v2637 = vunpack.c.l.b16 %v2251
        %v2638 = vunpack.c.h.b16 %v2251
        %v2639 = vunpack.c.l.b16 %v2252
        %v2640 = vunpack.c.h.b16 %v2252
        %v2641 = vunpack.c.l.b16 %v2253
        %v2642 = vunpack.c.h.b16 %v2253
        %v2643 = vunpack.c.l.b16 %v2254
        %v2644 = vunpack.c.h.b16 %v2254
        %v2645 = vunpack.c.l.b16 %v2255
        %v2646 = vunpack.c.h.b16 %v2255
        %v2647 = vunpack.c.l.b16 %v2256
        %v2648 = vunpack.c.h.b16 %v2256
        %v2649 = vunpack.c.l.b16 %v2257
        %v2650 = vunpack.c.h.b16 %v2257
        %v2651 = vunpack.c.l.b16 %v2258
        %v2652 = vunpack.c.h.b16 %v2258
        %v2653 = vunpack.c.l.b16 %v2259
        %v2654 = vunpack.c.h.b16 %v2259
        %v2655 = vunpack.c.l.b16 %v2260
        %v2656 = vunpack.c.h.b16 %v2260
        %v2657 = vunpack.c.l.b16 %v2261
        %v2658 = vunpack.c.h.b16 %v2261
        %v2659 = vunpack.c.l.b16 %v2262
        %v2660 = vunpack.c.h.b16 %v2262
        %v2661 = vunpack.c.l.b16 %v2263
        %v2662 = vunpack.c.h.b16 %v2263
        %v2663 = vunpack.c.l.b16 %v2264
        %v2664 = vunpack.c.h.b16 %v2264
        %v2665 = vunpack.c.l.b16 %v2265
        %v2666 = vunpack.c.h.b16 %v2265
        %v2667 = vunpack.c.l.b16 %v2266
        %v2668 = vunpack.c.h.b16 %v2266
        %v2669 = vunpack.c.l.b16 %v2267
        %v2670 = vunpack.c.h.b16 %v2267
        %v2671 = vunpack.c.l.b16 %v2268
        %v2672 = vunpack.c.h.b16 %v2268
        %v2673 = vpack.c.b16 %v2425, %v2417
        %v2674 = vpack.c.b16 %v2426, %v2418
        %v2675 = vpack.c.b16 %v2427, %v2419
        %v2676 = vpack.c.b16 %v2428, %v2420
        %v2677 = vpack.c.b16 %v2429, %v2421
        %v2678 = vpack.c.b16 %v2430, %v2422
        %v2679 = vpack.c.b16 %v2431, %v2423
        %v2680 = vpack.c.b16 %v2432, %v2424
        %v2681 = vpack.c.b16 %v2441, %v2433
        %v2682 = vpack.c.b16 %v2442, %v2434
        %v2683 = vpack.c.b16 %v2443, %v2435
        %v2684 = vpack.c.b16 %v2444, %v2436
        %v2685 = vpack.c.b16 %v2445, %v2437
        %v2686 = vpack.c.b16 %v2446, %v2438
        %v2687 = vpack.c.b16 %v2447, %v2439
        %v2688 = vpack.c.b16 %v2448, %v2440
        %v2689 = vpack.c.b16 %v2457, %v2449
        %v2690 = vpack.c.b16 %v2458, %v2450
        %v2691 = vpack.c.b16 %v2459, %v2451
        %v2692 = vpack.c.b16 %v2460, %v2452
        %v2693 = vpack.c.b16 %v2461, %v2453
        %v2694 = vpack.c.b16 %v2462, %v2454
        %v2695 = vpack.c.b16 %v2463, %v2455
        %v2696 = vpack.c.b16 %v2464, %v2456
        %v2697 = vpack.c.b16 %v2473, %v2465
        %v2698 = vpack.c.b16 %v2474, %v2466
        %v2699 = vpack.c.b16 %v2475, %v2467
        %v2700 = vpack.c.b16 %v2476, %v2468
        %v2701 = vpack.c.b16 %v2477, %v2469
        %v2702 = vpack.c.b16 %v2478, %v2470
        %v2703 = vpack.c.b16 %v2479, %v2471
        %v2704 = vpack.c.b16 %v2480, %v2472
        %v2705 = vpack.c.b16 %v2489, %v2481
        %v2706 = vpack.c.b16 %v2490, %v2482
        %v2707 = vpack.c.b16 %v2491, %v2483
        %v2708 = vpack.c.b16 %v2492, %v2484
        %v2709 = vpack.c.b16 %v2493, %v2485
        %v2710 = vpack.c.b16 %v2494, %v2486
        %v2711 = vpack.c.b16 %v2495, %v2487
        %v2712 = vpack.c.b16 %v2496, %v2488
        %v2713 = vpack.c.b16 %v2505, %v2497
        %v2714 = vpack.c.b16 %v2506, %v2498
        %v2715 = vpack.c.b16 %v2507, %v2499
        %v2716 = vpack.c.b16 %v2508, %v2500
        %v2717 = vpack.c.b16 %v2509, %v2501
        %v2718 = vpack.c.b16 %v2510, %v2502
        %v2719 = vpack.c.b16 %v2511, %v2503
        %v2720 = vpack.c.b16 %v2512, %v2504
        %v2721 = vpack.c.b16 %v2521, %v2513
        %v2722 = vpack.c.b16 %v2522, %v2514
        %v2723 = vpack.c.b16 %v2523, %v2515
        %v2724 = vpack.c.b16 %v2524, %v2516
        %v2725 = vpack.c.b16 %v2525, %v2517
        %v2726 = vpack.c.b16 %v2526, %v2518
        %v2727 = vpack.c.b16 %v2527, %v2519
        %v2728 = vpack.c.b16 %v2528, %v2520
        %v2729 = vpack.c.b16 %v2537, %v2529
        %v2730 = vpack.c.b16 %v2538, %v2530
        %v2731 = vpack.c.b16 %v2539, %v2531
        %v2732 = vpack.c.b16 %v2540, %v2532
        %v2733 = vpack.c.b16 %v2541, %v2533
        %v2734 = vpack.c.b16 %v2542, %v2534
        %v2735 = vpack.c.b16 %v2543, %v2535
        %v2736 = vpack.c.b16 %v2544, %v2536
        %v2737 = vpack.c.b16 %v2553, %v2545
        %v2738 = vpack.c.b16 %v2554, %v2546
        %v2739 = vpack.c.b16 %v2555, %v2547
        %v2740 = vpack.c.b16 %v2556, %v2548
        %v2741 = vpack.c.b16 %v2557, %v2549
        %v2742 = vpack.c.b16 %v2558, %v2550
        %v2743 = vpack.c.b16 %v2559, %v2551
        %v2744 = vpack.c.b16 %v2560, %v2552
        %v2745 = vpack.c.b16 %v2569, %v2561
        %v2746 = vpack.c.b16 %v2570, %v2562
        %v2747 = vpack.c.b16 %v2571, %v2563
        %v2748 = vpack.c.b16 %v2572, %v2564
        %v2749 = vpack.c.b16 %v2573, %v2565
        %v2750 = vpack.c.b16 %v2574, %v2566
        %v2751 = vpack.c.b16 %v2575, %v2567
        %v2752 = vpack.c.b16 %v2576, %v2568
        %v2753 = vpack.c.b16 %v2585, %v2577
        %v2754 = vpack.c.b16 %v2586, %v2578
        %v2755 = vpack.c.b16 %v2587, %v2579
        %v2756 = vpack.c.b16 %v2588, %v2580
        %v2757 = vpack.c.b16 %v2589, %v2581
        %v2758 = vpack.c.b16 %v2590, %v2582
        %v2759 = vpack.c.b16 %v2591, %v2583
        %v2760 = vpack.c.b16 %v2592, %v2584
        %v2761 = vpack.c.b16 %v2601, %v2593
        %v2762 = vpack.c.b16 %v2602, %v2594
        %v2763 = vpack.c.b16 %v2603, %v2595
        %v2764 = vpack.c.b16 %v2604, %v2596
        %v2765 = vpack.c.b16 %v2605, %v2597
        %v2766 = vpack.c.b16 %v2606, %v2598
        %v2767 = vpack.c.b16 %v2607, %v2599
        %v2768 = vpack.c.b16 %v2608, %v2600
        %v2769 = vpack.c.b16 %v2617, %v2609
        %v2770 = vpack.c.b16 %v2618, %v2610
        %v2771 = vpack.c.b16 %v2619, %v2611
        %v2772 = vpack.c.b16 %v2620, %v2612
        %v2773 = vpack.c.b16 %v2621, %v2613
        %v2774 = vpack.c.b16 %v2622, %v2614
        %v2775 = vpack.c.b16 %v2623, %v2615
        %v2776 = vpack.c.b16 %v2624, %v2616
        %v2777 = vpack.c.b16 %v2633, %v2625
        %v2778 = vpack.c.b16 %v2634, %v2626
        %v2779 = vpack.c.b16 %v2635, %v2627
        %v2780 = vpack.c.b16 %v2636, %v2628
        %v2781 = vpack.c.b16 %v2637, %v2629
        %v2782 = vpack.c.b16 %v2638, %v2630
        %v2783 = vpack.c.b16 %v2639, %v2631
        %v2784 = vpack.c.b16 %v2640, %v2632
        %v2785 = vpack.c.b16 %v2649, %v2641
        %v2786 = vpack.c.b16 %v2650, %v2642
        %v2787 = vpack.c.b16 %v2651, %v2643
        %v2788 = vpack.c.b16 %v2652, %v2644
        %v2789 = vpack.c.b16 %v2653, %v2645
        %v2790 = vpack.c.b16 %v2654, %v2646
        %v2791 = vpack.c.b16 %v2655, %v2647
        %v2792 = vpack.c.b16 %v2656, %v2648
        %v2793 = vpack.c.b16 %v2665, %v2657
        %v2794 = vpack.c.b16 %v2666, %v2658
        %v2795 = vpack.c.b16 %v2667, %v2659
        %v2796 = vpack.c.b16 %v2668, %v2660
        %v2797 = vpack.c.b16 %v2669, %v2661
        %v2798 = vpack.c.b16 %v2670, %v2662
        %v2799 = vpack.c.b16 %v2671, %v2663
        %v2800 = vpack.c.b16 %v2672, %v2664
        %2929 = vmatpush.bf16.msra.mxu0 %v2729
        %2930 = vmatpush.bf16.msra.mxu0 %v2721
        %2931 = vmatpush.bf16.msra.mxu0 %v2713
        %2932 = vmatpush.bf16.msra.mxu0 %v2705
        %2933 = vmatpush.bf16.msra.mxu0 %v2697
        %2934 = vmatpush.bf16.msra.mxu0 %v2689
        %2935 = vmatpush.bf16.msra.mxu0 %v2681
        %2936 = vmatpush.bf16.msra.mxu0 %v2673
        %2937 = vmatmul.bf16.gmra.mxu0 %v2139
        %v2938 = vpop.f32.mrf.mxu0
        %v2939 = vadd.f32 %v2273, %v2938
        %v2940 = vpop.f32.mrf.mxu0
        %v2941 = vadd.f32 %v2273, %v2940
        %2942 = vdwg.mxu0
        %2943 = vmatpush.bf16.msra.mxu0 %v2793
        %2944 = vmatpush.bf16.msra.mxu0 %v2785
        %2945 = vmatpush.bf16.msra.mxu0 %v2777
        %2946 = vmatpush.bf16.msra.mxu0 %v2769
        %2947 = vmatpush.bf16.msra.mxu0 %v2761
        %2948 = vmatpush.bf16.msra.mxu0 %v2753
        %2949 = vmatpush.bf16.msra.mxu0 %v2745
        %2950 = vmatpush.bf16.msra.mxu0 %v2737
        %2951 = vmatmul.bf16.gmra.mxu0 %v2140
        %v2952 = vpop.f32.mrf.mxu0
        %v2953 = vadd.f32 %v2939, %v2952
        %v2954 = vpop.f32.mrf.mxu0
        %v2955 = vadd.f32 %v2941, %v2954
        %2956 = vdwg.mxu0
        %2957 = vmatpush.bf16.msra.mxu0 %v2730
        %2958 = vmatpush.bf16.msra.mxu0 %v2722
        %2959 = vmatpush.bf16.msra.mxu0 %v2714
        %2960 = vmatpush.bf16.msra.mxu0 %v2706
        %2961 = vmatpush.bf16.msra.mxu0 %v2698
        %2962 = vmatpush.bf16.msra.mxu0 %v2690
        %2963 = vmatpush.bf16.msra.mxu0 %v2682
        %2964 = vmatpush.bf16.msra.mxu0 %v2674
        %2965 = vmatmul.bf16.gmra.mxu0 %v2139
        %v2966 = vpop.f32.mrf.mxu0
        %v2967 = vadd.f32 %v2274, %v2966
        %v2968 = vpop.f32.mrf.mxu0
        %v2969 = vadd.f32 %v2274, %v2968
        %2970 = vdwg.mxu0
        %2971 = vmatpush.bf16.msra.mxu0 %v2794
        %2972 = vmatpush.bf16.msra.mxu0 %v2786
        %2973 = vmatpush.bf16.msra.mxu0 %v2778
        %2974 = vmatpush.bf16.msra.mxu0 %v2770
        %2975 = vmatpush.bf16.msra.mxu0 %v2762
        %2976 = vmatpush.bf16.msra.mxu0 %v2754
        %2977 = vmatpush.bf16.msra.mxu0 %v2746
        %2978 = vmatpush.bf16.msra.mxu0 %v2738
        %2979 = vmatmul.bf16.gmra.mxu0 %v2140
        %v2980 = vpop.f32.mrf.mxu0
        %v2981 = vadd.f32 %v2967, %v2980
        %v2982 = vpop.f32.mrf.mxu0
        %v2983 = vadd.f32 %v2969, %v2982
        %2984 = vdwg.mxu0
        %2985 = vmatpush.bf16.msra.mxu0 %v2731
        %2986 = vmatpush.bf16.msra.mxu0 %v2723
        %2987 = vmatpush.bf16.msra.mxu0 %v2715
        %2988 = vmatpush.bf16.msra.mxu0 %v2707
        %2989 = vmatpush.bf16.msra.mxu0 %v2699
        %2990 = vmatpush.bf16.msra.mxu0 %v2691
        %2991 = vmatpush.bf16.msra.mxu0 %v2683
        %2992 = vmatpush.bf16.msra.mxu0 %v2675
        %2993 = vmatmul.bf16.gmra.mxu0 %v2139
        %v2994 = vpop.f32.mrf.mxu0
        %v2995 = vadd.f32 %v2275, %v2994
        %v2996 = vpop.f32.mrf.mxu0
        %v2997 = vadd.f32 %v2275, %v2996
        %2998 = vdwg.mxu0
        %2999 = vmatpush.bf16.msra.mxu0 %v2795
        %3000 = vmatpush.bf16.msra.mxu0 %v2787
        %3001 = vmatpush.bf16.msra.mxu0 %v2779
        %3002 = vmatpush.bf16.msra.mxu0 %v2771
        %3003 = vmatpush.bf16.msra.mxu0 %v2763
        %3004 = vmatpush.bf16.msra.mxu0 %v2755
        %3005 = vmatpush.bf16.msra.mxu0 %v2747
        %3006 = vmatpush.bf16.msra.mxu0 %v2739
        %3007 = vmatmul.bf16.gmra.mxu0 %v2140
        %v3008 = vpop.f32.mrf.mxu0
        %v3009 = vadd.f32 %v2995, %v3008
        %v3010 = vpop.f32.mrf.mxu0
        %v3011 = vadd.f32 %v2997, %v3010
        %3012 = vdwg.mxu0
        %3013 = vmatpush.bf16.msra.mxu0 %v2732
        %3014 = vmatpush.bf16.msra.mxu0 %v2724
        %3015 = vmatpush.bf16.msra.mxu0 %v2716
        %3016 = vmatpush.bf16.msra.mxu0 %v2708
        %3017 = vmatpush.bf16.msra.mxu0 %v2700
        %3018 = vmatpush.bf16.msra.mxu0 %v2692
        %3019 = vmatpush.bf16.msra.mxu0 %v2684
        %3020 = vmatpush.bf16.msra.mxu0 %v2676
        %3021 = vmatmul.bf16.gmra.mxu0 %v2139
        %v3022 = vpop.f32.mrf.mxu0
        %v3023 = vadd.f32 %v2276, %v3022
        %v3024 = vpop.f32.mrf.mxu0
        %v3025 = vadd.f32 %v2276, %v3024
        %3026 = vdwg.mxu0
        %3027 = vmatpush.bf16.msra.mxu0 %v2796
        %3028 = vmatpush.bf16.msra.mxu0 %v2788
        %3029 = vmatpush.bf16.msra.mxu0 %v2780
        %3030 = vmatpush.bf16.msra.mxu0 %v2772
        %3031 = vmatpush.bf16.msra.mxu0 %v2764
        %3032 = vmatpush.bf16.msra.mxu0 %v2756
        %3033 = vmatpush.bf16.msra.mxu0 %v2748
        %3034 = vmatpush.bf16.msra.mxu0 %v2740
        %3035 = vmatmul.bf16.gmra.mxu0 %v2140
        %v3036 = vpop.f32.mrf.mxu0
        %v3037 = vadd.f32 %v3023, %v3036
        %v3038 = vpop.f32.mrf.mxu0
        %v3039 = vadd.f32 %v3025, %v3038
        %3040 = vdwg.mxu0
        %3041 = vmatpush.bf16.msra.mxu0 %v2733
        %3042 = vmatpush.bf16.msra.mxu0 %v2725
        %3043 = vmatpush.bf16.msra.mxu0 %v2717
        %3044 = vmatpush.bf16.msra.mxu0 %v2709
        %3045 = vmatpush.bf16.msra.mxu0 %v2701
        %3046 = vmatpush.bf16.msra.mxu0 %v2693
        %3047 = vmatpush.bf16.msra.mxu0 %v2685
        %3048 = vmatpush.bf16.msra.mxu0 %v2677
        %3049 = vmatmul.bf16.gmra.mxu0 %v2139
        %v3050 = vpop.f32.mrf.mxu0
        %v3051 = vadd.f32 %v2277, %v3050
        %v3052 = vpop.f32.mrf.mxu0
        %v3053 = vadd.f32 %v2277, %v3052
        %3054 = vdwg.mxu0
        %3055 = vmatpush.bf16.msra.mxu0 %v2797
        %3056 = vmatpush.bf16.msra.mxu0 %v2789
        %3057 = vmatpush.bf16.msra.mxu0 %v2781
        %3058 = vmatpush.bf16.msra.mxu0 %v2773
        %3059 = vmatpush.bf16.msra.mxu0 %v2765
        %3060 = vmatpush.bf16.msra.mxu0 %v2757
        %3061 = vmatpush.bf16.msra.mxu0 %v2749
        %3062 = vmatpush.bf16.msra.mxu0 %v2741
        %3063 = vmatmul.bf16.gmra.mxu0 %v2140
        %v3064 = vpop.f32.mrf.mxu0
        %v3065 = vadd.f32 %v3051, %v3064
        %v3066 = vpop.f32.mrf.mxu0
        %v3067 = vadd.f32 %v3053, %v3066
        %3068 = vdwg.mxu0
        %3069 = vmatpush.bf16.msra.mxu0 %v2734
        %3070 = vmatpush.bf16.msra.mxu0 %v2726
        %3071 = vmatpush.bf16.msra.mxu0 %v2718
        %3072 = vmatpush.bf16.msra.mxu0 %v2710
        %3073 = vmatpush.bf16.msra.mxu0 %v2702
        %3074 = vmatpush.bf16.msra.mxu0 %v2694
        %3075 = vmatpush.bf16.msra.mxu0 %v2686
        %3076 = vmatpush.bf16.msra.mxu0 %v2678
        %3077 = vmatmul.bf16.gmra.mxu0 %v2139
        %v3078 = vpop.f32.mrf.mxu0
        %v3079 = vadd.f32 %v2278, %v3078
        %v3080 = vpop.f32.mrf.mxu0
        %v3081 = vadd.f32 %v2278, %v3080
        %3082 = vdwg.mxu0
        %3083 = vmatpush.bf16.msra.mxu0 %v2798
        %3084 = vmatpush.bf16.msra.mxu0 %v2790
        %3085 = vmatpush.bf16.msra.mxu0 %v2782
        %3086 = vmatpush.bf16.msra.mxu0 %v2774
        %3087 = vmatpush.bf16.msra.mxu0 %v2766
        %3088 = vmatpush.bf16.msra.mxu0 %v2758
        %3089 = vmatpush.bf16.msra.mxu0 %v2750
        %3090 = vmatpush.bf16.msra.mxu0 %v2742
        %3091 = vmatmul.bf16.gmra.mxu0 %v2140
        %v3092 = vpop.f32.mrf.mxu0
        %v3093 = vadd.f32 %v3079, %v3092
        %v3094 = vpop.f32.mrf.mxu0
        %v3095 = vadd.f32 %v3081, %v3094
        %3096 = vdwg.mxu0
        %3097 = vmatpush.bf16.msra.mxu0 %v2735
        %3098 = vmatpush.bf16.msra.mxu0 %v2727
        %3099 = vmatpush.bf16.msra.mxu0 %v2719
        %3100 = vmatpush.bf16.msra.mxu0 %v2711
        %3101 = vmatpush.bf16.msra.mxu0 %v2703
        %3102 = vmatpush.bf16.msra.mxu0 %v2695
        %3103 = vmatpush.bf16.msra.mxu0 %v2687
        %3104 = vmatpush.bf16.msra.mxu0 %v2679
        %3105 = vmatmul.bf16.gmra.mxu0 %v2139
        %v3106 = vpop.f32.mrf.mxu0
        %v3107 = vadd.f32 %v2279, %v3106
        %v3108 = vpop.f32.mrf.mxu0
        %v3109 = vadd.f32 %v2279, %v3108
        %3110 = vdwg.mxu0
        %3111 = vmatpush.bf16.msra.mxu0 %v2799
        %3112 = vmatpush.bf16.msra.mxu0 %v2791
        %3113 = vmatpush.bf16.msra.mxu0 %v2783
        %3114 = vmatpush.bf16.msra.mxu0 %v2775
        %3115 = vmatpush.bf16.msra.mxu0 %v2767
        %3116 = vmatpush.bf16.msra.mxu0 %v2759
        %3117 = vmatpush.bf16.msra.mxu0 %v2751
        %3118 = vmatpush.bf16.msra.mxu0 %v2743
        %3119 = vmatmul.bf16.gmra.mxu0 %v2140
        %v3120 = vpop.f32.mrf.mxu0
        %v3121 = vadd.f32 %v3107, %v3120
        %v3122 = vpop.f32.mrf.mxu0
        %v3123 = vadd.f32 %v3109, %v3122
        %3124 = vdwg.mxu0
        %3125 = vmatpush.bf16.msra.mxu0 %v2736
        %3126 = vmatpush.bf16.msra.mxu0 %v2728
        %3127 = vmatpush.bf16.msra.mxu0 %v2720
        %3128 = vmatpush.bf16.msra.mxu0 %v2712
        %3129 = vmatpush.bf16.msra.mxu0 %v2704
        %3130 = vmatpush.bf16.msra.mxu0 %v2696
        %3131 = vmatpush.bf16.msra.mxu0 %v2688
        %3132 = vmatpush.bf16.msra.mxu0 %v2680
        %3133 = vmatmul.bf16.gmra.mxu0 %v2139
        %v3134 = vpop.f32.mrf.mxu0
        %v3135 = vadd.f32 %v2280, %v3134
        %v3136 = vpop.f32.mrf.mxu0
        %v3137 = vadd.f32 %v2280, %v3136
        %3138 = vdwg.mxu0
        %3139 = vmatpush.bf16.msra.mxu0 %v2800
        %3140 = vmatpush.bf16.msra.mxu0 %v2792
        %3141 = vmatpush.bf16.msra.mxu0 %v2784
        %3142 = vmatpush.bf16.msra.mxu0 %v2776
        %3143 = vmatpush.bf16.msra.mxu0 %v2768
        %3144 = vmatpush.bf16.msra.mxu0 %v2760
        %3145 = vmatpush.bf16.msra.mxu0 %v2752
        %3146 = vmatpush.bf16.msra.mxu0 %v2744
        %3147 = vmatmul.bf16.gmra.mxu0 %v2140
        %v3148 = vpop.f32.mrf.mxu0
        %v3149 = vadd.f32 %v3135, %v3148
        %v3150 = vpop.f32.mrf.mxu0
        %v3151 = vadd.f32 %v3137, %v3150
        %3152 = vdwg.mxu0
        %v3153 = vmul.f32 %v2953, %v2953
        %v3154 = vmul.f32 %v2981, %v2981
        %v3155 = vmul.f32 %v3009, %v3009
        %v3156 = vmul.f32 %v3037, %v3037
        %v3157 = vmul.f32 %v3065, %v3065
        %v3158 = vmul.f32 %v3093, %v3093
        %v3159 = vmul.f32 %v3121, %v3121
        %v3160 = vmul.f32 %v3149, %v3149
        %v3161 = vmul.f32 %v2955, %v2955
        %v3162 = vmul.f32 %v2983, %v2983
        %v3163 = vmul.f32 %v3011, %v3011
        %v3164 = vmul.f32 %v3039, %v3039
        %v3165 = vmul.f32 %v3067, %v3067
        %v3166 = vmul.f32 %v3095, %v3095
        %v3167 = vmul.f32 %v3123, %v3123
        %v3168 = vmul.f32 %v3151, %v3151
        %v3169 = vmul.f32 %v2953, %v3153
        %v3170 = vmul.f32 %v2981, %v3154
        %v3171 = vmul.f32 %v3009, %v3155
        %v3172 = vmul.f32 %v3037, %v3156
        %v3173 = vmul.f32 %v3065, %v3157
        %v3174 = vmul.f32 %v3093, %v3158
        %v3175 = vmul.f32 %v3121, %v3159
        %v3176 = vmul.f32 %v3149, %v3160
        %v3177 = vmul.f32 %v2955, %v3161
        %v3178 = vmul.f32 %v2983, %v3162
        %v3179 = vmul.f32 %v3011, %v3163
        %v3180 = vmul.f32 %v3039, %v3164
        %v3181 = vmul.f32 %v3067, %v3165
        %v3182 = vmul.f32 %v3095, %v3166
        %v3183 = vmul.f32 %v3123, %v3167
        %v3184 = vmul.f32 %v3151, %v3168
        %v3185 = vmul.f32 %v3169, 0.044715
        %v3186 = vmul.f32 %v3170, 0.044715
        %v3187 = vmul.f32 %v3171, 0.044715
        %v3188 = vmul.f32 %v3172, 0.044715
        %v3189 = vmul.f32 %v3173, 0.044715
        %v3190 = vmul.f32 %v3174, 0.044715
        %v3191 = vmul.f32 %v3175, 0.044715
        %v3192 = vmul.f32 %v3176, 0.044715
        %v3193 = vmul.f32 %v3177, 0.044715
        %v3194 = vmul.f32 %v3178, 0.044715
        %v3195 = vmul.f32 %v3179, 0.044715
        %v3196 = vmul.f32 %v3180, 0.044715
        %v3197 = vmul.f32 %v3181, 0.044715
        %v3198 = vmul.f32 %v3182, 0.044715
        %v3199 = vmul.f32 %v3183, 0.044715
        %v3200 = vmul.f32 %v3184, 0.044715
        %v3201 = vadd.f32 %v2953, %v3185
        %v3202 = vadd.f32 %v2981, %v3186
        %v3203 = vadd.f32 %v3009, %v3187
        %v3204 = vadd.f32 %v3037, %v3188
        %v3205 = vadd.f32 %v3065, %v3189
        %v3206 = vadd.f32 %v3093, %v3190
        %v3207 = vadd.f32 %v3121, %v3191
        %v3208 = vadd.f32 %v3149, %v3192
        %v3209 = vadd.f32 %v2955, %v3193
        %v3210 = vadd.f32 %v2983, %v3194
        %v3211 = vadd.f32 %v3011, %v3195
        %v3212 = vadd.f32 %v3039, %v3196
        %v3213 = vadd.f32 %v3067, %v3197
        %v3214 = vadd.f32 %v3095, %v3198
        %v3215 = vadd.f32 %v3123, %v3199
        %v3216 = vadd.f32 %v3151, %v3200
        %v3217 = vmul.f32 %v3201, 0.7978846
        %v3218 = vmul.f32 %v3202, 0.7978846
        %v3219 = vmul.f32 %v3203, 0.7978846
        %v3220 = vmul.f32 %v3204, 0.7978846
        %v3221 = vmul.f32 %v3205, 0.7978846
        %v3222 = vmul.f32 %v3206, 0.7978846
        %v3223 = vmul.f32 %v3207, 0.7978846
        %v3224 = vmul.f32 %v3208, 0.7978846
        %v3225 = vmul.f32 %v3209, 0.7978846
        %v3226 = vmul.f32 %v3210, 0.7978846
        %v3227 = vmul.f32 %v3211, 0.7978846
        %v3228 = vmul.f32 %v3212, 0.7978846
        %v3229 = vmul.f32 %v3213, 0.7978846
        %v3230 = vmul.f32 %v3214, 0.7978846
        %v3231 = vmul.f32 %v3215, 0.7978846
        %v3232 = vmul.f32 %v3216, 0.7978846
        %v3233 = vtanh.pop %v3217
        %v3234 = vtanh.pop %v3218
        %v3235 = vtanh.pop %v3219
        %v3236 = vtanh.pop %v3220
        %v3237 = vtanh.pop %v3221
        %v3238 = vtanh.pop %v3222
        %v3239 = vtanh.pop %v3223
        %v3240 = vtanh.pop %v3224
        %v3241 = vtanh.pop %v3225
        %v3242 = vtanh.pop %v3226
        %v3243 = vtanh.pop %v3227
        %v3244 = vtanh.pop %v3228
        %v3245 = vtanh.pop %v3229
        %v3246 = vtanh.pop %v3230
        %v3247 = vtanh.pop %v3231
        %v3248 = vtanh.pop %v3232
        %v3249 = vadd.f32 %v3233, 1.0
        %v3250 = vadd.f32 %v3234, 1.0
        %v3251 = vadd.f32 %v3235, 1.0
        %v3252 = vadd.f32 %v3236, 1.0
        %v3253 = vadd.f32 %v3237, 1.0
        %v3254 = vadd.f32 %v3238, 1.0
        %v3255 = vadd.f32 %v3239, 1.0
        %v3256 = vadd.f32 %v3240, 1.0
        %v3257 = vadd.f32 %v3241, 1.0
        %v3258 = vadd.f32 %v3242, 1.0
        %v3259 = vadd.f32 %v3243, 1.0
        %v3260 = vadd.f32 %v3244, 1.0
        %v3261 = vadd.f32 %v3245, 1.0
        %v3262 = vadd.f32 %v3246, 1.0
        %v3263 = vadd.f32 %v3247, 1.0
        %v3264 = vadd.f32 %v3248, 1.0
        %v3265 = vmul.f32 %v3249, 0.5
        %v3266 = vmul.f32 %v3250, 0.5
        %v3267 = vmul.f32 %v3251, 0.5
        %v3268 = vmul.f32 %v3252, 0.5
        %v3269 = vmul.f32 %v3253, 0.5
        %v3270 = vmul.f32 %v3254, 0.5
        %v3271 = vmul.f32 %v3255, 0.5
        %v3272 = vmul.f32 %v3256, 0.5
        %v3273 = vmul.f32 %v3257, 0.5
        %v3274 = vmul.f32 %v3258, 0.5
        %v3275 = vmul.f32 %v3259, 0.5
        %v3276 = vmul.f32 %v3260, 0.5
        %v3277 = vmul.f32 %v3261, 0.5
        %v3278 = vmul.f32 %v3262, 0.5
        %v3279 = vmul.f32 %v3263, 0.5
        %v3280 = vmul.f32 %v3264, 0.5
        %v3281 = vmul.f32 %v2953, %v3265
        %v3282 = vmul.f32 %v2981, %v3266
        %v3283 = vmul.f32 %v3009, %v3267
        %v3284 = vmul.f32 %v3037, %v3268
        %v3285 = vmul.f32 %v3065, %v3269
        %v3286 = vmul.f32 %v3093, %v3270
        %v3287 = vmul.f32 %v3121, %v3271
        %v3288 = vmul.f32 %v3149, %v3272
        %v3289 = vmul.f32 %v2955, %v3273
        %v3290 = vmul.f32 %v2983, %v3274
        %v3291 = vmul.f32 %v3011, %v3275
        %v3292 = vmul.f32 %v3039, %v3276
        %v3293 = vmul.f32 %v3067, %v3277
        %v3294 = vmul.f32 %v3095, %v3278
        %v3295 = vmul.f32 %v3123, %v3279
        %v3296 = vmul.f32 %v3151, %v3280
        %v3297 = vpack.c.bf16 %v3289, %v3281
        %v3298 = vpack.c.bf16 %v3290, %v3282
        %v3299 = vpack.c.bf16 %v3291, %v3283
        %v3300 = vpack.c.bf16 %v3292, %v3284
        %v3301 = vpack.c.bf16 %v3293, %v3285
        %v3302 = vpack.c.bf16 %v3294, %v3286
        %v3303 = vpack.c.bf16 %v3295, %v3287
        %v3304 = vpack.c.bf16 %v3296, %v3288
        %v3305 = vld [vmem:[%s438] sm:$0xff]
        %v3306 = vld [vmem:[%s438 + $0x8] sm:$0xff]
        %v3307 = vld [vmem:[%s438 + $0x10] sm:$0xff]
        %v3308 = vld [vmem:[%s438 + $0x18] sm:$0xff]
        %v3309 = vld [vmem:[%s438 + $0x20] sm:$0xff]
        %v3310 = vld [vmem:[%s438 + $0x28] sm:$0xff]
        %v3311 = vld [vmem:[%s438 + $0x30] sm:$0xff]
        %v3312 = vld [vmem:[%s438 + $0x38] sm:$0xff]
        %v3313 = vld [vmem:[%s438 + $0x40] sm:$0xff]
        %v3314 = vld [vmem:[%s438 + $0x48] sm:$0xff]
        %v3315 = vld [vmem:[%s438 + $0x50] sm:$0xff]
        %v3316 = vld [vmem:[%s438 + $0x58] sm:$0xff]
        %v3317 = vld [vmem:[%s438 + $0x60] sm:$0xff]
        %v3318 = vld [vmem:[%s438 + $0x68] sm:$0xff]
        %v3319 = vld [vmem:[%s438 + $0x70] sm:$0xff]
        %v3320 = vld [vmem:[%s438 + $0x78] sm:$0xff]
        %v3321 = vld [vmem:[%s438 + $0x80] sm:$0xff]
        %v3322 = vld [vmem:[%s438 + $0x88] sm:$0xff]
        %v3323 = vld [vmem:[%s438 + $0x90] sm:$0xff]
        %v3324 = vld [vmem:[%s438 + $0x98] sm:$0xff]
        %v3325 = vld [vmem:[%s438 + $0xa0] sm:$0xff]
        %v3326 = vld [vmem:[%s438 + $0xa8] sm:$0xff]
        %v3327 = vld [vmem:[%s438 + $0xb0] sm:$0xff]
        %v3328 = vld [vmem:[%s438 + $0xb8] sm:$0xff]
        %v3329 = vld [vmem:[%s438 + $0xc0] sm:$0xff]
        %v3330 = vld [vmem:[%s438 + $0xc8] sm:$0xff]
        %v3331 = vld [vmem:[%s438 + $0xd0] sm:$0xff]
        %v3332 = vld [vmem:[%s438 + $0xd8] sm:$0xff]
        %v3333 = vld [vmem:[%s438 + $0xe0] sm:$0xff]
        %v3334 = vld [vmem:[%s438 + $0xe8] sm:$0xff]
        %v3335 = vld [vmem:[%s438 + $0xf0] sm:$0xff]
        %v3336 = vld [vmem:[%s438 + $0xf8] sm:$0xff]
        %v3337 = vld [vmem:[%s438 + $0x100] sm:$0xff]
        %v3338 = vld [vmem:[%s438 + $0x108] sm:$0xff]
        %v3339 = vld [vmem:[%s438 + $0x110] sm:$0xff]
        %v3340 = vld [vmem:[%s438 + $0x118] sm:$0xff]
        %v3341 = vld [vmem:[%s438 + $0x120] sm:$0xff]
        %v3342 = vld [vmem:[%s438 + $0x128] sm:$0xff]
        %v3343 = vld [vmem:[%s438 + $0x130] sm:$0xff]
        %v3344 = vld [vmem:[%s438 + $0x138] sm:$0xff]
        %v3345 = vld [vmem:[%s438 + $0x140] sm:$0xff]
        %v3346 = vld [vmem:[%s438 + $0x148] sm:$0xff]
        %v3347 = vld [vmem:[%s438 + $0x150] sm:$0xff]
        %v3348 = vld [vmem:[%s438 + $0x158] sm:$0xff]
        %v3349 = vld [vmem:[%s438 + $0x160] sm:$0xff]
        %v3350 = vld [vmem:[%s438 + $0x168] sm:$0xff]
        %v3351 = vld [vmem:[%s438 + $0x170] sm:$0xff]
        %v3352 = vld [vmem:[%s438 + $0x178] sm:$0xff]
        %v3353 = vld [vmem:[%s438 + $0x180] sm:$0xff]
        %v3354 = vld [vmem:[%s438 + $0x188] sm:$0xff]
        %v3355 = vld [vmem:[%s438 + $0x190] sm:$0xff]
        %v3356 = vld [vmem:[%s438 + $0x198] sm:$0xff]
        %v3357 = vld [vmem:[%s438 + $0x1a0] sm:$0xff]
        %v3358 = vld [vmem:[%s438 + $0x1a8] sm:$0xff]
        %v3359 = vld [vmem:[%s438 + $0x1b0] sm:$0xff]
        %v3360 = vld [vmem:[%s438 + $0x1b8] sm:$0xff]
        %v3361 = vld [vmem:[%s438 + $0x1c0] sm:$0xff]
        %v3362 = vld [vmem:[%s438 + $0x1c8] sm:$0xff]
        %v3363 = vld [vmem:[%s438 + $0x1d0] sm:$0xff]
        %v3364 = vld [vmem:[%s438 + $0x1d8] sm:$0xff]
        %v3365 = vld [vmem:[%s438 + $0x1e0] sm:$0xff]
        %v3366 = vld [vmem:[%s438 + $0x1e8] sm:$0xff]
        %v3367 = vld [vmem:[%s438 + $0x1f0] sm:$0xff]
        %v3368 = vld [vmem:[%s438 + $0x1f8] sm:$0xff]
        %v3369 = vld [vmem:[%s438 + $0x200] sm:$0xff]
        %v3370 = vld [vmem:[%s438 + $0x208] sm:$0xff]
        %v3371 = vld [vmem:[%s438 + $0x210] sm:$0xff]
        %v3372 = vld [vmem:[%s438 + $0x218] sm:$0xff]
        %v3373 = vld [vmem:[%s438 + $0x220] sm:$0xff]
        %v3374 = vld [vmem:[%s438 + $0x228] sm:$0xff]
        %v3375 = vld [vmem:[%s438 + $0x230] sm:$0xff]
        %v3376 = vld [vmem:[%s438 + $0x238] sm:$0xff]
        %v3377 = vld [vmem:[%s438 + $0x240] sm:$0xff]
        %v3378 = vld [vmem:[%s438 + $0x248] sm:$0xff]
        %v3379 = vld [vmem:[%s438 + $0x250] sm:$0xff]
        %v3380 = vld [vmem:[%s438 + $0x258] sm:$0xff]
        %v3381 = vld [vmem:[%s438 + $0x260] sm:$0xff]
        %v3382 = vld [vmem:[%s438 + $0x268] sm:$0xff]
        %v3383 = vld [vmem:[%s438 + $0x270] sm:$0xff]
        %v3384 = vld [vmem:[%s438 + $0x278] sm:$0xff]
        %v3385 = vld [vmem:[%s438 + $0x280] sm:$0xff]
        %v3386 = vld [vmem:[%s438 + $0x288] sm:$0xff]
        %v3387 = vld [vmem:[%s438 + $0x290] sm:$0xff]
        %v3388 = vld [vmem:[%s438 + $0x298] sm:$0xff]
        %v3389 = vld [vmem:[%s438 + $0x2a0] sm:$0xff]
        %v3390 = vld [vmem:[%s438 + $0x2a8] sm:$0xff]
        %v3391 = vld [vmem:[%s438 + $0x2b0] sm:$0xff]
        %v3392 = vld [vmem:[%s438 + $0x2b8] sm:$0xff]
        %v3393 = vld [vmem:[%s438 + $0x2c0] sm:$0xff]
        %v3394 = vld [vmem:[%s438 + $0x2c8] sm:$0xff]
        %v3395 = vld [vmem:[%s438 + $0x2d0] sm:$0xff]
        %v3396 = vld [vmem:[%s438 + $0x2d8] sm:$0xff]
        %v3397 = vld [vmem:[%s438 + $0x2e0] sm:$0xff]
        %v3398 = vld [vmem:[%s438 + $0x2e8] sm:$0xff]
        %v3399 = vld [vmem:[%s438 + $0x2f0] sm:$0xff]
        %v3400 = vld [vmem:[%s438 + $0x2f8] sm:$0xff]
        %v3401 = vld [vmem:[%s438 + $0x300] sm:$0xff]
        %v3402 = vld [vmem:[%s438 + $0x308] sm:$0xff]
        %v3403 = vld [vmem:[%s438 + $0x310] sm:$0xff]
        %v3404 = vld [vmem:[%s438 + $0x318] sm:$0xff]
        %v3405 = vld [vmem:[%s438 + $0x320] sm:$0xff]
        %v3406 = vld [vmem:[%s438 + $0x328] sm:$0xff]
        %v3407 = vld [vmem:[%s438 + $0x330] sm:$0xff]
        %v3408 = vld [vmem:[%s438 + $0x338] sm:$0xff]
        %v3409 = vld [vmem:[%s438 + $0x340] sm:$0xff]
        %v3410 = vld [vmem:[%s438 + $0x348] sm:$0xff]
        %v3411 = vld [vmem:[%s438 + $0x350] sm:$0xff]
        %v3412 = vld [vmem:[%s438 + $0x358] sm:$0xff]
        %v3413 = vld [vmem:[%s438 + $0x360] sm:$0xff]
        %v3414 = vld [vmem:[%s438 + $0x368] sm:$0xff]
        %v3415 = vld [vmem:[%s438 + $0x370] sm:$0xff]
        %v3416 = vld [vmem:[%s438 + $0x378] sm:$0xff]
        %v3417 = vld [vmem:[%s438 + $0x380] sm:$0xff]
        %v3418 = vld [vmem:[%s438 + $0x388] sm:$0xff]
        %v3419 = vld [vmem:[%s438 + $0x390] sm:$0xff]
        %v3420 = vld [vmem:[%s438 + $0x398] sm:$0xff]
        %v3421 = vld [vmem:[%s438 + $0x3a0] sm:$0xff]
        %v3422 = vld [vmem:[%s438 + $0x3a8] sm:$0xff]
        %v3423 = vld [vmem:[%s438 + $0x3b0] sm:$0xff]
        %v3424 = vld [vmem:[%s438 + $0x3b8] sm:$0xff]
        %v3425 = vld [vmem:[%s438 + $0x3c0] sm:$0xff]
        %v3426 = vld [vmem:[%s438 + $0x3c8] sm:$0xff]
        %v3427 = vld [vmem:[%s438 + $0x3d0] sm:$0xff]
        %v3428 = vld [vmem:[%s438 + $0x3d8] sm:$0xff]
        %v3429 = vld [vmem:[%s438 + $0x3e0] sm:$0xff]
        %v3430 = vld [vmem:[%s438 + $0x3e8] sm:$0xff]
        %v3431 = vld [vmem:[%s438 + $0x3f0] sm:$0xff]
        %v3432 = vld [vmem:[%s438 + $0x3f8] sm:$0xff]
        %v3433 = vperm.slane %v520, 6
        %v3434 = vperm.slane %v521, 6
        %v3563 = vunpack.c.l.b16 %v3305
        %v3564 = vunpack.c.h.b16 %v3305
        %v3565 = vunpack.c.l.b16 %v3306
        %v3566 = vunpack.c.h.b16 %v3306
        %v3567 = vunpack.c.l.b16 %v3307
        %v3568 = vunpack.c.h.b16 %v3307
        %v3569 = vunpack.c.l.b16 %v3308
        %v3570 = vunpack.c.h.b16 %v3308
        %v3571 = vunpack.c.l.b16 %v3309
        %v3572 = vunpack.c.h.b16 %v3309
        %v3573 = vunpack.c.l.b16 %v3310
        %v3574 = vunpack.c.h.b16 %v3310
        %v3575 = vunpack.c.l.b16 %v3311
        %v3576 = vunpack.c.h.b16 %v3311
        %v3577 = vunpack.c.l.b16 %v3312
        %v3578 = vunpack.c.h.b16 %v3312
        %v3579 = vunpack.c.l.b16 %v3313
        %v3580 = vunpack.c.h.b16 %v3313
        %v3581 = vunpack.c.l.b16 %v3314
        %v3582 = vunpack.c.h.b16 %v3314
        %v3583 = vunpack.c.l.b16 %v3315
        %v3584 = vunpack.c.h.b16 %v3315
        %v3585 = vunpack.c.l.b16 %v3316
        %v3586 = vunpack.c.h.b16 %v3316
        %v3587 = vunpack.c.l.b16 %v3317
        %v3588 = vunpack.c.h.b16 %v3317
        %v3589 = vunpack.c.l.b16 %v3318
        %v3590 = vunpack.c.h.b16 %v3318
        %v3591 = vunpack.c.l.b16 %v3319
        %v3592 = vunpack.c.h.b16 %v3319
        %v3593 = vunpack.c.l.b16 %v3320
        %v3594 = vunpack.c.h.b16 %v3320
        %v3595 = vunpack.c.l.b16 %v3321
        %v3596 = vunpack.c.h.b16 %v3321
        %v3597 = vunpack.c.l.b16 %v3322
        %v3598 = vunpack.c.h.b16 %v3322
        %v3599 = vunpack.c.l.b16 %v3323
        %v3600 = vunpack.c.h.b16 %v3323
        %v3601 = vunpack.c.l.b16 %v3324
        %v3602 = vunpack.c.h.b16 %v3324
        %v3603 = vunpack.c.l.b16 %v3325
        %v3604 = vunpack.c.h.b16 %v3325
        %v3605 = vunpack.c.l.b16 %v3326
        %v3606 = vunpack.c.h.b16 %v3326
        %v3607 = vunpack.c.l.b16 %v3327
        %v3608 = vunpack.c.h.b16 %v3327
        %v3609 = vunpack.c.l.b16 %v3328
        %v3610 = vunpack.c.h.b16 %v3328
        %v3611 = vunpack.c.l.b16 %v3329
        %v3612 = vunpack.c.h.b16 %v3329
        %v3613 = vunpack.c.l.b16 %v3330
        %v3614 = vunpack.c.h.b16 %v3330
        %v3615 = vunpack.c.l.b16 %v3331
        %v3616 = vunpack.c.h.b16 %v3331
        %v3617 = vunpack.c.l.b16 %v3332
        %v3618 = vunpack.c.h.b16 %v3332
        %v3619 = vunpack.c.l.b16 %v3333
        %v3620 = vunpack.c.h.b16 %v3333
        %v3621 = vunpack.c.l.b16 %v3334
        %v3622 = vunpack.c.h.b16 %v3334
        %v3623 = vunpack.c.l.b16 %v3335
        %v3624 = vunpack.c.h.b16 %v3335
        %v3625 = vunpack.c.l.b16 %v3336
        %v3626 = vunpack.c.h.b16 %v3336
        %v3627 = vunpack.c.l.b16 %v3337
        %v3628 = vunpack.c.h.b16 %v3337
        %v3629 = vunpack.c.l.b16 %v3338
        %v3630 = vunpack.c.h.b16 %v3338
        %v3631 = vunpack.c.l.b16 %v3339
        %v3632 = vunpack.c.h.b16 %v3339
        %v3633 = vunpack.c.l.b16 %v3340
        %v3634 = vunpack.c.h.b16 %v3340
        %v3635 = vunpack.c.l.b16 %v3341
        %v3636 = vunpack.c.h.b16 %v3341
        %v3637 = vunpack.c.l.b16 %v3342
        %v3638 = vunpack.c.h.b16 %v3342
        %v3639 = vunpack.c.l.b16 %v3343
        %v3640 = vunpack.c.h.b16 %v3343
        %v3641 = vunpack.c.l.b16 %v3344
        %v3642 = vunpack.c.h.b16 %v3344
        %v3643 = vunpack.c.l.b16 %v3345
        %v3644 = vunpack.c.h.b16 %v3345
        %v3645 = vunpack.c.l.b16 %v3346
        %v3646 = vunpack.c.h.b16 %v3346
        %v3647 = vunpack.c.l.b16 %v3347
        %v3648 = vunpack.c.h.b16 %v3347
        %v3649 = vunpack.c.l.b16 %v3348
        %v3650 = vunpack.c.h.b16 %v3348
        %v3651 = vunpack.c.l.b16 %v3349
        %v3652 = vunpack.c.h.b16 %v3349
        %v3653 = vunpack.c.l.b16 %v3350
        %v3654 = vunpack.c.h.b16 %v3350
        %v3655 = vunpack.c.l.b16 %v3351
        %v3656 = vunpack.c.h.b16 %v3351
        %v3657 = vunpack.c.l.b16 %v3352
        %v3658 = vunpack.c.h.b16 %v3352
        %v3659 = vunpack.c.l.b16 %v3353
        %v3660 = vunpack.c.h.b16 %v3353
        %v3661 = vunpack.c.l.b16 %v3354
        %v3662 = vunpack.c.h.b16 %v3354
        %v3663 = vunpack.c.l.b16 %v3355
        %v3664 = vunpack.c.h.b16 %v3355
        %v3665 = vunpack.c.l.b16 %v3356
        %v3666 = vunpack.c.h.b16 %v3356
        %v3667 = vunpack.c.l.b16 %v3357
        %v3668 = vunpack.c.h.b16 %v3357
        %v3669 = vunpack.c.l.b16 %v3358
        %v3670 = vunpack.c.h.b16 %v3358
        %v3671 = vunpack.c.l.b16 %v3359
        %v3672 = vunpack.c.h.b16 %v3359
        %v3673 = vunpack.c.l.b16 %v3360
        %v3674 = vunpack.c.h.b16 %v3360
        %v3675 = vunpack.c.l.b16 %v3361
        %v3676 = vunpack.c.h.b16 %v3361
        %v3677 = vunpack.c.l.b16 %v3362
        %v3678 = vunpack.c.h.b16 %v3362
        %v3679 = vunpack.c.l.b16 %v3363
        %v3680 = vunpack.c.h.b16 %v3363
        %v3681 = vunpack.c.l.b16 %v3364
        %v3682 = vunpack.c.h.b16 %v3364
        %v3683 = vunpack.c.l.b16 %v3365
        %v3684 = vunpack.c.h.b16 %v3365
        %v3685 = vunpack.c.l.b16 %v3366
        %v3686 = vunpack.c.h.b16 %v3366
        %v3687 = vunpack.c.l.b16 %v3367
        %v3688 = vunpack.c.h.b16 %v3367
        %v3689 = vunpack.c.l.b16 %v3368
        %v3690 = vunpack.c.h.b16 %v3368
        %v3691 = vunpack.c.l.b16 %v3369
        %v3692 = vunpack.c.h.b16 %v3369
        %v3693 = vunpack.c.l.b16 %v3370
        %v3694 = vunpack.c.h.b16 %v3370
        %v3695 = vunpack.c.l.b16 %v3371
        %v3696 = vunpack.c.h.b16 %v3371
        %v3697 = vunpack.c.l.b16 %v3372
        %v3698 = vunpack.c.h.b16 %v3372
        %v3699 = vunpack.c.l.b16 %v3373
        %v3700 = vunpack.c.h.b16 %v3373
        %v3701 = vunpack.c.l.b16 %v3374
        %v3702 = vunpack.c.h.b16 %v3374
        %v3703 = vunpack.c.l.b16 %v3375
        %v3704 = vunpack.c.h.b16 %v3375
        %v3705 = vunpack.c.l.b16 %v3376
        %v3706 = vunpack.c.h.b16 %v3376
        %v3707 = vunpack.c.l.b16 %v3377
        %v3708 = vunpack.c.h.b16 %v3377
        %v3709 = vunpack.c.l.b16 %v3378
        %v3710 = vunpack.c.h.b16 %v3378
        %v3711 = vunpack.c.l.b16 %v3379
        %v3712 = vunpack.c.h.b16 %v3379
        %v3713 = vunpack.c.l.b16 %v3380
        %v3714 = vunpack.c.h.b16 %v3380
        %v3715 = vunpack.c.l.b16 %v3381
        %v3716 = vunpack.c.h.b16 %v3381
        %v3717 = vunpack.c.l.b16 %v3382
        %v3718 = vunpack.c.h.b16 %v3382
        %v3719 = vunpack.c.l.b16 %v3383
        %v3720 = vunpack.c.h.b16 %v3383
        %v3721 = vunpack.c.l.b16 %v3384
        %v3722 = vunpack.c.h.b16 %v3384
        %v3723 = vunpack.c.l.b16 %v3385
        %v3724 = vunpack.c.h.b16 %v3385
        %v3725 = vunpack.c.l.b16 %v3386
        %v3726 = vunpack.c.h.b16 %v3386
        %v3727 = vunpack.c.l.b16 %v3387
        %v3728 = vunpack.c.h.b16 %v3387
        %v3729 = vunpack.c.l.b16 %v3388
        %v3730 = vunpack.c.h.b16 %v3388
        %v3731 = vunpack.c.l.b16 %v3389
        %v3732 = vunpack.c.h.b16 %v3389
        %v3733 = vunpack.c.l.b16 %v3390
        %v3734 = vunpack.c.h.b16 %v3390
        %v3735 = vunpack.c.l.b16 %v3391
        %v3736 = vunpack.c.h.b16 %v3391
        %v3737 = vunpack.c.l.b16 %v3392
        %v3738 = vunpack.c.h.b16 %v3392
        %v3739 = vunpack.c.l.b16 %v3393
        %v3740 = vunpack.c.h.b16 %v3393
        %v3741 = vunpack.c.l.b16 %v3394
        %v3742 = vunpack.c.h.b16 %v3394
        %v3743 = vunpack.c.l.b16 %v3395
        %v3744 = vunpack.c.h.b16 %v3395
        %v3745 = vunpack.c.l.b16 %v3396
        %v3746 = vunpack.c.h.b16 %v3396
        %v3747 = vunpack.c.l.b16 %v3397
        %v3748 = vunpack.c.h.b16 %v3397
        %v3749 = vunpack.c.l.b16 %v3398
        %v3750 = vunpack.c.h.b16 %v3398
        %v3751 = vunpack.c.l.b16 %v3399
        %v3752 = vunpack.c.h.b16 %v3399
        %v3753 = vunpack.c.l.b16 %v3400
        %v3754 = vunpack.c.h.b16 %v3400
        %v3755 = vunpack.c.l.b16 %v3401
        %v3756 = vunpack.c.h.b16 %v3401
        %v3757 = vunpack.c.l.b16 %v3402
        %v3758 = vunpack.c.h.b16 %v3402
        %v3759 = vunpack.c.l.b16 %v3403
        %v3760 = vunpack.c.h.b16 %v3403
        %v3761 = vunpack.c.l.b16 %v3404
        %v3762 = vunpack.c.h.b16 %v3404
        %v3763 = vunpack.c.l.b16 %v3405
        %v3764 = vunpack.c.h.b16 %v3405
        %v3765 = vunpack.c.l.b16 %v3406
        %v3766 = vunpack.c.h.b16 %v3406
        %v3767 = vunpack.c.l.b16 %v3407
        %v3768 = vunpack.c.h.b16 %v3407
        %v3769 = vunpack.c.l.b16 %v3408
        %v3770 = vunpack.c.h.b16 %v3408
        %v3771 = vunpack.c.l.b16 %v3409
        %v3772 = vunpack.c.h.b16 %v3409
        %v3773 = vunpack.c.l.b16 %v3410
        %v3774 = vunpack.c.h.b16 %v3410
        %v3775 = vunpack.c.l.b16 %v3411
        %v3776 = vunpack.c.h.b16 %v3411
        %v3777 = vunpack.c.l.b16 %v3412
        %v3778 = vunpack.c.h.b16 %v3412
        %v3779 = vunpack.c.l.b16 %v3413
        %v3780 = vunpack.c.h.b16 %v3413
        %v3781 = vunpack.c.l.b16 %v3414
        %v3782 = vunpack.c.h.b16 %v3414
        %v3783 = vunpack.c.l.b16 %v3415
        %v3784 = vunpack.c.h.b16 %v3415
        %v3785 = vunpack.c.l.b16 %v3416
        %v3786 = vunpack.c.h.b16 %v3416
        %v3787 = vunpack.c.l.b16 %v3417
        %v3788 = vunpack.c.h.b16 %v3417
        %v3789 = vunpack.c.l.b16 %v3418
        %v3790 = vunpack.c.h.b16 %v3418
        %v3791 = vunpack.c.l.b16 %v3419
        %v3792 = vunpack.c.h.b16 %v3419
        %v3793 = vunpack.c.l.b16 %v3420
        %v3794 = vunpack.c.h.b16 %v3420
        %v3795 = vunpack.c.l.b16 %v3421
        %v3796 = vunpack.c.h.b16 %v3421
        %v3797 = vunpack.c.l.b16 %v3422
        %v3798 = vunpack.c.h.b16 %v3422
        %v3799 = vunpack.c.l.b16 %v3423
        %v3800 = vunpack.c.h.b16 %v3423
        %v3801 = vunpack.c.l.b16 %v3424
        %v3802 = vunpack.c.h.b16 %v3424
        %v3803 = vunpack.c.l.b16 %v3425
        %v3804 = vunpack.c.h.b16 %v3425
        %v3805 = vunpack.c.l.b16 %v3426
        %v3806 = vunpack.c.h.b16 %v3426
        %v3807 = vunpack.c.l.b16 %v3427
        %v3808 = vunpack.c.h.b16 %v3427
        %v3809 = vunpack.c.l.b16 %v3428
        %v3810 = vunpack.c.h.b16 %v3428
        %v3811 = vunpack.c.l.b16 %v3429
        %v3812 = vunpack.c.h.b16 %v3429
        %v3813 = vunpack.c.l.b16 %v3430
        %v3814 = vunpack.c.h.b16 %v3430
        %v3815 = vunpack.c.l.b16 %v3431
        %v3816 = vunpack.c.h.b16 %v3431
        %v3817 = vunpack.c.l.b16 %v3432
        %v3818 = vunpack.c.h.b16 %v3432
        %v3819 = vpack.c.b16 %v3565, %v3563
        %v3820 = vpack.c.b16 %v3566, %v3564
        %v3821 = vpack.c.b16 %v3569, %v3567
        %v3822 = vpack.c.b16 %v3570, %v3568
        %v3823 = vpack.c.b16 %v3573, %v3571
        %v3824 = vpack.c.b16 %v3574, %v3572
        %v3825 = vpack.c.b16 %v3577, %v3575
        %v3826 = vpack.c.b16 %v3578, %v3576
        %v3827 = vpack.c.b16 %v3581, %v3579
        %v3828 = vpack.c.b16 %v3582, %v3580
        %v3829 = vpack.c.b16 %v3585, %v3583
        %v3830 = vpack.c.b16 %v3586, %v3584
        %v3831 = vpack.c.b16 %v3589, %v3587
        %v3832 = vpack.c.b16 %v3590, %v3588
        %v3833 = vpack.c.b16 %v3593, %v3591
        %v3834 = vpack.c.b16 %v3594, %v3592
        %v3835 = vpack.c.b16 %v3597, %v3595
        %v3836 = vpack.c.b16 %v3598, %v3596
        %v3837 = vpack.c.b16 %v3601, %v3599
        %v3838 = vpack.c.b16 %v3602, %v3600
        %v3839 = vpack.c.b16 %v3605, %v3603
        %v3840 = vpack.c.b16 %v3606, %v3604
        %v3841 = vpack.c.b16 %v3609, %v3607
        %v3842 = vpack.c.b16 %v3610, %v3608
        %v3843 = vpack.c.b16 %v3613, %v3611
        %v3844 = vpack.c.b16 %v3614, %v3612
        %v3845 = vpack.c.b16 %v3617, %v3615
        %v3846 = vpack.c.b16 %v3618, %v3616
        %v3847 = vpack.c.b16 %v3621, %v3619
        %v3848 = vpack.c.b16 %v3622, %v3620
        %v3849 = vpack.c.b16 %v3625, %v3623
        %v3850 = vpack.c.b16 %v3626, %v3624
        %v3851 = vpack.c.b16 %v3629, %v3627
        %v3852 = vpack.c.b16 %v3630, %v3628
        %v3853 = vpack.c.b16 %v3633, %v3631
        %v3854 = vpack.c.b16 %v3634, %v3632
        %v3855 = vpack.c.b16 %v3637, %v3635
        %v3856 = vpack.c.b16 %v3638, %v3636
        %v3857 = vpack.c.b16 %v3641, %v3639
        %v3858 = vpack.c.b16 %v3642, %v3640
        %v3859 = vpack.c.b16 %v3645, %v3643
        %v3860 = vpack.c.b16 %v3646, %v3644
        %v3861 = vpack.c.b16 %v3649, %v3647
        %v3862 = vpack.c.b16 %v3650, %v3648
        %v3863 = vpack.c.b16 %v3653, %v3651
        %v3864 = vpack.c.b16 %v3654, %v3652
        %v3865 = vpack.c.b16 %v3657, %v3655
        %v3866 = vpack.c.b16 %v3658, %v3656
        %v3867 = vpack.c.b16 %v3661, %v3659
        %v3868 = vpack.c.b16 %v3662, %v3660
        %v3869 = vpack.c.b16 %v3665, %v3663
        %v3870 = vpack.c.b16 %v3666, %v3664
        %v3871 = vpack.c.b16 %v3669, %v3667
        %v3872 = vpack.c.b16 %v3670, %v3668
        %v3873 = vpack.c.b16 %v3673, %v3671
        %v3874 = vpack.c.b16 %v3674, %v3672
        %v3875 = vpack.c.b16 %v3677, %v3675
        %v3876 = vpack.c.b16 %v3678, %v3676
        %v3877 = vpack.c.b16 %v3681, %v3679
        %v3878 = vpack.c.b16 %v3682, %v3680
        %v3879 = vpack.c.b16 %v3685, %v3683
        %v3880 = vpack.c.b16 %v3686, %v3684
        %v3881 = vpack.c.b16 %v3689, %v3687
        %v3882 = vpack.c.b16 %v3690, %v3688
        %v3883 = vpack.c.b16 %v3693, %v3691
        %v3884 = vpack.c.b16 %v3694, %v3692
        %v3885 = vpack.c.b16 %v3697, %v3695
        %v3886 = vpack.c.b16 %v3698, %v3696
        %v3887 = vpack.c.b16 %v3701, %v3699
        %v3888 = vpack.c.b16 %v3702, %v3700
        %v3889 = vpack.c.b16 %v3705, %v3703
        %v3890 = vpack.c.b16 %v3706, %v3704
        %v3891 = vpack.c.b16 %v3709, %v3707
        %v3892 = vpack.c.b16 %v3710, %v3708
        %v3893 = vpack.c.b16 %v3713, %v3711
        %v3894 = vpack.c.b16 %v3714, %v3712
        %v3895 = vpack.c.b16 %v3717, %v3715
        %v3896 = vpack.c.b16 %v3718, %v3716
        %v3897 = vpack.c.b16 %v3721, %v3719
        %v3898 = vpack.c.b16 %v3722, %v3720
        %v3899 = vpack.c.b16 %v3725, %v3723
        %v3900 = vpack.c.b16 %v3726, %v3724
        %v3901 = vpack.c.b16 %v3729, %v3727
        %v3902 = vpack.c.b16 %v3730, %v3728
        %v3903 = vpack.c.b16 %v3733, %v3731
        %v3904 = vpack.c.b16 %v3734, %v3732
        %v3905 = vpack.c.b16 %v3737, %v3735
        %v3906 = vpack.c.b16 %v3738, %v3736
        %v3907 = vpack.c.b16 %v3741, %v3739
        %v3908 = vpack.c.b16 %v3742, %v3740
        %v3909 = vpack.c.b16 %v3745, %v3743
        %v3910 = vpack.c.b16 %v3746, %v3744
        %v3911 = vpack.c.b16 %v3749, %v3747
        %v3912 = vpack.c.b16 %v3750, %v3748
        %v3913 = vpack.c.b16 %v3753, %v3751
        %v3914 = vpack.c.b16 %v3754, %v3752
        %v3915 = vpack.c.b16 %v3757, %v3755
        %v3916 = vpack.c.b16 %v3758, %v3756
        %v3917 = vpack.c.b16 %v3761, %v3759
        %v3918 = vpack.c.b16 %v3762, %v3760
        %v3919 = vpack.c.b16 %v3765, %v3763
        %v3920 = vpack.c.b16 %v3766, %v3764
        %v3921 = vpack.c.b16 %v3769, %v3767
        %v3922 = vpack.c.b16 %v3770, %v3768
        %v3923 = vpack.c.b16 %v3773, %v3771
        %v3924 = vpack.c.b16 %v3774, %v3772
        %v3925 = vpack.c.b16 %v3777, %v3775
        %v3926 = vpack.c.b16 %v3778, %v3776
        %v3927 = vpack.c.b16 %v3781, %v3779
        %v3928 = vpack.c.b16 %v3782, %v3780
        %v3929 = vpack.c.b16 %v3785, %v3783
        %v3930 = vpack.c.b16 %v3786, %v3784
        %v3931 = vpack.c.b16 %v3789, %v3787
        %v3932 = vpack.c.b16 %v3790, %v3788
        %v3933 = vpack.c.b16 %v3793, %v3791
        %v3934 = vpack.c.b16 %v3794, %v3792
        %v3935 = vpack.c.b16 %v3797, %v3795
        %v3936 = vpack.c.b16 %v3798, %v3796
        %v3937 = vpack.c.b16 %v3801, %v3799
        %v3938 = vpack.c.b16 %v3802, %v3800
        %v3939 = vpack.c.b16 %v3805, %v3803
        %v3940 = vpack.c.b16 %v3806, %v3804
        %v3941 = vpack.c.b16 %v3809, %v3807
        %v3942 = vpack.c.b16 %v3810, %v3808
        %v3943 = vpack.c.b16 %v3813, %v3811
        %v3944 = vpack.c.b16 %v3814, %v3812
        %v3945 = vpack.c.b16 %v3817, %v3815
        %v3946 = vpack.c.b16 %v3818, %v3816
        %4075 = vmatpush.bf16.msra.mxu0 %v3833
        %4076 = vmatpush.bf16.msra.mxu0 %v3831
        %4077 = vmatpush.bf16.msra.mxu0 %v3829
        %4078 = vmatpush.bf16.msra.mxu0 %v3827
        %4079 = vmatpush.bf16.msra.mxu0 %v3825
        %4080 = vmatpush.bf16.msra.mxu0 %v3823
        %4081 = vmatpush.bf16.msra.mxu0 %v3821
        %4082 = vmatpush.bf16.msra.mxu0 %v3819
        %4083 = vmatmul.bf16.gmra.mxu0 %v3297
        %v4084 = vpop.f32.mrf.mxu0
        %v4085 = vadd.f32 %v3433, %v4084
        %v4086 = vpop.f32.mrf.mxu0
        %v4087 = vadd.f32 %v3433, %v4086
        %4088 = vdwg.mxu0
        %4089 = vmatpush.bf16.msra.mxu0 %v3849
        %4090 = vmatpush.bf16.msra.mxu0 %v3847
        %4091 = vmatpush.bf16.msra.mxu0 %v3845
        %4092 = vmatpush.bf16.msra.mxu0 %v3843
        %4093 = vmatpush.bf16.msra.mxu0 %v3841
        %4094 = vmatpush.bf16.msra.mxu0 %v3839
        %4095 = vmatpush.bf16.msra.mxu0 %v3837
        %4096 = vmatpush.bf16.msra.mxu0 %v3835
        %4097 = vmatmul.bf16.gmra.mxu0 %v3298
        %v4098 = vpop.f32.mrf.mxu0
        %v4099 = vadd.f32 %v4085, %v4098
        %v4100 = vpop.f32.mrf.mxu0
        %v4101 = vadd.f32 %v4087, %v4100
        %4102 = vdwg.mxu0
        %4103 = vmatpush.bf16.msra.mxu0 %v3865
        %4104 = vmatpush.bf16.msra.mxu0 %v3863
        %4105 = vmatpush.bf16.msra.mxu0 %v3861
        %4106 = vmatpush.bf16.msra.mxu0 %v3859
        %4107 = vmatpush.bf16.msra.mxu0 %v3857
        %4108 = vmatpush.bf16.msra.mxu0 %v3855
        %4109 = vmatpush.bf16.msra.mxu0 %v3853
        %4110 = vmatpush.bf16.msra.mxu0 %v3851
        %4111 = vmatmul.bf16.gmra.mxu0 %v3299
        %v4112 = vpop.f32.mrf.mxu0
        %v4113 = vadd.f32 %v4099, %v4112
        %v4114 = vpop.f32.mrf.mxu0
        %v4115 = vadd.f32 %v4101, %v4114
        %4116 = vdwg.mxu0
        %4117 = vmatpush.bf16.msra.mxu0 %v3881
        %4118 = vmatpush.bf16.msra.mxu0 %v3879
        %4119 = vmatpush.bf16.msra.mxu0 %v3877
        %4120 = vmatpush.bf16.msra.mxu0 %v3875
        %4121 = vmatpush.bf16.msra.mxu0 %v3873
        %4122 = vmatpush.bf16.msra.mxu0 %v3871
        %4123 = vmatpush.bf16.msra.mxu0 %v3869
        %4124 = vmatpush.bf16.msra.mxu0 %v3867
        %4125 = vmatmul.bf16.gmra.mxu0 %v3300
        %v4126 = vpop.f32.mrf.mxu0
        %v4127 = vadd.f32 %v4113, %v4126
        %v4128 = vpop.f32.mrf.mxu0
        %v4129 = vadd.f32 %v4115, %v4128
        %4130 = vdwg.mxu0
        %4131 = vmatpush.bf16.msra.mxu0 %v3897
        %4132 = vmatpush.bf16.msra.mxu0 %v3895
        %4133 = vmatpush.bf16.msra.mxu0 %v3893
        %4134 = vmatpush.bf16.msra.mxu0 %v3891
        %4135 = vmatpush.bf16.msra.mxu0 %v3889
        %4136 = vmatpush.bf16.msra.mxu0 %v3887
        %4137 = vmatpush.bf16.msra.mxu0 %v3885
        %4138 = vmatpush.bf16.msra.mxu0 %v3883
        %4139 = vmatmul.bf16.gmra.mxu0 %v3301
        %v4140 = vpop.f32.mrf.mxu0
        %v4141 = vadd.f32 %v4127, %v4140
        %v4142 = vpop.f32.mrf.mxu0
        %v4143 = vadd.f32 %v4129, %v4142
        %4144 = vdwg.mxu0
        %4145 = vmatpush.bf16.msra.mxu0 %v3913
        %4146 = vmatpush.bf16.msra.mxu0 %v3911
        %4147 = vmatpush.bf16.msra.mxu0 %v3909
        %4148 = vmatpush.bf16.msra.mxu0 %v3907
        %4149 = vmatpush.bf16.msra.mxu0 %v3905
        %4150 = vmatpush.bf16.msra.mxu0 %v3903
        %4151 = vmatpush.bf16.msra.mxu0 %v3901
        %4152 = vmatpush.bf16.msra.mxu0 %v3899
        %4153 = vmatmul.bf16.gmra.mxu0 %v3302
        %v4154 = vpop.f32.mrf.mxu0
        %v4155 = vadd.f32 %v4141, %v4154
        %v4156 = vpop.f32.mrf.mxu0
        %v4157 = vadd.f32 %v4143, %v4156
        %4158 = vdwg.mxu0
        %4159 = vmatpush.bf16.msra.mxu0 %v3929
        %4160 = vmatpush.bf16.msra.mxu0 %v3927
        %4161 = vmatpush.bf16.msra.mxu0 %v3925
        %4162 = vmatpush.bf16.msra.mxu0 %v3923
        %4163 = vmatpush.bf16.msra.mxu0 %v3921
        %4164 = vmatpush.bf16.msra.mxu0 %v3919
        %4165 = vmatpush.bf16.msra.mxu0 %v3917
        %4166 = vmatpush.bf16.msra.mxu0 %v3915
        %4167 = vmatmul.bf16.gmra.mxu0 %v3303
        %v4168 = vpop.f32.mrf.mxu0
        %v4169 = vadd.f32 %v4155, %v4168
        %v4170 = vpop.f32.mrf.mxu0
        %v4171 = vadd.f32 %v4157, %v4170
        %4172 = vdwg.mxu0
        %4173 = vmatpush.bf16.msra.mxu0 %v3945
        %4174 = vmatpush.bf16.msra.mxu0 %v3943
        %4175 = vmatpush.bf16.msra.mxu0 %v3941
        %4176 = vmatpush.bf16.msra.mxu0 %v3939
        %4177 = vmatpush.bf16.msra.mxu0 %v3937
        %4178 = vmatpush.bf16.msra.mxu0 %v3935
        %4179 = vmatpush.bf16.msra.mxu0 %v3933
        %4180 = vmatpush.bf16.msra.mxu0 %v3931
        %4181 = vmatmul.bf16.gmra.mxu0 %v3304
        %v4182 = vpop.f32.mrf.mxu0
        %v4183 = vadd.f32 %v4169, %v4182
        %v4184 = vpop.f32.mrf.mxu0
        %v4185 = vadd.f32 %v4171, %v4184
        %4186 = vdwg.mxu0
        %4187 = vmatpush.bf16.msra.mxu0 %v3834
        %4188 = vmatpush.bf16.msra.mxu0 %v3832
        %4189 = vmatpush.bf16.msra.mxu0 %v3830
        %4190 = vmatpush.bf16.msra.mxu0 %v3828
        %4191 = vmatpush.bf16.msra.mxu0 %v3826
        %4192 = vmatpush.bf16.msra.mxu0 %v3824
        %4193 = vmatpush.bf16.msra.mxu0 %v3822
        %4194 = vmatpush.bf16.msra.mxu0 %v3820
        %4195 = vmatmul.bf16.gmra.mxu0 %v3297
        %v4196 = vpop.f32.mrf.mxu0
        %v4197 = vadd.f32 %v3434, %v4196
        %v4198 = vpop.f32.mrf.mxu0
        %v4199 = vadd.f32 %v3434, %v4198
        %4200 = vdwg.mxu0
        %4201 = vmatpush.bf16.msra.mxu0 %v3850
        %4202 = vmatpush.bf16.msra.mxu0 %v3848
        %4203 = vmatpush.bf16.msra.mxu0 %v3846
        %4204 = vmatpush.bf16.msra.mxu0 %v3844
        %4205 = vmatpush.bf16.msra.mxu0 %v3842
        %4206 = vmatpush.bf16.msra.mxu0 %v3840
        %4207 = vmatpush.bf16.msra.mxu0 %v3838
        %4208 = vmatpush.bf16.msra.mxu0 %v3836
        %4209 = vmatmul.bf16.gmra.mxu0 %v3298
        %v4210 = vpop.f32.mrf.mxu0
        %v4211 = vadd.f32 %v4197, %v4210
        %v4212 = vpop.f32.mrf.mxu0
        %v4213 = vadd.f32 %v4199, %v4212
        %4214 = vdwg.mxu0
        %4215 = vmatpush.bf16.msra.mxu0 %v3866
        %4216 = vmatpush.bf16.msra.mxu0 %v3864
        %4217 = vmatpush.bf16.msra.mxu0 %v3862
        %4218 = vmatpush.bf16.msra.mxu0 %v3860
        %4219 = vmatpush.bf16.msra.mxu0 %v3858
        %4220 = vmatpush.bf16.msra.mxu0 %v3856
        %4221 = vmatpush.bf16.msra.mxu0 %v3854
        %4222 = vmatpush.bf16.msra.mxu0 %v3852
        %4223 = vmatmul.bf16.gmra.mxu0 %v3299
        %v4224 = vpop.f32.mrf.mxu0
        %v4225 = vadd.f32 %v4211, %v4224
        %v4226 = vpop.f32.mrf.mxu0
        %v4227 = vadd.f32 %v4213, %v4226
        %4228 = vdwg.mxu0
        %4229 = vmatpush.bf16.msra.mxu0 %v3882
        %4230 = vmatpush.bf16.msra.mxu0 %v3880
        %4231 = vmatpush.bf16.msra.mxu0 %v3878
        %4232 = vmatpush.bf16.msra.mxu0 %v3876
        %4233 = vmatpush.bf16.msra.mxu0 %v3874
        %4234 = vmatpush.bf16.msra.mxu0 %v3872
        %4235 = vmatpush.bf16.msra.mxu0 %v3870
        %4236 = vmatpush.bf16.msra.mxu0 %v3868
        %4237 = vmatmul.bf16.gmra.mxu0 %v3300
        %v4238 = vpop.f32.mrf.mxu0
        %v4239 = vadd.f32 %v4225, %v4238
        %v4240 = vpop.f32.mrf.mxu0
        %v4241 = vadd.f32 %v4227, %v4240
        %4242 = vdwg.mxu0
        %4243 = vmatpush.bf16.msra.mxu0 %v3898
        %4244 = vmatpush.bf16.msra.mxu0 %v3896
        %4245 = vmatpush.bf16.msra.mxu0 %v3894
        %4246 = vmatpush.bf16.msra.mxu0 %v3892
        %4247 = vmatpush.bf16.msra.mxu0 %v3890
        %4248 = vmatpush.bf16.msra.mxu0 %v3888
        %4249 = vmatpush.bf16.msra.mxu0 %v3886
        %4250 = vmatpush.bf16.msra.mxu0 %v3884
        %4251 = vmatmul.bf16.gmra.mxu0 %v3301
        %v4252 = vpop.f32.mrf.mxu0
        %v4253 = vadd.f32 %v4239, %v4252
        %v4254 = vpop.f32.mrf.mxu0
        %v4255 = vadd.f32 %v4241, %v4254
        %4256 = vdwg.mxu0
        %4257 = vmatpush.bf16.msra.mxu0 %v3914
        %4258 = vmatpush.bf16.msra.mxu0 %v3912
        %4259 = vmatpush.bf16.msra.mxu0 %v3910
        %4260 = vmatpush.bf16.msra.mxu0 %v3908
        %4261 = vmatpush.bf16.msra.mxu0 %v3906
        %4262 = vmatpush.bf16.msra.mxu0 %v3904
        %4263 = vmatpush.bf16.msra.mxu0 %v3902
        %4264 = vmatpush.bf16.msra.mxu0 %v3900
        %4265 = vmatmul.bf16.gmra.mxu0 %v3302
        %v4266 = vpop.f32.mrf.mxu0
        %v4267 = vadd.f32 %v4253, %v4266
        %v4268 = vpop.f32.mrf.mxu0
        %v4269 = vadd.f32 %v4255, %v4268
        %4270 = vdwg.mxu0
        %4271 = vmatpush.bf16.msra.mxu0 %v3930
        %4272 = vmatpush.bf16.msra.mxu0 %v3928
        %4273 = vmatpush.bf16.msra.mxu0 %v3926
        %4274 = vmatpush.bf16.msra.mxu0 %v3924
        %4275 = vmatpush.bf16.msra.mxu0 %v3922
        %4276 = vmatpush.bf16.msra.mxu0 %v3920
        %4277 = vmatpush.bf16.msra.mxu0 %v3918
        %4278 = vmatpush.bf16.msra.mxu0 %v3916
        %4279 = vmatmul.bf16.gmra.mxu0 %v3303
        %v4280 = vpop.f32.mrf.mxu0
        %v4281 = vadd.f32 %v4267, %v4280
        %v4282 = vpop.f32.mrf.mxu0
        %v4283 = vadd.f32 %v4269, %v4282
        %4284 = vdwg.mxu0
        %4285 = vmatpush.bf16.msra.mxu0 %v3946
        %4286 = vmatpush.bf16.msra.mxu0 %v3944
        %4287 = vmatpush.bf16.msra.mxu0 %v3942
        %4288 = vmatpush.bf16.msra.mxu0 %v3940
        %4289 = vmatpush.bf16.msra.mxu0 %v3938
        %4290 = vmatpush.bf16.msra.mxu0 %v3936
        %4291 = vmatpush.bf16.msra.mxu0 %v3934
        %4292 = vmatpush.bf16.msra.mxu0 %v3932
        %4293 = vmatmul.bf16.gmra.mxu0 %v3304
        %v4294 = vpop.f32.mrf.mxu0
        %v4295 = vadd.f32 %v4281, %v4294
        %v4296 = vpop.f32.mrf.mxu0
        %v4297 = vadd.f32 %v4283, %v4296
        %4298 = vdwg.mxu0
        %v4299 = vadd.f32 %v2135, %v4183
        %v4300 = vadd.f32 %v2136, %v4295
        %v4301 = vadd.f32 %v2137, %v4185
        %v4302 = vadd.f32 %v2138, %v4297
        %v4303 = vadd.f32 %v4299, %v4300
        %4304 = vadd.xlane.f32.xlu0 %v4303
        %v4305 = vpop.xlane.xlu0 %4304
        %v4306 = vadd.f32 %v4301, %v4302
        %4307 = vadd.xlane.f32.xlu0 %v4306
        %v4308 = vpop.xlane.xlu0 %4307
        %v4309 = vmul.f32 %v4305, %v2082
        %v4310 = vmul.f32 %v4308, %v2082
        %v4311 = vsub.f32 %v4299, %v4309
        %v4312 = vsub.f32 %v4300, %v4309
        %v4313 = vsub.f32 %v4301, %v4310
        %v4314 = vsub.f32 %v4302, %v4310
        %v4315 = vmul.f32 %v4311, %v4311
        %v4316 = vmul.f32 %v4312, %v4312
        %v4317 = vmul.f32 %v4313, %v4313
        %v4318 = vmul.f32 %v4314, %v4314
        %v4319 = vadd.f32 %v4315, %v4316
        %4320 = vadd.xlane.f32.xlu0 %v4319
        %v4321 = vpop.xlane.xlu0 %4320
        %v4322 = vadd.f32 %v4317, %v4318
        %4323 = vadd.xlane.f32.xlu0 %v4322
        %v4324 = vpop.xlane.xlu0 %4323
        %v4325 = vmul.f32 %v4321, %v2082
        %v4326 = vmul.f32 %v4324, %v2082
        %v4327 = vadd.f32 %v4325, 1e-12
        %v4328 = vadd.f32 %v4326, 1e-12
        %v4329 = vrsqrt.pop %v4327
        %v4330 = vmul.f32 %v4329, %v4327
        %v4331 = vmul.f32 %v4330, %v4329
        %v4332 = vmul.f32 0.5, %v4331
        %v4333 = vsub.f32 1.5, %v4332
        %v4334 = vmul.f32 %v4329, %v4333
        %vm4335 = vweird.f32 %v4327
        %vm4336 = vweird.f32 %v4329
        %vm4337 = vmor %vm4335, %vm4336
        %v4338 = vsel %vm4337, %v4329, %v4334
        %v4339 = vrsqrt.pop %v4328
        %v4340 = vmul.f32 %v4339, %v4328
        %v4341 = vmul.f32 %v4340, %v4339
        %v4342 = vmul.f32 0.5, %v4341
        %v4343 = vsub.f32 1.5, %v4342
        %v4344 = vmul.f32 %v4339, %v4343
        %vm4345 = vweird.f32 %v4328
        %vm4346 = vweird.f32 %v4339
        %vm4347 = vmor %vm4345, %vm4346
        %v4348 = vsel %vm4347, %v4339, %v4344
        %v4349 = vmul.f32 %v4311, %v4338
        %v4350 = vmul.f32 %v4312, %v4338
        %v4351 = vmul.f32 %v4313, %v4348
        %v4352 = vmul.f32 %v4314, %v4348
        %v4353 = vperm.slane %v520, 7
        %v4354 = vperm.slane %v521, 7
        %v4355 = vmul.f32 %v4349, %v4353
        %v4356 = vmul.f32 %v4350, %v4354
        %v4357 = vmul.f32 %v4351, %v4353
        %v4358 = vmul.f32 %v4352, %v4354
        %v4359 = vperm.slane %v522, 0
        %v4360 = vperm.slane %v523, 0
        %v4361 = vadd.f32 %v4355, %v4359
        %v4362 = vadd.f32 %v4356, %v4360
        %v4363 = vadd.f32 %v4357, %v4359
        %v4364 = vadd.f32 %v4358, %v4360
        %4365 = vst [vmem:[#allocation2] sm:$0xff] %v4361
        %4366 = vst [vmem:[#allocation2 + $0x8] sm:$0xff] %v4362
        %4367 = vst [vmem:[#allocation2 + $0x10] sm:$0xff] %v4363
        %4368 = vst [vmem:[#allocation2 + $0x18] sm:$0xff] %v4364
        %p4369 = scmp.eq.s32.totalorder %s30, 1
        // Predicated region
        $region77: #{label_classifier_forward.1} parent=55 // pred_check
          %p4370 = pneg %p4369
        $region78: #{label_classifier_forward.1} parent=55 // pred_check_branch
          %4372 = sbr.rel (%p4370) target = $region80
        $region79: #{label_classifier_forward.1} parent=55 // pred_region
          %v4373 = vpack.c.bf16 %v4361, %v4361
          %v4374 = vpack.c.bf16 %v4362, %v4362
          %v4375 = vpack.c.bf16 %v4363, %v4363
          %v4376 = vpack.c.bf16 %v4364, %v4364
          %v4377 = vld [vmem:[%s7] sm:$0xf]
          %v4378 = vld [vmem:[%s7 + $0x4] sm:$0xf]
          %v4379 = vld [vmem:[%s7 + $0x8] sm:$0xf]
          %v4380 = vld [vmem:[%s7 + $0xc] sm:$0xf]
          %v4381 = vld [vmem:[%s7 + $0x10] sm:$0xf]
          %v4382 = vld [vmem:[%s7 + $0x14] sm:$0xf]
          %v4383 = vld [vmem:[%s7 + $0x18] sm:$0xf]
          %v4384 = vld [vmem:[%s7 + $0x1c] sm:$0xf]
          %v4385 = vld [vmem:[%s7 + $0x20] sm:$0xf]
          %v4386 = vld [vmem:[%s7 + $0x24] sm:$0xf]
          %v4387 = vld [vmem:[%s7 + $0x28] sm:$0xf]
          %v4388 = vld [vmem:[%s7 + $0x2c] sm:$0xf]
          %v4389 = vld [vmem:[%s7 + $0x30] sm:$0xf]
          %v4390 = vld [vmem:[%s7 + $0x34] sm:$0xf]
          %v4391 = vld [vmem:[%s7 + $0x38] sm:$0xf]
          %v4392 = vld [vmem:[%s7 + $0x3c] sm:$0xf]
          %v4393 = vld [vmem:[%s7 + $0x40] sm:$0xf]
          %v4394 = vld [vmem:[%s7 + $0x44] sm:$0xf]
          %v4395 = vld [vmem:[%s7 + $0x48] sm:$0xf]
          %v4396 = vld [vmem:[%s7 + $0x4c] sm:$0xf]
          %v4397 = vld [vmem:[%s7 + $0x50] sm:$0xf]
          %v4398 = vld [vmem:[%s7 + $0x54] sm:$0xf]
          %v4399 = vld [vmem:[%s7 + $0x58] sm:$0xf]
          %v4400 = vld [vmem:[%s7 + $0x5c] sm:$0xf]
          %v4401 = vld [vmem:[%s7 + $0x60] sm:$0xf]
          %v4402 = vld [vmem:[%s7 + $0x64] sm:$0xf]
          %v4403 = vld [vmem:[%s7 + $0x68] sm:$0xf]
          %v4404 = vld [vmem:[%s7 + $0x6c] sm:$0xf]
          %v4405 = vld [vmem:[%s7 + $0x70] sm:$0xf]
          %v4406 = vld [vmem:[%s7 + $0x74] sm:$0xf]
          %v4407 = vld [vmem:[%s7 + $0x78] sm:$0xf]
          %v4408 = vld [vmem:[%s7 + $0x7c] sm:$0xf]
          %v4409 = vld [vmem:[%s8] sm:$0x1]
          %v4411 = vperm.slane %v4409, 0
          %v4417 = vunpack.c.l.b16 %v4373
          %v4418 = vunpack.c.l.b16 %v4374
          %v4419 = vunpack.c.l.b16 %v4375
          %v4420 = vunpack.c.l.b16 %v4376
          %v4421 = vrot.slane %v4419, 7
          %vm4422 = vcmask 1041409
          %v4423 = vsel %vm4422, %v4421, %v4417
          %v4424 = vrot.slane %v4420, 7
          %v4425 = vsel %vm4422, %v4424, %v4418
          %v4426 = vpack.c.b16 %v4423, %v4423
          %v4427 = vpack.c.b16 %v4425, %v4425
          %v4462 = vunpack.c.l.b16 %v4377
          %v4463 = vunpack.c.l.b16 %v4378
          %v4464 = vunpack.c.l.b16 %v4379
          %v4465 = vunpack.c.l.b16 %v4380
          %v4466 = vunpack.c.l.b16 %v4381
          %v4467 = vunpack.c.l.b16 %v4382
          %v4468 = vunpack.c.l.b16 %v4383
          %v4469 = vunpack.c.l.b16 %v4384
          %v4470 = vunpack.c.l.b16 %v4385
          %v4471 = vunpack.c.l.b16 %v4386
          %v4472 = vunpack.c.l.b16 %v4387
          %v4473 = vunpack.c.l.b16 %v4388
          %v4474 = vunpack.c.l.b16 %v4389
          %v4475 = vunpack.c.l.b16 %v4390
          %v4476 = vunpack.c.l.b16 %v4391
          %v4477 = vunpack.c.l.b16 %v4392
          %v4478 = vunpack.c.l.b16 %v4393
          %v4479 = vunpack.c.l.b16 %v4394
          %v4480 = vunpack.c.l.b16 %v4395
          %v4481 = vunpack.c.l.b16 %v4396
          %v4482 = vunpack.c.l.b16 %v4397
          %v4483 = vunpack.c.l.b16 %v4398
          %v4484 = vunpack.c.l.b16 %v4399
          %v4485 = vunpack.c.l.b16 %v4400
          %v4486 = vunpack.c.l.b16 %v4401
          %v4487 = vunpack.c.l.b16 %v4402
          %v4488 = vunpack.c.l.b16 %v4403
          %v4489 = vunpack.c.l.b16 %v4404
          %v4490 = vunpack.c.l.b16 %v4405
          %v4491 = vunpack.c.l.b16 %v4406
          %v4492 = vunpack.c.l.b16 %v4407
          %v4493 = vunpack.c.l.b16 %v4408
          %v4494 = vpack.c.b16 %v4463, %v4462
          %v4495 = vpack.c.b16 %v4465, %v4464
          %v4496 = vpack.c.b16 %v4467, %v4466
          %v4497 = vpack.c.b16 %v4469, %v4468
          %v4498 = vpack.c.b16 %v4471, %v4470
          %v4499 = vpack.c.b16 %v4473, %v4472
          %v4500 = vpack.c.b16 %v4475, %v4474
          %v4501 = vpack.c.b16 %v4477, %v4476
          %v4502 = vpack.c.b16 %v4479, %v4478
          %v4503 = vpack.c.b16 %v4481, %v4480
          %v4504 = vpack.c.b16 %v4483, %v4482
          %v4505 = vpack.c.b16 %v4485, %v4484
          %v4506 = vpack.c.b16 %v4487, %v4486
          %v4507 = vpack.c.b16 %v4489, %v4488
          %v4508 = vpack.c.b16 %v4491, %v4490
          %v4509 = vpack.c.b16 %v4493, %v4492
          %4526 = vmatpush.bf16.msra.mxu0 %v4501
          %4527 = vmatpush.bf16.msra.mxu0 %v4500
          %4528 = vmatpush.bf16.msra.mxu0 %v4499
          %4529 = vmatpush.bf16.msra.mxu0 %v4498
          %4530 = vmatpush.bf16.msra.mxu0 %v4497
          %4531 = vmatpush.bf16.msra.mxu0 %v4496
          %4532 = vmatpush.bf16.msra.mxu0 %v4495
          %4533 = vmatpush.bf16.msra.mxu0 %v4494
          %4534 = vmatmul.bf16.gmra.mxu0 %v4426
          %v4535 = vpop.f32.mrf.mxu0
          %v4536 = vadd.f32 %v4411, %v4535
          %v4537 = vpop.f32.mrf.mxu0
          %4538 = vdwg.mxu0
          %4539 = vmatpush.bf16.msra.mxu0 %v4509
          %4540 = vmatpush.bf16.msra.mxu0 %v4508
          %4541 = vmatpush.bf16.msra.mxu0 %v4507
          %4542 = vmatpush.bf16.msra.mxu0 %v4506
          %4543 = vmatpush.bf16.msra.mxu0 %v4505
          %4544 = vmatpush.bf16.msra.mxu0 %v4504
          %4545 = vmatpush.bf16.msra.mxu0 %v4503
          %4546 = vmatpush.bf16.msra.mxu0 %v4502
          %4547 = vmatmul.bf16.gmra.mxu0 %v4427
          %v4548 = vpop.f32.mrf.mxu0
          %v4549 = vadd.f32 %v4536, %v4548
          %v4550 = vpop.f32.mrf.mxu0
          %4551 = vdwg.mxu0
          %4552 = vst [vmem:[#allocation11] sm:$0x3] %v4549
        $region80: #{label_classifier_forward.1} parent=55 // pred_fallthru
          _
        // Predicated region
        $region81: #{label_classifier_forward.1} parent=55 // pred_check
          %p4553 = pneg %p262
        $region82: #{label_classifier_forward.1} parent=55 // pred_check_branch
          %4555 = sbr.rel (%p4553) target = $region84
        $region83: #{label_classifier_forward.1} parent=55 // pred_region
          %4557 = vsyncadd [#allocation5], 0
          %s4559 = sshll.u32 [#allocation11], 4
          %s4560 = int_to_ptr.vmem [resolvable:$true] %s4559
          %s4561 = sshll.u32 %s9, 4
          %s4562 = int_to_ptr.hbm [resolvable:$true] %s4561
          %4564 = dma.vmem_to_hbm [thread:$0]  %s4560, 32, %s4562, [#allocation5]
        $region84: #{label_classifier_forward.1} parent=55 // pred_fallthru
          _
        // Predicated region
        $region85: #{label_classifier_forward.1} parent=55 // pred_check
          %p4565 = pneg %p262
        $region86: #{label_classifier_forward.1} parent=55 // pred_check_branch
          %4567 = sbr.rel (%p4565) target = $region88
        $region87: #{label_classifier_forward.1} parent=55 // pred_region
          %4569 = dma.done [#allocation5], 32
        $region88: #{label_classifier_forward.1} parent=55 // pred_fallthru
          _
      $region56: #{label_classifier_forward.1} parent=5 // pred_fallthru
        _
      %p4570 = scmp.le.s32.totalorder 2, %s25
      // Predicated region
      $region89: #{label_classifier_forward.1} parent=5 // pred_check
        %p4571 = pneg %p4570
      $region90: #{label_classifier_forward.1} parent=5 // pred_check_branch
        %4573 = sbr.rel (%p4571) target = $region92
      $region91: #{label_classifier_forward.1} parent=5 // pred_region
        %s4574 = ssub.s32 %s25, 2
      $region92: #{label_classifier_forward.1} parent=5 // pred_fallthru
        _
    $region6: #{label_classifier_forward.1} parent=1 // loop_footer
      %s29 = sadd.s32 1, %s25
    $region7: #{label_classifier_forward.1} parent=1 // loop_footer_branch
      %24 = sbr.rel target = $region3
    $region8: #{label_classifier_forward.1} parent=1 // loop_exit
      _
    %4575 = vsyncpa [#allocation4], 1
    %s4576 = scalar_lea.sflag [#allocation4], 1
    %4577 = vsyncpa %s4576, 1
    %4578 = vsyncpa [#allocation7], 1
    %s4579 = scalar_lea.sflag [#allocation7], 1
    %4580 = vsyncpa %s4579, 1
    %4581 = vsyncpa [#allocation10], 1
    %s4582 = scalar_lea.sflag [#allocation10], 1
    %4583 = vsyncpa %s4582, 1
    %4584 = vsyncpa [#allocation5], 1
    %s4585 = scalar_lea.sflag [#allocation5], 1
    %4586 = vsyncpa %s4585, 1

</llo_original>
